<compile_context>
chip_gen: v7x
topology: tpu7x:2x2x1
jax: 0.10.0
libtpu: 0.0.40
codegen_flags: <defaults>
</compile_context>

<pallas_src>
import functools
import math

import jax
import jax.numpy as jnp
from jax import lax
from jax.experimental import pallas as pl
from jax.experimental.pallas import tpu as pltpu


KERNEL_SIZES = (7, 5, 3)
STRIDES = (2, 2, 2)
PADDINGS = (1, 1, 1)

_LANE = 128
_SUBLANE_BF16 = 16          # bf16 packs 16 rows/vreg; keep sublane block dims multiples of 16
_HALO = 16                  # per-tile halo rows per phase (needs >= (K-1)//2 = 3), bf16-aligned
_INV_SQRT2 = 0.7071067811865475244
_SQRT_2_OVER_PI = 0.7978845608028654
_GELU_C = 0.044715


def _round_up(x, m):
    return (x + m - 1) // m * m


# ---------------- hardware-dependent tiling knobs ----------------

def _vmem_capacity_bytes():
    try:
        info = pltpu.get_tpu_info()
        cap = getattr(info, "vmem_capacity_bytes", None)
        if cap:
            return int(cap)
    except Exception:
        pass
    return 64 * 1024 * 1024  # conservative default (v7x per-core VMEM)


def _is_v5e():
    try:
        kind = jax.devices()[0].device_kind.lower()
        return ("v5 lite" in kind) or ("v5e" in kind) or ("v5litepod" in kind)
    except Exception:
        return False


# ---------------- Pallas kernel: fused K-tap GEMM + bias + GELU (one conv layer) ----------------

def _make_conv_kernel(K, TL):
    def kernel(xe_ref, he_ref, xo_ref, ho_ref, w_ref, b_ref, o_ref):
        # xe/xo: (TL, Cp_in) bf16 current even/odd stride-2 phase tile
        # he/ho: (_HALO, Cp_in) bf16 halo rows just past this tile (per-tile, gathered in wrapper)
        # w_ref: (K*Cp_in, TN) bf16 fused tap weights (tap-major rows)   b_ref: (1, TN) f32
        # o_ref: (TL, TN) bf16 lane-dense output tile
        we = jnp.concatenate([xe_ref[...], he_ref[...]], axis=0)   # (TL+_HALO, Cp_in)
        wo = jnp.concatenate([xo_ref[...], ho_ref[...]], axis=0)
        taps = []
        for k in range(K):                      # static: tap k lives in phase (k%2) at row +k//2
            src = we if (k % 2 == 0) else wo
            off = k // 2
            taps.append(src[off:off + TL, :])   # static slices only (no dynamic sublane offsets)
        x_cat = jnp.concatenate(taps, axis=1)   # (TL, K*Cp_in) bf16, lane-axis concat (128-aligned)
        acc = jnp.dot(x_cat, w_ref[...], preferred_element_type=jnp.float32)  # MXU-accumulated
        y = acc + b_ref[...]
        # tanh-form GELU: transcendental goes to the EUP slot, few VALU ops.
        g = 0.5 * y * (1.0 + jnp.tanh(_SQRT_2_OVER_PI * (y + _GELU_C * y * y * y)))
        o_ref[...] = g.astype(o_ref.dtype)

    return kernel


def _conv1d_gelu_layer(x_btc, w_packed, b_packed, *, K, stride, padding,
                       tl_target, tn, vmem_limit):
    """One Conv1d(stride=2)+GELU. x_btc: (B, T, Cp_in) bf16 channels-last (lane-padded).
    Returns (B, L_out, Cp_out) bf16."""
    assert stride == 2, "MelEncoder uses stride=2 for every layer"
    B, T, Cp_in = x_btc.shape
    KC, Cp_out = w_packed.shape
    assert KC == K * Cp_in, (KC, K, Cp_in)

    L_out = (T + 2 * padding - K) // stride + 1
    TL = min(tl_target, _round_up(L_out, _SUBLANE_BF16))
    n_l = pl.cdiv(L_out, TL)
    L_pad = n_l * TL
    TN = min(tn, Cp_out)           # Cp_out is a multiple of 128, so TN always divides it
    if Cp_out % TN != 0:
        TN = _LANE
    n_n = Cp_out // TN

    # Zero-pad time (conv padding + tile slack + halo) and split once into the two stride-2
    # phases (same total bytes as the input, no Kx im2col). Output row l, tap k reads
    # phase[k % 2] at row l + k//2.
    phase_len = L_pad + _HALO
    total = 2 * phase_len
    xp = jnp.pad(x_btc, ((0, 0), (padding, total - T - padding), (0, 0)))
    xe_full = xp[:, 0::2, :]                         # (B, phase_len, Cp_in)
    xo_full = xp[:, 1::2, :]
    xe = xe_full[:, :L_pad, :]
    xo = xo_full[:, :L_pad, :]
    # Small per-tile halo arrays (<= _HALO/TL of the activation) so the kernel's phase blocks
    # are plain non-overlapping (TL, Cp_in) tiles with purely static in-block tap slices.
    he = jnp.concatenate(
        [xe_full[:, (l + 1) * TL:(l + 1) * TL + _HALO, :] for l in range(n_l)], axis=1)
    ho = jnp.concatenate(
        [xo_full[:, (l + 1) * TL:(l + 1) * TL + _HALO, :] for l in range(n_l)], axis=1)

    out = pl.pallas_call(
        _make_conv_kernel(K, TL),
        out_shape=jax.ShapeDtypeStruct((B, L_pad, Cp_out), jnp.bfloat16),
        grid=(B, n_n, n_l),                          # l innermost -> weights stay resident
        in_specs=[
            pl.BlockSpec((None, TL, Cp_in), lambda b, n, l: (b, l, 0)),      # even phase tile
            pl.BlockSpec((None, _HALO, Cp_in), lambda b, n, l: (b, l, 0)),   # even halo rows
            pl.BlockSpec((None, TL, Cp_in), lambda b, n, l: (b, l, 0)),      # odd phase tile
            pl.BlockSpec((None, _HALO, Cp_in), lambda b, n, l: (b, l, 0)),   # odd halo rows
            pl.BlockSpec((KC, TN), lambda b, n, l: (0, n)),                  # fused tap weights
            pl.BlockSpec((1, TN), lambda b, n, l: (0, n)),                   # bias
        ],
        out_specs=pl.BlockSpec((None, TL, TN), lambda b, n, l: (b, l, n)),
        compiler_params=pltpu.CompilerParams(
            dimension_semantics=("parallel", "parallel", "parallel"),
            vmem_limit_bytes=vmem_limit,
        ),
    )(xe, he, xo, ho, w_packed, b_packed)
    return out[:, :L_out, :]


# ---------------- MelEncoder: params + forward ----------------

def init_mel_encoder_params(key, n_mels, d_model):
    """Deterministic Conv1d params, same shapes/init range as torch.nn.Conv1d defaults."""
    params = []
    in_c = n_mels
    for ksize in KERNEL_SIZES:
        key, kw, kb = jax.random.split(key, 3)
        bound = 1.0 / math.sqrt(in_c * ksize)
        w = jax.random.uniform(kw, (d_model, in_c, ksize), jnp.float32, -bound, bound)
        b = jax.random.uniform(kb, (d_model,), jnp.float32, -bound, bound)
        params.append((w, b))
        in_c = d_model
    return params


def prepack_mel_encoder_params(params):
    """One-time repack: Conv1d (C_out, C_in, K) -> fused-tap (K*Cp_in, Cp_out) bf16 slab
    (channels lane-padded to multiples of 128, tap-major rows matching the kernel's lane concat),
    bias -> (1, Cp_out) f32. NOTE: weights are intentionally quantized to bf16 here (MXU input
    precision); accumulation stays f32."""
    packed = []
    for (w, b) in params:
        c_out, c_in, ksize = w.shape
        cp_in = _round_up(c_in, _LANE)
        cp_out = _round_up(c_out, _LANE)
        wk = jnp.transpose(w, (2, 1, 0))                              # (K, C_in, C_out)
        wk = jnp.pad(wk, ((0, 0), (0, cp_in - c_in), (0, cp_out - c_out)))
        wk = wk.reshape(ksize * cp_in, cp_out)                        # row = k*Cp_in + c_in
        bk = jnp.pad(b, (0, cp_out - c_out)).reshape(1, cp_out)
        packed.append((wk.astype(jnp.bfloat16), bk.astype(jnp.float32)))
    return packed


def mel_encoder_forward(packed_params, x_ncw, *, d_model):
    """x_ncw: (B, n_mels, T) PyTorch NCW layout. Returns (B, d_model, T_out) float32."""
    cap = _vmem_capacity_bytes()
    tl_target = 512 if cap >= (96 << 20) else 256     # bigger L tiles on 128 MiB parts (v5e/v6e)
    vmem_limit = min(cap // 2, 96 << 20)              # ~32 MiB on v7x, ~64 MiB on v5e/v6e
    tn = _LANE if _is_v5e() else 256                  # match 128x128 (v5e) / 256x256 MXU result

    x = jnp.transpose(x_ncw, (0, 2, 1)).astype(jnp.bfloat16)          # NCW -> NWC, bf16 acts
    cp0 = _round_up(x.shape[-1], _LANE)
    x = jnp.pad(x, ((0, 0), (0, 0), (0, cp0 - x.shape[-1])))          # lane-pad input channels
    for (wk, bk), ksize, s, p in zip(packed_params, KERNEL_SIZES, STRIDES, PADDINGS):
        x = _conv1d_gelu_layer(x, wk, bk, K=ksize, stride=s, padding=p,
                               tl_target=tl_target, tn=tn, vmem_limit=vmem_limit)
    return jnp.transpose(x[:, :, :d_model], (0, 2, 1)).astype(jnp.float32)


def mel_encoder_reference(params, x_ncw, *, matched=False):
    """Pure-JAX reference. matched=False: PyTorch semantics (f32, exact-erf GELU).
    matched=True: kernel-precision-matched (bf16 matmul inputs, bf16 inter-layer activations,
    f32 accumulation, tanh-form GELU)."""
    mm_dtype = jnp.bfloat16 if matched else jnp.float32
    x = x_ncw.astype(jnp.float32)
    for (w, b), s, p in zip(params, STRIDES, PADDINGS):
        y = lax.conv_general_dilated(
            x.astype(mm_dtype), w.astype(mm_dtype),
            window_strides=(s,), padding=[(p, p)],
            dimension_numbers=("NCH", "OIH", "NCH"),
            preferred_element_type=jnp.float32)
        y = y + b[None, :, None]
        if matched:
            y = 0.5 * y * (1.0 + jnp.tanh(_SQRT_2_OVER_PI * (y + _GELU_C * y * y * y)))
            x = y.astype(jnp.bfloat16)
        else:
            x = 0.5 * y * (1.0 + lax.erf(y * _INV_SQRT2))
    return x.astype(jnp.float32)


if __name__ == "__main__":
    B, n_mels, T, d_model = 2, 16, 64, 32
    key = jax.random.PRNGKey(0)
    key, kx = jax.random.split(key)
    x = jax.random.normal(kx, (B, n_mels, T), jnp.float32)
    params = init_mel_encoder_params(key, n_mels, d_model)
    packed = prepack_mel_encoder_params(params)

    fwd = jax.jit(functools.partial(mel_encoder_forward, d_model=d_model))
    out = jax.block_until_ready(fwd(packed, x))

    ref_matched = mel_encoder_reference(params, x, matched=True)   # same precision as kernel
    ref_f32 = mel_encoder_reference(params, x, matched=False)      # PyTorch f32 / exact-erf GELU
    assert out.shape == ref_f32.shape == (B, d_model, 7), (out.shape, ref_f32.shape)
    err_matched = float(jnp.max(jnp.abs(out - ref_matched)))
    err_f32 = float(jnp.max(jnp.abs(out - ref_f32)))
    assert err_matched < 2e-2, f"max abs error vs precision-matched ref {err_matched}"
    assert err_f32 < 5e-2, f"max abs error vs f32 exact-GELU ref {err_f32}"
    print("KERNEL_OK")
</pallas_src>

<mosaic_0001>
module attributes {stable_mosaic.version = 11 : i64} {
  func.func @kernel(%arg0: i32, %arg1: i32, %arg2: i32, %arg3: memref<1x32x128xbf16, #tpu.memory_space<vmem>>, %arg4: memref<1x16x128xbf16, #tpu.memory_space<vmem>>, %arg5: memref<1x32x128xbf16, #tpu.memory_space<vmem>>, %arg6: memref<1x16x128xbf16, #tpu.memory_space<vmem>>, %arg7: memref<896x128xbf16, #tpu.memory_space<vmem>>, %arg8: memref<1x128xf32, #tpu.memory_space<vmem>>, %arg9: memref<1x32x128xbf16, #tpu.memory_space<vmem>>) attributes {dimension_semantics = [#tpu.dimension_semantics<parallel>, #tpu.dimension_semantics<parallel>, #tpu.dimension_semantics<parallel>], iteration_bounds = array<i64: 2, 1, 1>, scalar_prefetch = 0 : i64, scratch_operands = 0 : i64, tpu.core_type = #tpu.core_type<tc>, window_params = [{transform_indices = @transform_0, window_bounds = array<i64: 1, 32, 128>}, {transform_indices = @transform_1, window_bounds = array<i64: 1, 16, 128>}, {transform_indices = @transform_2, window_bounds = array<i64: 1, 32, 128>}, {transform_indices = @transform_3, window_bounds = array<i64: 1, 16, 128>}, {transform_indices = @transform_4, window_bounds = array<i64: 896, 128>}, {transform_indices = @transform_5, window_bounds = array<i64: 1, 128>}, {transform_indices = @transform_6, window_bounds = array<i64: 1, 32, 128>}]} {
    %c0 = arith.constant 0 : index
    %c0_0 = arith.constant 0 : index
    %c0_1 = arith.constant 0 : index
    %0 = vector.load %arg3[%c0, %c0_0, %c0_1] : memref<1x32x128xbf16, #tpu.memory_space<vmem>>, vector<1x32x128xbf16>
    %1 = vector.shape_cast %0 : vector<1x32x128xbf16> to vector<32x128xbf16>
    %c0_2 = arith.constant 0 : index
    %c0_3 = arith.constant 0 : index
    %c0_4 = arith.constant 0 : index
    %2 = vector.load %arg4[%c0_2, %c0_3, %c0_4] : memref<1x16x128xbf16, #tpu.memory_space<vmem>>, vector<1x16x128xbf16>
    %3 = vector.shape_cast %2 : vector<1x16x128xbf16> to vector<16x128xbf16>
    %4 = tpu.concatenate %1, %3 in 0 : vector<32x128xbf16>, vector<16x128xbf16> -> vector<48x128xbf16>
    %c0_5 = arith.constant 0 : index
    %c0_6 = arith.constant 0 : index
    %c0_7 = arith.constant 0 : index
    %5 = vector.load %arg5[%c0_5, %c0_6, %c0_7] : memref<1x32x128xbf16, #tpu.memory_space<vmem>>, vector<1x32x128xbf16>
    %6 = vector.shape_cast %5 : vector<1x32x128xbf16> to vector<32x128xbf16>
    %c0_8 = arith.constant 0 : index
    %c0_9 = arith.constant 0 : index
    %c0_10 = arith.constant 0 : index
    %7 = vector.load %arg6[%c0_8, %c0_9, %c0_10] : memref<1x16x128xbf16, #tpu.memory_space<vmem>>, vector<1x16x128xbf16>
    %8 = vector.shape_cast %7 : vector<1x16x128xbf16> to vector<16x128xbf16>
    %9 = tpu.concatenate %6, %8 in 0 : vector<32x128xbf16>, vector<16x128xbf16> -> vector<48x128xbf16>
    %10 = vector.extract_strided_slice %4 {offsets = [0, 0], sizes = [32, 128], strides = [1, 1]} : vector<48x128xbf16> to vector<32x128xbf16>
    %11 = vector.extract_strided_slice %9 {offsets = [0, 0], sizes = [32, 128], strides = [1, 1]} : vector<48x128xbf16> to vector<32x128xbf16>
    %12 = vector.extract_strided_slice %4 {offsets = [1, 0], sizes = [32, 128], strides = [1, 1]} : vector<48x128xbf16> to vector<32x128xbf16>
    %13 = vector.extract_strided_slice %9 {offsets = [1, 0], sizes = [32, 128], strides = [1, 1]} : vector<48x128xbf16> to vector<32x128xbf16>
    %14 = vector.extract_strided_slice %4 {offsets = [2, 0], sizes = [32, 128], strides = [1, 1]} : vector<48x128xbf16> to vector<32x128xbf16>
    %15 = vector.extract_strided_slice %9 {offsets = [2, 0], sizes = [32, 128], strides = [1, 1]} : vector<48x128xbf16> to vector<32x128xbf16>
    %16 = vector.extract_strided_slice %4 {offsets = [3, 0], sizes = [32, 128], strides = [1, 1]} : vector<48x128xbf16> to vector<32x128xbf16>
    %17 = tpu.concatenate %10, %11, %12, %13, %14, %15, %16 in 1 : vector<32x128xbf16>, vector<32x128xbf16>, vector<32x128xbf16>, vector<32x128xbf16>, vector<32x128xbf16>, vector<32x128xbf16>, vector<32x128xbf16> -> vector<32x896xbf16>
    %c0_11 = arith.constant 0 : index
    %c0_12 = arith.constant 0 : index
    %18 = vector.load %arg7[%c0_11, %c0_12] : memref<896x128xbf16, #tpu.memory_space<vmem>>, vector<896x128xbf16>
    %cst = arith.constant dense<0.000000e+00> : vector<32x128xf32>
    %19 = tpu.matmul %17, %18, %cst {dimension_numbers = #tpu.dot_dimension_numbers<[1], [0], [0], [1], [0, 0, 1, 1], [], []>} : vector<32x896xbf16>, vector<896x128xbf16>, vector<32x128xf32> -> vector<32x128xf32>
    %c0_13 = arith.constant 0 : index
    %c0_14 = arith.constant 0 : index
    %20 = vector.load %arg8[%c0_13, %c0_14] : memref<1x128xf32, #tpu.memory_space<vmem>>, vector<1x128xf32>
    %21 = vector.broadcast %20 : vector<1x128xf32> to vector<32x128xf32>
    %22 = arith.addf %19, %21 : vector<32x128xf32>
    %cst_15 = arith.constant 5.000000e-01 : f32
    %23 = vector.broadcast %cst_15 : f32 to vector<32x128xf32>
    %24 = arith.mulf %23, %22 : vector<32x128xf32>
    %cst_16 = arith.constant 4.471500e-02 : f32
    %25 = vector.broadcast %cst_16 : f32 to vector<32x128xf32>
    %26 = arith.mulf %25, %22 : vector<32x128xf32>
    %27 = arith.mulf %26, %22 : vector<32x128xf32>
    %28 = arith.mulf %27, %22 : vector<32x128xf32>
    %29 = arith.addf %22, %28 : vector<32x128xf32>
    %cst_17 = arith.constant 0.797884583 : f32
    %30 = vector.broadcast %cst_17 : f32 to vector<32x128xf32>
    %31 = arith.mulf %30, %29 : vector<32x128xf32>
    %32 = math.tanh %31 : vector<32x128xf32>
    %cst_18 = arith.constant 1.000000e+00 : f32
    %33 = vector.broadcast %cst_18 : f32 to vector<32x128xf32>
    %34 = arith.addf %33, %32 : vector<32x128xf32>
    %35 = arith.mulf %24, %34 : vector<32x128xf32>
    %36 = arith.truncf %35 : vector<32x128xf32> to vector<32x128xbf16>
    %c0_19 = arith.constant 0 : index
    %c0_20 = arith.constant 0 : index
    %c0_21 = arith.constant 0 : index
    %37 = vector.load %arg9[%c0_19, %c0_20, %c0_21] : memref<1x32x128xbf16, #tpu.memory_space<vmem>>, vector<1x32x128xbf16>
    %38 = vector.shape_cast %37 : vector<1x32x128xbf16> to vector<32x128xbf16>
    %39 = vector.shape_cast %36 : vector<32x128xbf16> to vector<1x32x128xbf16>
    tpu.vector_store %arg9[%c0_19, %c0_20, %c0_21], %39 {strides = array<i32>} : memref<1x32x128xbf16, #tpu.memory_space<vmem>>, vector<1x32x128xbf16>,
    return
  }
  func.func @transform_0(%arg0: i32, %arg1: i32, %arg2: i32) -> (i32, i32, i32) {
    %c0_i32 = arith.constant 0 : i32
    %c0_i32_0 = arith.constant 0 : i32
    return %arg0, %arg2, %c0_i32 : i32, i32, i32
  }
  func.func @transform_1(%arg0: i32, %arg1: i32, %arg2: i32) -> (i32, i32, i32) {
    %c0_i32 = arith.constant 0 : i32
    %c0_i32_0 = arith.constant 0 : i32
    return %arg0, %arg2, %c0_i32 : i32, i32, i32
  }
  func.func @transform_2(%arg0: i32, %arg1: i32, %arg2: i32) -> (i32, i32, i32) {
    %c0_i32 = arith.constant 0 : i32
    %c0_i32_0 = arith.constant 0 : i32
    return %arg0, %arg2, %c0_i32 : i32, i32, i32
  }
  func.func @transform_3(%arg0: i32, %arg1: i32, %arg2: i32) -> (i32, i32, i32) {
    %c0_i32 = arith.constant 0 : i32
    %c0_i32_0 = arith.constant 0 : i32
    return %arg0, %arg2, %c0_i32 : i32, i32, i32
  }
  func.func @transform_4(%arg0: i32, %arg1: i32, %arg2: i32) -> (i32, i32) {
    %c0_i32 = arith.constant 0 : i32
    %c0_i32_0 = arith.constant 0 : i32
    return %c0_i32, %arg1 : i32, i32
  }
  func.func @transform_5(%arg0: i32, %arg1: i32, %arg2: i32) -> (i32, i32) {
    %c0_i32 = arith.constant 0 : i32
    %c0_i32_0 = arith.constant 0 : i32
    return %c0_i32, %arg1 : i32, i32
  }
  func.func @transform_6(%arg0: i32, %arg1: i32, %arg2: i32) -> (i32, i32, i32) {
    %c0_i32 = arith.constant 0 : i32
    return %arg0, %arg2, %arg1 : i32, i32, i32
  }
}

module attributes {stable_mosaic.version = 11 : i64} {
  func.func @kernel(%arg0: i32, %arg1: i32, %arg2: i32, %arg3: memref<1x16x128xbf16, #tpu.memory_space<vmem>>, %arg4: memref<1x16x128xbf16, #tpu.memory_space<vmem>>, %arg5: memref<1x16x128xbf16, #tpu.memory_space<vmem>>, %arg6: memref<1x16x128xbf16, #tpu.memory_space<vmem>>, %arg7: memref<640x128xbf16, #tpu.memory_space<vmem>>, %arg8: memref<1x128xf32, #tpu.memory_space<vmem>>, %arg9: memref<1x16x128xbf16, #tpu.memory_space<vmem>>) attributes {dimension_semantics = [#tpu.dimension_semantics<parallel>, #tpu.dimension_semantics<parallel>, #tpu.dimension_semantics<parallel>], iteration_bounds = array<i64: 2, 1, 1>, scalar_prefetch = 0 : i64, scratch_operands = 0 : i64, tpu.core_type = #tpu.core_type<tc>, window_params = [{transform_indices = @transform_0, window_bounds = array<i64: 1, 16, 128>}, {transform_indices = @transform_1, window_bounds = array<i64: 1, 16, 128>}, {transform_indices = @transform_2, window_bounds = array<i64: 1, 16, 128>}, {transform_indices = @transform_3, window_bounds = array<i64: 1, 16, 128>}, {transform_indices = @transform_4, window_bounds = array<i64: 640, 128>}, {transform_indices = @transform_5, window_bounds = array<i64: 1, 128>}, {transform_indices = @transform_6, window_bounds = array<i64: 1, 16, 128>}]} {
    %c0 = arith.constant 0 : index
    %c0_0 = arith.constant 0 : index
    %c0_1 = arith.constant 0 : index
    %0 = vector.load %arg3[%c0, %c0_0, %c0_1] : memref<1x16x128xbf16, #tpu.memory_space<vmem>>, vector<1x16x128xbf16>
    %1 = vector.shape_cast %0 : vector<1x16x128xbf16> to vector<16x128xbf16>
    %c0_2 = arith.constant 0 : index
    %c0_3 = arith.constant 0 : index
    %c0_4 = arith.constant 0 : index
    %2 = vector.load %arg4[%c0_2, %c0_3, %c0_4] : memref<1x16x128xbf16, #tpu.memory_space<vmem>>, vector<1x16x128xbf16>
    %3 = vector.shape_cast %2 : vector<1x16x128xbf16> to vector<16x128xbf16>
    %4 = tpu.concatenate %1, %3 in 0 : vector<16x128xbf16>, vector<16x128xbf16> -> vector<32x128xbf16>
    %c0_5 = arith.constant 0 : index
    %c0_6 = arith.constant 0 : index
    %c0_7 = arith.constant 0 : index
    %5 = vector.load %arg5[%c0_5, %c0_6, %c0_7] : memref<1x16x128xbf16, #tpu.memory_space<vmem>>, vector<1x16x128xbf16>
    %6 = vector.shape_cast %5 : vector<1x16x128xbf16> to vector<16x128xbf16>
    %c0_8 = arith.constant 0 : index
    %c0_9 = arith.constant 0 : index
    %c0_10 = arith.constant 0 : index
    %7 = vector.load %arg6[%c0_8, %c0_9, %c0_10] : memref<1x16x128xbf16, #tpu.memory_space<vmem>>, vector<1x16x128xbf16>
    %8 = vector.shape_cast %7 : vector<1x16x128xbf16> to vector<16x128xbf16>
    %9 = tpu.concatenate %6, %8 in 0 : vector<16x128xbf16>, vector<16x128xbf16> -> vector<32x128xbf16>
    %10 = vector.extract_strided_slice %4 {offsets = [0, 0], sizes = [16, 128], strides = [1, 1]} : vector<32x128xbf16> to vector<16x128xbf16>
    %11 = vector.extract_strided_slice %9 {offsets = [0, 0], sizes = [16, 128], strides = [1, 1]} : vector<32x128xbf16> to vector<16x128xbf16>
    %12 = vector.extract_strided_slice %4 {offsets = [1, 0], sizes = [16, 128], strides = [1, 1]} : vector<32x128xbf16> to vector<16x128xbf16>
    %13 = vector.extract_strided_slice %9 {offsets = [1, 0], sizes = [16, 128], strides = [1, 1]} : vector<32x128xbf16> to vector<16x128xbf16>
    %14 = vector.extract_strided_slice %4 {offsets = [2, 0], sizes = [16, 128], strides = [1, 1]} : vector<32x128xbf16> to vector<16x128xbf16>
    %15 = tpu.concatenate %10, %11, %12, %13, %14 in 1 : vector<16x128xbf16>, vector<16x128xbf16>, vector<16x128xbf16>, vector<16x128xbf16>, vector<16x128xbf16> -> vector<16x640xbf16>
    %c0_11 = arith.constant 0 : index
    %c0_12 = arith.constant 0 : index
    %16 = vector.load %arg7[%c0_11, %c0_12] : memref<640x128xbf16, #tpu.memory_space<vmem>>, vector<640x128xbf16>
    %cst = arith.constant dense<0.000000e+00> : vector<16x128xf32>
    %17 = tpu.matmul %15, %16, %cst {dimension_numbers = #tpu.dot_dimension_numbers<[1], [0], [0], [1], [0, 0, 1, 1], [], []>} : vector<16x640xbf16>, vector<640x128xbf16>, vector<16x128xf32> -> vector<16x128xf32>
    %c0_13 = arith.constant 0 : index
    %c0_14 = arith.constant 0 : index
    %18 = vector.load %arg8[%c0_13, %c0_14] : memref<1x128xf32, #tpu.memory_space<vmem>>, vector<1x128xf32>
    %19 = vector.broadcast %18 : vector<1x128xf32> to vector<16x128xf32>
    %20 = arith.addf %17, %19 : vector<16x128xf32>
    %cst_15 = arith.constant 5.000000e-01 : f32
    %21 = vector.broadcast %cst_15 : f32 to vector<16x128xf32>
    %22 = arith.mulf %21, %20 : vector<16x128xf32>
    %cst_16 = arith.constant 4.471500e-02 : f32
    %23 = vector.broadcast %cst_16 : f32 to vector<16x128xf32>
    %24 = arith.mulf %23, %20 : vector<16x128xf32>
    %25 = arith.mulf %24, %20 : vector<16x128xf32>
    %26 = arith.mulf %25, %20 : vector<16x128xf32>
    %27 = arith.addf %20, %26 : vector<16x128xf32>
    %cst_17 = arith.constant 0.797884583 : f32
    %28 = vector.broadcast %cst_17 : f32 to vector<16x128xf32>
    %29 = arith.mulf %28, %27 : vector<16x128xf32>
    %30 = math.tanh %29 : vector<16x128xf32>
    %cst_18 = arith.constant 1.000000e+00 : f32
    %31 = vector.broadcast %cst_18 : f32 to vector<16x128xf32>
    %32 = arith.addf %31, %30 : vector<16x128xf32>
    %33 = arith.mulf %22, %32 : vector<16x128xf32>
    %34 = arith.truncf %33 : vector<16x128xf32> to vector<16x128xbf16>
    %c0_19 = arith.constant 0 : index
    %c0_20 = arith.constant 0 : index
    %c0_21 = arith.constant 0 : index
    %35 = vector.load %arg9[%c0_19, %c0_20, %c0_21] : memref<1x16x128xbf16, #tpu.memory_space<vmem>>, vector<1x16x128xbf16>
    %36 = vector.shape_cast %35 : vector<1x16x128xbf16> to vector<16x128xbf16>
    %37 = vector.shape_cast %34 : vector<16x128xbf16> to vector<1x16x128xbf16>
    tpu.vector_store %arg9[%c0_19, %c0_20, %c0_21], %37 {strides = array<i32>} : memref<1x16x128xbf16, #tpu.memory_space<vmem>>, vector<1x16x128xbf16>,
    return
  }
  func.func @transform_0(%arg0: i32, %arg1: i32, %arg2: i32) -> (i32, i32, i32) {
    %c0_i32 = arith.constant 0 : i32
    %c0_i32_0 = arith.constant 0 : i32
    return %arg0, %arg2, %c0_i32 : i32, i32, i32
  }
  func.func @transform_1(%arg0: i32, %arg1: i32, %arg2: i32) -> (i32, i32, i32) {
    %c0_i32 = arith.constant 0 : i32
    %c0_i32_0 = arith.constant 0 : i32
    return %arg0, %arg2, %c0_i32 : i32, i32, i32
  }
  func.func @transform_2(%arg0: i32, %arg1: i32, %arg2: i32) -> (i32, i32, i32) {
    %c0_i32 = arith.constant 0 : i32
    %c0_i32_0 = arith.constant 0 : i32
    return %arg0, %arg2, %c0_i32 : i32, i32, i32
  }
  func.func @transform_3(%arg0: i32, %arg1: i32, %arg2: i32) -> (i32, i32, i32) {
    %c0_i32 = arith.constant 0 : i32
    %c0_i32_0 = arith.constant 0 : i32
    return %arg0, %arg2, %c0_i32 : i32, i32, i32
  }
  func.func @transform_4(%arg0: i32, %arg1: i32, %arg2: i32) -> (i32, i32) {
    %c0_i32 = arith.constant 0 : i32
    %c0_i32_0 = arith.constant 0 : i32
    return %c0_i32, %arg1 : i32, i32
  }
  func.func @transform_5(%arg0: i32, %arg1: i32, %arg2: i32) -> (i32, i32) {
    %c0_i32 = arith.constant 0 : i32
    %c0_i32_0 = arith.constant 0 : i32
    return %c0_i32, %arg1 : i32, i32
  }
  func.func @transform_6(%arg0: i32, %arg1: i32, %arg2: i32) -> (i32, i32, i32) {
    %c0_i32 = arith.constant 0 : i32
    return %arg0, %arg2, %arg1 : i32, i32, i32
  }
}

module attributes {stable_mosaic.version = 11 : i64} {
  func.func @kernel(%arg0: i32, %arg1: i32, %arg2: i32, %arg3: memref<1x16x128xbf16, #tpu.memory_space<vmem>>, %arg4: memref<1x16x128xbf16, #tpu.memory_space<vmem>>, %arg5: memref<1x16x128xbf16, #tpu.memory_space<vmem>>, %arg6: memref<1x16x128xbf16, #tpu.memory_space<vmem>>, %arg7: memref<384x128xbf16, #tpu.memory_space<vmem>>, %arg8: memref<1x128xf32, #tpu.memory_space<vmem>>, %arg9: memref<1x16x128xbf16, #tpu.memory_space<vmem>>) attributes {dimension_semantics = [#tpu.dimension_semantics<parallel>, #tpu.dimension_semantics<parallel>, #tpu.dimension_semantics<parallel>], iteration_bounds = array<i64: 2, 1, 1>, scalar_prefetch = 0 : i64, scratch_operands = 0 : i64, tpu.core_type = #tpu.core_type<tc>, window_params = [{transform_indices = @transform_0, window_bounds = array<i64: 1, 16, 128>}, {transform_indices = @transform_1, window_bounds = array<i64: 1, 16, 128>}, {transform_indices = @transform_2, window_bounds = array<i64: 1, 16, 128>}, {transform_indices = @transform_3, window_bounds = array<i64: 1, 16, 128>}, {transform_indices = @transform_4, window_bounds = array<i64: 384, 128>}, {transform_indices = @transform_5, window_bounds = array<i64: 1, 128>}, {transform_indices = @transform_6, window_bounds = array<i64: 1, 16, 128>}]} {
    %c0 = arith.constant 0 : index
    %c0_0 = arith.constant 0 : index
    %c0_1 = arith.constant 0 : index
    %0 = vector.load %arg3[%c0, %c0_0, %c0_1] : memref<1x16x128xbf16, #tpu.memory_space<vmem>>, vector<1x16x128xbf16>
    %1 = vector.shape_cast %0 : vector<1x16x128xbf16> to vector<16x128xbf16>
    %c0_2 = arith.constant 0 : index
    %c0_3 = arith.constant 0 : index
    %c0_4 = arith.constant 0 : index
    %2 = vector.load %arg4[%c0_2, %c0_3, %c0_4] : memref<1x16x128xbf16, #tpu.memory_space<vmem>>, vector<1x16x128xbf16>
    %3 = vector.shape_cast %2 : vector<1x16x128xbf16> to vector<16x128xbf16>
    %4 = tpu.concatenate %1, %3 in 0 : vector<16x128xbf16>, vector<16x128xbf16> -> vector<32x128xbf16>
    %c0_5 = arith.constant 0 : index
    %c0_6 = arith.constant 0 : index
    %c0_7 = arith.constant 0 : index
    %5 = vector.load %arg5[%c0_5, %c0_6, %c0_7] : memref<1x16x128xbf16, #tpu.memory_space<vmem>>, vector<1x16x128xbf16>
    %6 = vector.shape_cast %5 : vector<1x16x128xbf16> to vector<16x128xbf16>
    %c0_8 = arith.constant 0 : index
    %c0_9 = arith.constant 0 : index
    %c0_10 = arith.constant 0 : index
    %7 = vector.load %arg6[%c0_8, %c0_9, %c0_10] : memref<1x16x128xbf16, #tpu.memory_space<vmem>>, vector<1x16x128xbf16>
    %8 = vector.shape_cast %7 : vector<1x16x128xbf16> to vector<16x128xbf16>
    %9 = tpu.concatenate %6, %8 in 0 : vector<16x128xbf16>, vector<16x128xbf16> -> vector<32x128xbf16>
    %10 = vector.extract_strided_slice %4 {offsets = [0, 0], sizes = [16, 128], strides = [1, 1]} : vector<32x128xbf16> to vector<16x128xbf16>
    %11 = vector.extract_strided_slice %9 {offsets = [0, 0], sizes = [16, 128], strides = [1, 1]} : vector<32x128xbf16> to vector<16x128xbf16>
    %12 = vector.extract_strided_slice %4 {offsets = [1, 0], sizes = [16, 128], strides = [1, 1]} : vector<32x128xbf16> to vector<16x128xbf16>
    %13 = tpu.concatenate %10, %11, %12 in 1 : vector<16x128xbf16>, vector<16x128xbf16>, vector<16x128xbf16> -> vector<16x384xbf16>
    %c0_11 = arith.constant 0 : index
    %c0_12 = arith.constant 0 : index
    %14 = vector.load %arg7[%c0_11, %c0_12] : memref<384x128xbf16, #tpu.memory_space<vmem>>, vector<384x128xbf16>
    %cst = arith.constant dense<0.000000e+00> : vector<16x128xf32>
    %15 = tpu.matmul %13, %14, %cst {dimension_numbers = #tpu.dot_dimension_numbers<[1], [0], [0], [1], [0, 0, 1, 1], [], []>} : vector<16x384xbf16>, vector<384x128xbf16>, vector<16x128xf32> -> vector<16x128xf32>
    %c0_13 = arith.constant 0 : index
    %c0_14 = arith.constant 0 : index
    %16 = vector.load %arg8[%c0_13, %c0_14] : memref<1x128xf32, #tpu.memory_space<vmem>>, vector<1x128xf32>
    %17 = vector.broadcast %16 : vector<1x128xf32> to vector<16x128xf32>
    %18 = arith.addf %15, %17 : vector<16x128xf32>
    %cst_15 = arith.constant 5.000000e-01 : f32
    %19 = vector.broadcast %cst_15 : f32 to vector<16x128xf32>
    %20 = arith.mulf %19, %18 : vector<16x128xf32>
    %cst_16 = arith.constant 4.471500e-02 : f32
    %21 = vector.broadcast %cst_16 : f32 to vector<16x128xf32>
    %22 = arith.mulf %21, %18 : vector<16x128xf32>
    %23 = arith.mulf %22, %18 : vector<16x128xf32>
    %24 = arith.mulf %23, %18 : vector<16x128xf32>
    %25 = arith.addf %18, %24 : vector<16x128xf32>
    %cst_17 = arith.constant 0.797884583 : f32
    %26 = vector.broadcast %cst_17 : f32 to vector<16x128xf32>
    %27 = arith.mulf %26, %25 : vector<16x128xf32>
    %28 = math.tanh %27 : vector<16x128xf32>
    %cst_18 = arith.constant 1.000000e+00 : f32
    %29 = vector.broadcast %cst_18 : f32 to vector<16x128xf32>
    %30 = arith.addf %29, %28 : vector<16x128xf32>
    %31 = arith.mulf %20, %30 : vector<16x128xf32>
    %32 = arith.truncf %31 : vector<16x128xf32> to vector<16x128xbf16>
    %c0_19 = arith.constant 0 : index
    %c0_20 = arith.constant 0 : index
    %c0_21 = arith.constant 0 : index
    %33 = vector.load %arg9[%c0_19, %c0_20, %c0_21] : memref<1x16x128xbf16, #tpu.memory_space<vmem>>, vector<1x16x128xbf16>
    %34 = vector.shape_cast %33 : vector<1x16x128xbf16> to vector<16x128xbf16>
    %35 = vector.shape_cast %32 : vector<16x128xbf16> to vector<1x16x128xbf16>
    tpu.vector_store %arg9[%c0_19, %c0_20, %c0_21], %35 {strides = array<i32>} : memref<1x16x128xbf16, #tpu.memory_space<vmem>>, vector<1x16x128xbf16>,
    return
  }
  func.func @transform_0(%arg0: i32, %arg1: i32, %arg2: i32) -> (i32, i32, i32) {
    %c0_i32 = arith.constant 0 : i32
    %c0_i32_0 = arith.constant 0 : i32
    return %arg0, %arg2, %c0_i32 : i32, i32, i32
  }
  func.func @transform_1(%arg0: i32, %arg1: i32, %arg2: i32) -> (i32, i32, i32) {
    %c0_i32 = arith.constant 0 : i32
    %c0_i32_0 = arith.constant 0 : i32
    return %arg0, %arg2, %c0_i32 : i32, i32, i32
  }
  func.func @transform_2(%arg0: i32, %arg1: i32, %arg2: i32) -> (i32, i32, i32) {
    %c0_i32 = arith.constant 0 : i32
    %c0_i32_0 = arith.constant 0 : i32
    return %arg0, %arg2, %c0_i32 : i32, i32, i32
  }
  func.func @transform_3(%arg0: i32, %arg1: i32, %arg2: i32) -> (i32, i32, i32) {
    %c0_i32 = arith.constant 0 : i32
    %c0_i32_0 = arith.constant 0 : i32
    return %arg0, %arg2, %c0_i32 : i32, i32, i32
  }
  func.func @transform_4(%arg0: i32, %arg1: i32, %arg2: i32) -> (i32, i32) {
    %c0_i32 = arith.constant 0 : i32
    %c0_i32_0 = arith.constant 0 : i32
    return %c0_i32, %arg1 : i32, i32
  }
  func.func @transform_5(%arg0: i32, %arg1: i32, %arg2: i32) -> (i32, i32) {
    %c0_i32 = arith.constant 0 : i32
    %c0_i32_0 = arith.constant 0 : i32
    return %c0_i32, %arg1 : i32, i32
  }
  func.func @transform_6(%arg0: i32, %arg1: i32, %arg2: i32) -> (i32, i32, i32) {
    %c0_i32 = arith.constant 0 : i32
    return %arg0, %arg2, %arg1 : i32, i32, i32
  }
}

</mosaic_0001>

<llo_original>
// kernel: mel_encoder_forward.5
$region0: #{mel_encoder_forward.5}
  #allocation0 [shape = 'u32[]', space=smem, size = 0x4, offset = 0x4, fixed_abs, tag = 'smem constant byte address 0x4 - core index']
  #allocation1 [shape = 'u32[144,128]{1,0:T(1,128)}', space=vmem, size = 0x12000, scoped, tag = 'internal scratch']
  %s0 = inlined_call_operand.vmem [shape: bf16[2,16,128], index: 0, kind: input, shape index: {}]
  %s1 = inlined_call_operand.vmem [shape: bf16[2,16,128], index: 1, kind: input, shape index: {}]
  %s2 = inlined_call_operand.vmem [shape: bf16[2,16,128], index: 2, kind: input, shape index: {}]
  %s3 = inlined_call_operand.vmem [shape: bf16[2,16,128], index: 3, kind: input, shape index: {}]
  %s4 = inlined_call_operand.vmem [shape: bf16[384,128], index: 4, kind: input, shape index: {}]
  %s5 = inlined_call_operand.vmem [shape: f32[1,128], index: 5, kind: input, shape index: {}]
  %s6 = inlined_call_operand.vmem [shape: bf16[2,16,128], index: 6, kind: output, shape index: {}]
  %s7 = sld [smem:[#allocation0]]
  $region57: #{mel_encoder_forward.5} parent=0
    _
  %s9 = ssub.s32 1, %s7
  %s10 = scalar_select 0, %s9, %s7
  loop: start=0, step=1, limit=4
  $region2: #{mel_encoder_forward.5} parent=0 // loop_pre_header
    _
  $region3: #{mel_encoder_forward.5} parent=0 // loop_header
    %s12 = sphi 0, %s16
    %p13 = scmp.ge.s32.totalorder %s12, 4
    %s19 = sphi 0, %s38
    %s20 = sphi 0, %s34
    %s21 = sphi 0, %s30
    %s22 = sphi 0, %s19
    %s23 = sphi 0, %s20
    %s24 = sphi 0, %s21
    %s25 = sphi 0, %s22
    %s26 = sphi 0, %s23
    %s27 = sphi 0, %s24
    %s43 = sphi 0, %s45
    %s46 = sphi 0, %s43
    %s47 = sphi 0, %s46
    %s63 = sphi 0, %s47
    %s71 = sphi 0, %s73
    %s74 = sphi 0, %s71
    %s75 = sphi 0, %s74
    %s91 = sphi 0, %s75
    %s99 = sphi 0, %s101
    %s102 = sphi 0, %s99
    %s103 = sphi 0, %s102
    %s119 = sphi 0, %s103
    %s127 = sphi 0, %s129
    %s130 = sphi 0, %s127
    %s131 = sphi 0, %s130
    %s147 = sphi 0, %s131
    %s153 = sphi 0, %s155
    %s156 = sphi 0, %s153
    %s157 = sphi 0, %s156
    %s173 = sphi 0, %s157
    %s179 = sphi 0, %s181
    %s182 = sphi 0, %s179
    %s183 = sphi 0, %s182
    %s199 = sphi 0, %s183
    %s209 = sphi 0, %s211
    %s212 = sphi 0, %s209
    %s213 = sphi 0, %s212
    %s229 = sphi 0, %s213
  $region4: #{mel_encoder_forward.5} parent=0 // loop_header_branch
    %15 = sbr.rel (%p13) target = $region8
  $region5: #{mel_encoder_forward.5} parent=0 // loop_body
    %s17 = ssub.s32 %s12, 1
    %s18 = ssub.s32 %s12, 2
    %s28 = sadd.s32 1, %s21
    %p29 = scmp.ge.s32.totalorder %s28, 1
    %s30 = scalar_select %p29, 0, %s28
    %s31 = sadd.s32 1, %s20
    %s32 = scalar_select %p29, %s31, %s20
    %p33 = scmp.ge.s32.totalorder %s32, 1
    %s34 = scalar_select %p33, 0, %s32
    %s35 = sadd.s32 1, %s19
    %s36 = scalar_select %p33, %s35, %s19
    %p37 = scmp.ge.s32.totalorder %s36, 2
    %s38 = scalar_select %p37, 0, %s36
    %s39 = ssub.s32 %s19, %s38
    %s40 = ssub.s32 %s21, %s30
    %s41 = sor.u32 %s39, %s40
    %p42 = scmp.eq.s32.totalorder %s41, 0
    %s44 = sadd.s32 %s43, 1
    %s45 = scalar_select %p42, %s43, %s44
    %p48 = pneg %p42
    %p49 = scmp.eq.s32.totalorder %s12, 1
    %p50 = por %p48, %p49
    %p51 = scmp.ne.s32.totalorder %s43, %s46
    %p52 = scmp.eq.s32.totalorder %s12, 0
    %p53 = por %p51, %p52
    %p54 = scmp.ne.s32.totalorder %s43, %s46
    %p55 = scmp.eq.s32.totalorder %s17, 1
    %p56 = por %p54, %p55
    %p57 = scmp.ne.s32.totalorder %s46, %s47
    %p58 = scmp.eq.s32.totalorder %s17, 0
    %p59 = por %p57, %p58
    %p60 = scmp.ne.s32.totalorder %s46, %s47
    %p61 = scmp.eq.s32.totalorder %s18, 1
    %p62 = por %p60, %p61
    %p64 = scmp.ne.s32.totalorder %s47, %s63
    %p65 = scmp.eq.s32.totalorder %s18, 0
    %p66 = por %p64, %p65
    %s67 = ssub.s32 %s19, %s38
    %s68 = ssub.s32 %s21, %s30
    %s69 = sor.u32 %s67, %s68
    %p70 = scmp.eq.s32.totalorder %s69, 0
    %s72 = sadd.s32 %s71, 1
    %s73 = scalar_select %p70, %s71, %s72
    %p76 = pneg %p70
    %p77 = scmp.eq.s32.totalorder %s12, 1
    %p78 = por %p76, %p77
    %p79 = scmp.ne.s32.totalorder %s71, %s74
    %p80 = scmp.eq.s32.totalorder %s12, 0
    %p81 = por %p79, %p80
    %p82 = scmp.ne.s32.totalorder %s71, %s74
    %p83 = scmp.eq.s32.totalorder %s17, 1
    %p84 = por %p82, %p83
    %p85 = scmp.ne.s32.totalorder %s74, %s75
    %p86 = scmp.eq.s32.totalorder %s17, 0
    %p87 = por %p85, %p86
    %p88 = scmp.ne.s32.totalorder %s74, %s75
    %p89 = scmp.eq.s32.totalorder %s18, 1
    %p90 = por %p88, %p89
    %p92 = scmp.ne.s32.totalorder %s75, %s91
    %p93 = scmp.eq.s32.totalorder %s18, 0
    %p94 = por %p92, %p93
    %s95 = ssub.s32 %s19, %s38
    %s96 = ssub.s32 %s21, %s30
    %s97 = sor.u32 %s95, %s96
    %p98 = scmp.eq.s32.totalorder %s97, 0
    %s100 = sadd.s32 %s99, 1
    %s101 = scalar_select %p98, %s99, %s100
    %p104 = pneg %p98
    %p105 = scmp.eq.s32.totalorder %s12, 1
    %p106 = por %p104, %p105
    %p107 = scmp.ne.s32.totalorder %s99, %s102
    %p108 = scmp.eq.s32.totalorder %s12, 0
    %p109 = por %p107, %p108
    %p110 = scmp.ne.s32.totalorder %s99, %s102
    %p111 = scmp.eq.s32.totalorder %s17, 1
    %p112 = por %p110, %p111
    %p113 = scmp.ne.s32.totalorder %s102, %s103
    %p114 = scmp.eq.s32.totalorder %s17, 0
    %p115 = por %p113, %p114
    %p116 = scmp.ne.s32.totalorder %s102, %s103
    %p117 = scmp.eq.s32.totalorder %s18, 1
    %p118 = por %p116, %p117
    %p120 = scmp.ne.s32.totalorder %s103, %s119
    %p121 = scmp.eq.s32.totalorder %s18, 0
    %p122 = por %p120, %p121
    %s123 = ssub.s32 %s19, %s38
    %s124 = ssub.s32 %s21, %s30
    %s125 = sor.u32 %s123, %s124
    %p126 = scmp.eq.s32.totalorder %s125, 0
    %s128 = sadd.s32 %s127, 1
    %s129 = scalar_select %p126, %s127, %s128
    %p132 = pneg %p126
    %p133 = scmp.eq.s32.totalorder %s12, 1
    %p134 = por %p132, %p133
    %p135 = scmp.ne.s32.totalorder %s127, %s130
    %p136 = scmp.eq.s32.totalorder %s12, 0
    %p137 = por %p135, %p136
    %p138 = scmp.ne.s32.totalorder %s127, %s130
    %p139 = scmp.eq.s32.totalorder %s17, 1
    %p140 = por %p138, %p139
    %p141 = scmp.ne.s32.totalorder %s130, %s131
    %p142 = scmp.eq.s32.totalorder %s17, 0
    %p143 = por %p141, %p142
    %p144 = scmp.ne.s32.totalorder %s130, %s131
    %p145 = scmp.eq.s32.totalorder %s18, 1
    %p146 = por %p144, %p145
    %p148 = scmp.ne.s32.totalorder %s131, %s147
    %p149 = scmp.eq.s32.totalorder %s18, 0
    %p150 = por %p148, %p149
    %s151 = ssub.s32 %s20, %s34
    %p152 = scmp.eq.s32.totalorder %s151, 0
    %s154 = sadd.s32 %s153, 1
    %s155 = scalar_select %p152, %s153, %s154
    %p158 = pneg %p152
    %p159 = scmp.eq.s32.totalorder %s12, 1
    %p160 = por %p158, %p159
    %p161 = scmp.ne.s32.totalorder %s153, %s156
    %p162 = scmp.eq.s32.totalorder %s12, 0
    %p163 = por %p161, %p162
    %p164 = scmp.ne.s32.totalorder %s153, %s156
    %p165 = scmp.eq.s32.totalorder %s17, 1
    %p166 = por %p164, %p165
    %p167 = scmp.ne.s32.totalorder %s156, %s157
    %p168 = scmp.eq.s32.totalorder %s17, 0
    %p169 = por %p167, %p168
    %p170 = scmp.ne.s32.totalorder %s156, %s157
    %p171 = scmp.eq.s32.totalorder %s18, 1
    %p172 = por %p170, %p171
    %p174 = scmp.ne.s32.totalorder %s157, %s173
    %p175 = scmp.eq.s32.totalorder %s18, 0
    %p176 = por %p174, %p175
    %s177 = ssub.s32 %s20, %s34
    %p178 = scmp.eq.s32.totalorder %s177, 0
    %s180 = sadd.s32 %s179, 1
    %s181 = scalar_select %p178, %s179, %s180
    %p184 = pneg %p178
    %p185 = scmp.eq.s32.totalorder %s12, 1
    %p186 = por %p184, %p185
    %p187 = scmp.ne.s32.totalorder %s179, %s182
    %p188 = scmp.eq.s32.totalorder %s12, 0
    %p189 = por %p187, %p188
    %p190 = scmp.ne.s32.totalorder %s179, %s182
    %p191 = scmp.eq.s32.totalorder %s17, 1
    %p192 = por %p190, %p191
    %p193 = scmp.ne.s32.totalorder %s182, %s183
    %p194 = scmp.eq.s32.totalorder %s17, 0
    %p195 = por %p193, %p194
    %p196 = scmp.ne.s32.totalorder %s182, %s183
    %p197 = scmp.eq.s32.totalorder %s18, 1
    %p198 = por %p196, %p197
    %p200 = scmp.ne.s32.totalorder %s183, %s199
    %p201 = scmp.eq.s32.totalorder %s18, 0
    %p202 = por %p200, %p201
    %s203 = ssub.s32 %s19, %s38
    %s204 = ssub.s32 %s21, %s30
    %s205 = sor.u32 %s203, %s204
    %s206 = ssub.s32 %s20, %s34
    %s207 = sor.u32 %s205, %s206
    %p208 = scmp.eq.s32.totalorder %s207, 0
    %s210 = sadd.s32 %s209, 1
    %s211 = scalar_select %p208, %s209, %s210
    %p214 = pneg %p208
    %p215 = scmp.eq.s32.totalorder %s12, 1
    %p216 = por %p214, %p215
    %p217 = scmp.ne.s32.totalorder %s209, %s212
    %p218 = scmp.eq.s32.totalorder %s12, 0
    %p219 = por %p217, %p218
    %p220 = scmp.ne.s32.totalorder %s209, %s212
    %p221 = scmp.eq.s32.totalorder %s17, 1
    %p222 = por %p220, %p221
    %p223 = scmp.ne.s32.totalorder %s212, %s213
    %p224 = scmp.eq.s32.totalorder %s17, 0
    %p225 = por %p223, %p224
    %p226 = scmp.ne.s32.totalorder %s212, %s213
    %p227 = scmp.eq.s32.totalorder %s18, 1
    %p228 = por %p226, %p227
    %p230 = scmp.ne.s32.totalorder %s213, %s229
    %p231 = scmp.eq.s32.totalorder %s18, 0
    %p232 = por %p230, %p231
    %p233 = scmp.le.s32.totalorder 1, %s12
    %p234 = scmp.lt.s32.totalorder %s12, 3
    %p235 = pnand %p233, %p234
    %p236 = pneg %p235
    // Predicated region
    $region9: #{mel_encoder_forward.5} parent=5 // pred_check
      _
    $region10: #{mel_encoder_forward.5} parent=5 // pred_check_branch
      %238 = sbr.rel (%p235) target = $region12
    $region11: #{mel_encoder_forward.5} parent=5 // pred_region
      %s239 = ssub.s32 %s12, 1
      // Predicated region
      $region13: #{mel_encoder_forward.5} parent=11 // pred_check
        %p240 = pneg %p169
      $region14: #{mel_encoder_forward.5} parent=11 // pred_check_branch
        %242 = sbr.rel (%p240) target = $region16
      $region15: #{mel_encoder_forward.5} parent=11 // pred_region
        %p243 = scmp.lt.s32.totalorder %s23, 0
        %s244 = scalar_select %p243, %s23, 0
        %s245 = smul.addr %s244, 4
        %s246 = scalar_lea.vmem %s4, %s245
      $region16: #{mel_encoder_forward.5} parent=11 // pred_fallthru
        _
      // Predicated region
      $region17: #{mel_encoder_forward.5} parent=11 // pred_check
        %p247 = pneg %p195
      $region18: #{mel_encoder_forward.5} parent=11 // pred_check_branch
        %249 = sbr.rel (%p247) target = $region20
      $region19: #{mel_encoder_forward.5} parent=11 // pred_region
        %p250 = scmp.lt.s32.totalorder %s23, 0
        %s251 = scalar_select %p250, %s23, 0
        %s252 = scalar_lea.vmem %s5, %s251
      $region20: #{mel_encoder_forward.5} parent=11 // pred_fallthru
        _
    $region12: #{mel_encoder_forward.5} parent=5 // pred_fallthru
      _
    %p253 = scmp.lt.s32.totalorder %s12, 2
    // Predicated region
    $region21: #{mel_encoder_forward.5} parent=5 // pred_check
      %p254 = pneg %p253
    $region22: #{mel_encoder_forward.5} parent=5 // pred_check_branch
      %256 = sbr.rel (%p254) target = $region24
    $region23: #{mel_encoder_forward.5} parent=5 // pred_region
      // Predicated region
      $region25: #{mel_encoder_forward.5} parent=23 // pred_check
        %p257 = pneg %p53
      $region26: #{mel_encoder_forward.5} parent=23 // pred_check_branch
        %259 = sbr.rel (%p257) target = $region28
      $region27: #{mel_encoder_forward.5} parent=23 // pred_region
        %s260 = smul.u32 2, %s21
        %p261 = scmp.lt.s32.totalorder %s19, 1
        %s262 = scalar_select %p261, %s19, 1
        %p263 = scmp.lt.s32.totalorder %s260, 1
        %s264 = scalar_select %p263, %s260, 1
        %s265 = smul.addr %s262, 2
        %s266 = sadd.s32 %s264, %s265
        %s267 = smul.addr %s266, 4
        %s268 = scalar_lea.vmem %s0, %s267
        %s269 = smul.u32 2, %s21
      $region28: #{mel_encoder_forward.5} parent=23 // pred_fallthru
        _
      // Predicated region
      $region29: #{mel_encoder_forward.5} parent=23 // pred_check
        %p270 = pneg %p81
      $region30: #{mel_encoder_forward.5} parent=23 // pred_check_branch
        %272 = sbr.rel (%p270) target = $region32
      $region31: #{mel_encoder_forward.5} parent=23 // pred_region
        %s273 = smul.u32 2, %s21
        %p274 = scmp.lt.s32.totalorder %s19, 1
        %s275 = scalar_select %p274, %s19, 1
        %p276 = scmp.lt.s32.totalorder %s273, 1
        %s277 = scalar_select %p276, %s273, 1
        %s278 = smul.addr %s275, 2
        %s279 = sadd.s32 %s277, %s278
        %s280 = smul.addr %s279, 4
        %s281 = scalar_lea.vmem %s1, %s280
        %s282 = smul.u32 2, %s21
      $region32: #{mel_encoder_forward.5} parent=23 // pred_fallthru
        _
      // Predicated region
      $region33: #{mel_encoder_forward.5} parent=23 // pred_check
        %p283 = pneg %p109
      $region34: #{mel_encoder_forward.5} parent=23 // pred_check_branch
        %285 = sbr.rel (%p283) target = $region36
      $region35: #{mel_encoder_forward.5} parent=23 // pred_region
        %s286 = smul.u32 2, %s21
        %p287 = scmp.lt.s32.totalorder %s19, 1
        %s288 = scalar_select %p287, %s19, 1
        %p289 = scmp.lt.s32.totalorder %s286, 1
        %s290 = scalar_select %p289, %s286, 1
        %s291 = smul.addr %s288, 2
        %s292 = sadd.s32 %s290, %s291
        %s293 = smul.addr %s292, 4
        %s294 = scalar_lea.vmem %s2, %s293
        %s295 = smul.u32 2, %s21
      $region36: #{mel_encoder_forward.5} parent=23 // pred_fallthru
        _
      // Predicated region
      $region37: #{mel_encoder_forward.5} parent=23 // pred_check
        %p296 = pneg %p137
      $region38: #{mel_encoder_forward.5} parent=23 // pred_check_branch
        %298 = sbr.rel (%p296) target = $region40
      $region39: #{mel_encoder_forward.5} parent=23 // pred_region
        %s299 = smul.u32 2, %s21
        %p300 = scmp.lt.s32.totalorder %s19, 1
        %s301 = scalar_select %p300, %s19, 1
        %p302 = scmp.lt.s32.totalorder %s299, 1
        %s303 = scalar_select %p302, %s299, 1
        %s304 = smul.addr %s301, 2
        %s305 = sadd.s32 %s303, %s304
        %s306 = smul.addr %s305, 4
        %s307 = scalar_lea.vmem %s3, %s306
        %s308 = smul.u32 2, %s21
      $region40: #{mel_encoder_forward.5} parent=23 // pred_fallthru
        _
    $region24: #{mel_encoder_forward.5} parent=5 // pred_fallthru
      _
    %p309 = scmp.le.s32.totalorder 1, %s12
    %p310 = scmp.lt.s32.totalorder %s12, 3
    %p311 = pnand %p309, %p310
    %p312 = pneg %p311
    // Predicated region
    $region41: #{mel_encoder_forward.5} parent=5 // pred_check
      _
    $region42: #{mel_encoder_forward.5} parent=5 // pred_check_branch
      %314 = sbr.rel (%p311) target = $region44
    $region43: #{mel_encoder_forward.5} parent=5 // pred_region
      %s315 = ssub.s32 %s12, 1
      %s316 = smul.u32 2, %s24
      %p317 = scmp.lt.s32.totalorder %s22, 1
      %s318 = scalar_select %p317, %s22, 1
      %p319 = scmp.lt.s32.totalorder %s316, 1
      %s320 = scalar_select %p319, %s316, 1
      %s321 = smul.addr %s318, 2
      %s322 = sadd.s32 %s320, %s321
      %s323 = smul.addr %s322, 4
      %s324 = scalar_lea.vmem %s0, %s323
      %p325 = pneg %p59
      %p326 = pneg %p56
      %s327 = smul.u32 2, %s24
      %p328 = scmp.lt.s32.totalorder %s22, 1
      %s329 = scalar_select %p328, %s22, 1
      %p330 = scmp.lt.s32.totalorder %s327, 1
      %s331 = scalar_select %p330, %s327, 1
      %s332 = smul.addr %s329, 2
      %s333 = sadd.s32 %s331, %s332
      %s334 = smul.addr %s333, 4
      %s335 = scalar_lea.vmem %s1, %s334
      %p336 = pneg %p87
      %p337 = pneg %p84
      %s338 = smul.u32 2, %s24
      %p339 = scmp.lt.s32.totalorder %s22, 1
      %s340 = scalar_select %p339, %s22, 1
      %p341 = scmp.lt.s32.totalorder %s338, 1
      %s342 = scalar_select %p341, %s338, 1
      %s343 = smul.addr %s340, 2
      %s344 = sadd.s32 %s342, %s343
      %s345 = smul.addr %s344, 4
      %s346 = scalar_lea.vmem %s2, %s345
      %p347 = pneg %p115
      %p348 = pneg %p112
      %s349 = smul.u32 2, %s24
      %p350 = scmp.lt.s32.totalorder %s22, 1
      %s351 = scalar_select %p350, %s22, 1
      %p352 = scmp.lt.s32.totalorder %s349, 1
      %s353 = scalar_select %p352, %s349, 1
      %s354 = smul.addr %s351, 2
      %s355 = sadd.s32 %s353, %s354
      %s356 = smul.addr %s355, 4
      %s357 = scalar_lea.vmem %s3, %s356
      %p358 = pneg %p143
      %p359 = pneg %p140
      %p360 = scmp.lt.s32.totalorder %s23, 0
      %s361 = scalar_select %p360, %s23, 0
      %s362 = smul.addr %s361, 4
      %s363 = scalar_lea.vmem %s4, %s362
      %p364 = pneg %p169
      %p365 = pneg %p166
      %p366 = scmp.lt.s32.totalorder %s23, 0
      %s367 = scalar_select %p366, %s23, 0
      %s368 = scalar_lea.vmem %s5, %s367
      %p369 = pneg %p195
      %p370 = pneg %p192
      %p371 = pneg %p225
      %p372 = pneg %p222
      %s373 = smul.u32 2, %s24
      %p374 = scmp.lt.s32.totalorder %s22, 1
      %s375 = scalar_select %p374, %s22, 1
      %p376 = scmp.lt.s32.totalorder %s373, 1
      %s377 = scalar_select %p376, %s373, 1
      %p378 = scmp.lt.s32.totalorder %s23, 0
      %s379 = scalar_select %p378, %s23, 0
      %s380 = sadd.s32 %s379, %s377
      %s381 = smul.addr %s375, 2
      %s382 = sadd.s32 %s380, %s381
      %s383 = smul.addr %s382, 4
      %s384 = scalar_lea.vmem %s6, %s383
      %s385 = smul.u32 2, %s24
      %p386 = scmp.lt.s32.totalorder %s22, 1
      %s387 = scalar_select %p386, %s22, 1
      %p388 = scmp.lt.s32.totalorder %s385, 1
      %s389 = scalar_select %p388, %s385, 1
      %s390 = smul.addr %s387, 2
      %s391 = sadd.s32 %s389, %s390
      %s392 = smul.addr %s391, 4
      %s393 = scalar_lea.vmem %s0, %s392
      %s394 = smul.u32 2, %s24
      %s395 = smul.u32 2, %s24
      %p396 = scmp.lt.s32.totalorder %s22, 1
      %s397 = scalar_select %p396, %s22, 1
      %p398 = scmp.lt.s32.totalorder %s395, 1
      %s399 = scalar_select %p398, %s395, 1
      %s400 = smul.addr %s397, 2
      %s401 = sadd.s32 %s399, %s400
      %s402 = smul.addr %s401, 4
      %s403 = scalar_lea.vmem %s1, %s402
      %s404 = smul.u32 2, %s24
      %s405 = smul.u32 2, %s24
      %p406 = scmp.lt.s32.totalorder %s22, 1
      %s407 = scalar_select %p406, %s22, 1
      %p408 = scmp.lt.s32.totalorder %s405, 1
      %s409 = scalar_select %p408, %s405, 1
      %s410 = smul.addr %s407, 2
      %s411 = sadd.s32 %s409, %s410
      %s412 = smul.addr %s411, 4
      %s413 = scalar_lea.vmem %s2, %s412
      %s414 = smul.u32 2, %s24
      %s415 = smul.u32 2, %s24
      %p416 = scmp.lt.s32.totalorder %s22, 1
      %s417 = scalar_select %p416, %s22, 1
      %p418 = scmp.lt.s32.totalorder %s415, 1
      %s419 = scalar_select %p418, %s415, 1
      %s420 = smul.addr %s417, 2
      %s421 = sadd.s32 %s419, %s420
      %s422 = smul.addr %s421, 4
      %s423 = scalar_lea.vmem %s3, %s422
      %s424 = smul.u32 2, %s24
      %p425 = scmp.lt.s32.totalorder %s23, 0
      %s426 = scalar_select %p425, %s23, 0
      %s427 = smul.addr %s426, 4
      %s428 = scalar_lea.vmem %s4, %s427
      %p429 = scmp.lt.s32.totalorder %s23, 0
      %s430 = scalar_select %p429, %s23, 0
      %s431 = scalar_lea.vmem %s5, %s430
      %s432 = smul.u32 2, %s24
      %p433 = scmp.lt.s32.totalorder %s22, 1
      %s434 = scalar_select %p433, %s22, 1
      %p435 = scmp.lt.s32.totalorder %s432, 1
      %s436 = scalar_select %p435, %s432, 1
      %p437 = scmp.lt.s32.totalorder %s23, 0
      %s438 = scalar_select %p437, %s23, 0
      %s439 = sadd.s32 %s438, %s436
      %s440 = smul.addr %s434, 2
      %s441 = sadd.s32 %s439, %s440
      %s442 = smul.addr %s441, 4
      %s443 = scalar_lea.vmem %s6, %s442
      %s444 = smul.u32 2, %s24
      %v446 = vld [vmem:[%s393] sm:$0xf]
      %v447 = vld [vmem:[%s393 + $0x4] sm:$0xf]
      %v448 = vld [vmem:[%s403] sm:$0xf]
      %v449 = vld [vmem:[%s403 + $0x4] sm:$0xf]
      %v452 = vunpack.c.l.b16 %v446
      %v453 = vunpack.c.l.b16 %v447
      %v454 = vpack.c.b16 %v453, %v452
      %v458 = vunpack.c.l.b16 %v448
      %v459 = vunpack.c.l.b16 %v449
      %v460 = vpack.c.b16 %v459, %v458
      %v461 = vld [vmem:[%s413] sm:$0xf]
      %v462 = vld [vmem:[%s413 + $0x4] sm:$0xf]
      %v465 = vunpack.c.l.b16 %v461
      %v466 = vunpack.c.l.b16 %v462
      %v467 = vpack.c.b16 %v466, %v465
      %vm469 = vsmask.f32 7424
      %v471 = vshrl.u32 %v454, 16
      %v473 = vshll.u32 %v454, 16
      %v475 = vrot.slane %v473, 1
      %v476 = vor.u32 %v471, %v475
      %v478 = vshll.u32 %v460, 16
      %v480 = vrot.slane %v478, 1
      %v481 = vsel %vm469, %v476, %v480
      %v483 = vld [vmem:[%s428] sm:$0xf]
      %v484 = vld [vmem:[%s428 + $0x4] sm:$0xf]
      %v485 = vld [vmem:[%s428 + $0x8] sm:$0xf]
      %v486 = vld [vmem:[%s428 + $0xc] sm:$0xf]
      %v487 = vld [vmem:[%s428 + $0x10] sm:$0xf]
      %v488 = vld [vmem:[%s428 + $0x14] sm:$0xf]
      %v489 = vld [vmem:[%s428 + $0x18] sm:$0xf]
      %v490 = vld [vmem:[%s428 + $0x1c] sm:$0xf]
      %v491 = vld [vmem:[%s428 + $0x20] sm:$0xf]
      %v492 = vld [vmem:[%s428 + $0x24] sm:$0xf]
      %v493 = vld [vmem:[%s428 + $0x28] sm:$0xf]
      %v494 = vld [vmem:[%s428 + $0x2c] sm:$0xf]
      %v495 = vld [vmem:[%s428 + $0x30] sm:$0xf]
      %v496 = vld [vmem:[%s428 + $0x34] sm:$0xf]
      %v497 = vld [vmem:[%s428 + $0x38] sm:$0xf]
      %v498 = vld [vmem:[%s428 + $0x3c] sm:$0xf]
      %v499 = vld [vmem:[%s428 + $0x40] sm:$0xf]
      %v500 = vld [vmem:[%s428 + $0x44] sm:$0xf]
      %v501 = vld [vmem:[%s428 + $0x48] sm:$0xf]
      %v502 = vld [vmem:[%s428 + $0x4c] sm:$0xf]
      %v503 = vld [vmem:[%s428 + $0x50] sm:$0xf]
      %v504 = vld [vmem:[%s428 + $0x54] sm:$0xf]
      %v505 = vld [vmem:[%s428 + $0x58] sm:$0xf]
      %v506 = vld [vmem:[%s428 + $0x5c] sm:$0xf]
      %v507 = vld [vmem:[%s428 + $0x60] sm:$0xf]
      %v508 = vld [vmem:[%s428 + $0x64] sm:$0xf]
      %v509 = vld [vmem:[%s428 + $0x68] sm:$0xf]
      %v510 = vld [vmem:[%s428 + $0x6c] sm:$0xf]
      %v511 = vld [vmem:[%s428 + $0x70] sm:$0xf]
      %v512 = vld [vmem:[%s428 + $0x74] sm:$0xf]
      %v513 = vld [vmem:[%s428 + $0x78] sm:$0xf]
      %v514 = vld [vmem:[%s428 + $0x7c] sm:$0xf]
      %v515 = vld [vmem:[%s428 + $0x80] sm:$0xf]
      %v516 = vld [vmem:[%s428 + $0x84] sm:$0xf]
      %v517 = vld [vmem:[%s428 + $0x88] sm:$0xf]
      %v518 = vld [vmem:[%s428 + $0x8c] sm:$0xf]
      %v519 = vld [vmem:[%s428 + $0x90] sm:$0xf]
      %v520 = vld [vmem:[%s428 + $0x94] sm:$0xf]
      %v521 = vld [vmem:[%s428 + $0x98] sm:$0xf]
      %v522 = vld [vmem:[%s428 + $0x9c] sm:$0xf]
      %v523 = vld [vmem:[%s428 + $0xa0] sm:$0xf]
      %v524 = vld [vmem:[%s428 + $0xa4] sm:$0xf]
      %v525 = vld [vmem:[%s428 + $0xa8] sm:$0xf]
      %v526 = vld [vmem:[%s428 + $0xac] sm:$0xf]
      %v527 = vld [vmem:[%s428 + $0xb0] sm:$0xf]
      %v528 = vld [vmem:[%s428 + $0xb4] sm:$0xf]
      %v529 = vld [vmem:[%s428 + $0xb8] sm:$0xf]
      %v530 = vld [vmem:[%s428 + $0xbc] sm:$0xf]
      %v531 = vld [vmem:[%s431] sm:$0x1]
      %v533 = vlaneseq
      %v534 = vshrl.u32 %v533, 7
      %v535 = vsub.s32 0, %v534
      %v536 = vrot.slane %v531, %v535
      %v586 = vunpack.c.l.b16 %v483
      %v587 = vunpack.c.l.b16 %v484
      %v588 = vunpack.c.l.b16 %v485
      %v589 = vunpack.c.l.b16 %v486
      %v590 = vunpack.c.l.b16 %v487
      %v591 = vunpack.c.l.b16 %v488
      %v592 = vunpack.c.l.b16 %v489
      %v593 = vunpack.c.l.b16 %v490
      %v594 = vunpack.c.l.b16 %v491
      %v595 = vunpack.c.l.b16 %v492
      %v596 = vunpack.c.l.b16 %v493
      %v597 = vunpack.c.l.b16 %v494
      %v598 = vunpack.c.l.b16 %v495
      %v599 = vunpack.c.l.b16 %v496
      %v600 = vunpack.c.l.b16 %v497
      %v601 = vunpack.c.l.b16 %v498
      %v602 = vunpack.c.l.b16 %v499
      %v603 = vunpack.c.l.b16 %v500
      %v604 = vunpack.c.l.b16 %v501
      %v605 = vunpack.c.l.b16 %v502
      %v606 = vunpack.c.l.b16 %v503
      %v607 = vunpack.c.l.b16 %v504
      %v608 = vunpack.c.l.b16 %v505
      %v609 = vunpack.c.l.b16 %v506
      %v610 = vunpack.c.l.b16 %v507
      %v611 = vunpack.c.l.b16 %v508
      %v612 = vunpack.c.l.b16 %v509
      %v613 = vunpack.c.l.b16 %v510
      %v614 = vunpack.c.l.b16 %v511
      %v615 = vunpack.c.l.b16 %v512
      %v616 = vunpack.c.l.b16 %v513
      %v617 = vunpack.c.l.b16 %v514
      %v618 = vunpack.c.l.b16 %v515
      %v619 = vunpack.c.l.b16 %v516
      %v620 = vunpack.c.l.b16 %v517
      %v621 = vunpack.c.l.b16 %v518
      %v622 = vunpack.c.l.b16 %v519
      %v623 = vunpack.c.l.b16 %v520
      %v624 = vunpack.c.l.b16 %v521
      %v625 = vunpack.c.l.b16 %v522
      %v626 = vunpack.c.l.b16 %v523
      %v627 = vunpack.c.l.b16 %v524
      %v628 = vunpack.c.l.b16 %v525
      %v629 = vunpack.c.l.b16 %v526
      %v630 = vunpack.c.l.b16 %v527
      %v631 = vunpack.c.l.b16 %v528
      %v632 = vunpack.c.l.b16 %v529
      %v633 = vunpack.c.l.b16 %v530
      %v634 = vpack.c.b16 %v587, %v586
      %v635 = vpack.c.b16 %v589, %v588
      %v636 = vpack.c.b16 %v591, %v590
      %v637 = vpack.c.b16 %v593, %v592
      %v638 = vpack.c.b16 %v595, %v594
      %v639 = vpack.c.b16 %v597, %v596
      %v640 = vpack.c.b16 %v599, %v598
      %v641 = vpack.c.b16 %v601, %v600
      %v642 = vpack.c.b16 %v603, %v602
      %v643 = vpack.c.b16 %v605, %v604
      %v644 = vpack.c.b16 %v607, %v606
      %v645 = vpack.c.b16 %v609, %v608
      %v646 = vpack.c.b16 %v611, %v610
      %v647 = vpack.c.b16 %v613, %v612
      %v648 = vpack.c.b16 %v615, %v614
      %v649 = vpack.c.b16 %v617, %v616
      %v650 = vpack.c.b16 %v619, %v618
      %v651 = vpack.c.b16 %v621, %v620
      %v652 = vpack.c.b16 %v623, %v622
      %v653 = vpack.c.b16 %v625, %v624
      %v654 = vpack.c.b16 %v627, %v626
      %v655 = vpack.c.b16 %v629, %v628
      %v656 = vpack.c.b16 %v631, %v630
      %v657 = vpack.c.b16 %v633, %v632
      %682 = vmatprep.subr.bf16.mxu0 0
      %683 = vmatpush1.bf16.msra.mxu0 %v634
      %684 = vmatprep.subr.bf16.mxu0 0
      %685 = vmatpush1.bf16.msra.mxu0 %v635
      %686 = vmatprep.subr.bf16.mxu0 0
      %687 = vmatpush1.bf16.msra.mxu0 %v636
      %688 = vmatprep.subr.bf16.mxu0 0
      %689 = vmatpush1.bf16.msra.mxu0 %v637
      %690 = vmatprep.subr.bf16.mxu0 0
      %691 = vmatpush1.bf16.msra.mxu0 %v638
      %692 = vmatprep.subr.bf16.mxu0 0
      %693 = vmatpush1.bf16.msra.mxu0 %v639
      %694 = vmatprep.subr.bf16.mxu0 0
      %695 = vmatpush1.bf16.msra.mxu0 %v640
      %696 = vmatprep.subr.bf16.mxu0 0
      %697 = vmatpush1.bf16.msra.mxu0 %v641
      %698 = vmatprep.subr.bf16.mxu0 0
      %699 = vmatpush1.bf16.msra.mxu0 %v642
      %700 = vmatprep.subr.bf16.mxu0 0
      %701 = vmatpush1.bf16.msra.mxu0 %v643
      %702 = vmatprep.subr.bf16.mxu0 0
      %703 = vmatpush1.bf16.msra.mxu0 %v644
      %704 = vmatprep.subr.bf16.mxu0 0
      %705 = vmatpush1.bf16.msra.mxu0 %v645
      %706 = vmatprep.subr.bf16.mxu0 0
      %707 = vmatpush1.bf16.msra.mxu0 %v646
      %708 = vmatprep.subr.bf16.mxu0 0
      %709 = vmatpush1.bf16.msra.mxu0 %v647
      %710 = vmatprep.subr.bf16.mxu0 0
      %711 = vmatpush1.bf16.msra.mxu0 %v648
      %712 = vmatprep.subr.bf16.mxu0 0
      %713 = vmatpush1.bf16.msra.mxu0 %v649
      %714 = vmatprep.mubr.bf16.mxu0 %v467
      %715 = vmatmul.mubr.bf16.gmra.mrb[0].mxu0 %v454
      %v716 = vpop.f32.mrb[0].mxu0
      %v717 = vadd.f32 %v536, %v716
      %v718 = vpop.f32.mrb[0].mxu0
      %v719 = vpop.f32.mrb[0].mxu0
      %v720 = vadd.f32 %v536, %v719
      %v721 = vpop.f32.mrb[0].mxu0
      %722 = vdwg.mxu0
      %723 = vmatprep.subr.bf16.mxu0 0
      %724 = vmatpush1.bf16.msra.mxu0 %v650
      %725 = vmatprep.subr.bf16.mxu0 0
      %726 = vmatpush1.bf16.msra.mxu0 %v651
      %727 = vmatprep.subr.bf16.mxu0 0
      %728 = vmatpush1.bf16.msra.mxu0 %v652
      %729 = vmatprep.subr.bf16.mxu0 0
      %730 = vmatpush1.bf16.msra.mxu0 %v653
      %731 = vmatprep.subr.bf16.mxu0 0
      %732 = vmatpush1.bf16.msra.mxu0 %v654
      %733 = vmatprep.subr.bf16.mxu0 0
      %734 = vmatpush1.bf16.msra.mxu0 %v655
      %735 = vmatprep.subr.bf16.mxu0 0
      %736 = vmatpush1.bf16.msra.mxu0 %v656
      %737 = vmatprep.subr.bf16.mxu0 0
      %738 = vmatpush1.bf16.msra.mxu0 %v657
      %739 = vmatprep.subr.bf16.mxu0 0
      %740 = vmatpush1.bf16.msra.mxu0 0
      %741 = vmatprep.subr.bf16.mxu0 0
      %742 = vmatpush1.bf16.msra.mxu0 0
      %743 = vmatprep.subr.bf16.mxu0 0
      %744 = vmatpush1.bf16.msra.mxu0 0
      %745 = vmatprep.subr.bf16.mxu0 0
      %746 = vmatpush1.bf16.msra.mxu0 0
      %747 = vmatprep.subr.bf16.mxu0 0
      %748 = vmatpush1.bf16.msra.mxu0 0
      %749 = vmatprep.subr.bf16.mxu0 0
      %750 = vmatpush1.bf16.msra.mxu0 0
      %751 = vmatprep.subr.bf16.mxu0 0
      %752 = vmatpush1.bf16.msra.mxu0 0
      %753 = vmatprep.subr.bf16.mxu0 0
      %754 = vmatpush1.bf16.msra.mxu0 0
      %755 = vmatprep.mubr.bf16.mxu0 0
      %756 = vmatmul.mubr.bf16.gmra.mrb[0].mxu0 %v481
      %v757 = vpop.f32.mrb[0].mxu0
      %v758 = vadd.f32 %v717, %v757
      %v759 = vpop.f32.mrb[0].mxu0
      %v760 = vpop.f32.mrb[0].mxu0
      %v761 = vadd.f32 %v720, %v760
      %v762 = vpop.f32.mrb[0].mxu0
      %763 = vdwg.mxu0
      %v764 = vmul.f32 %v758, 0.5
      %v765 = vmul.f32 %v761, 0.5
      %v766 = vmul.f32 %v758, 0.044715
      %v767 = vmul.f32 %v761, 0.044715
      %v768 = vmul.f32 %v766, %v758
      %v769 = vmul.f32 %v767, %v761
      %v770 = vmul.f32 %v768, %v758
      %v771 = vmul.f32 %v769, %v761
      %v772 = vadd.f32 %v758, %v770
      %v773 = vadd.f32 %v761, %v771
      %v774 = vmul.f32 %v772, 0.7978846
      %v775 = vmul.f32 %v773, 0.7978846
      %v776 = vtanh.pop %v774
      %v777 = vtanh.pop %v775
      %v778 = vadd.f32 %v776, 1.0
      %v779 = vadd.f32 %v777, 1.0
      %v780 = vmul.f32 %v764, %v778
      %v781 = vmul.f32 %v765, %v779
      %v782 = vpack.c.bf16 %v781, %v780
      %v784 = vunpack.c.l.b16 %v782
      %v785 = vunpack.c.h.b16 %v782
      %v786 = vpack.c.b16 %v784, %v784
      %v787 = vpack.c.b16 %v785, %v785
      %790 = vst [vmem:[%s443] sm:$0xf] %v786
      %791 = vst [vmem:[%s443 + $0x4] sm:$0xf] %v787
      %s792 = smul.u32 2, %s24
      %p793 = scmp.lt.s32.totalorder %s22, 1
      %s794 = scalar_select %p793, %s22, 1
      %p795 = scmp.lt.s32.totalorder %s792, 1
      %s796 = scalar_select %p795, %s792, 1
      %p797 = scmp.lt.s32.totalorder %s23, 0
      %s798 = scalar_select %p797, %s23, 0
      %s799 = sadd.s32 %s798, %s796
      %s800 = smul.addr %s794, 2
      %s801 = sadd.s32 %s799, %s800
      %s802 = smul.addr %s801, 4
      %s803 = scalar_lea.vmem %s6, %s802
      // Predicated region
      $region45: #{mel_encoder_forward.5} parent=43 // pred_check
        %p804 = pneg %p222
      $region46: #{mel_encoder_forward.5} parent=43 // pred_check_branch
        %806 = sbr.rel (%p804) target = $region48
      $region47: #{mel_encoder_forward.5} parent=43 // pred_region
        %s807 = smul.u32 2, %s24
      $region48: #{mel_encoder_forward.5} parent=43 // pred_fallthru
        _
    $region44: #{mel_encoder_forward.5} parent=5 // pred_fallthru
      _
    %p808 = scmp.le.s32.totalorder 2, %s12
    // Predicated region
    $region49: #{mel_encoder_forward.5} parent=5 // pred_check
      %p809 = pneg %p808
    $region50: #{mel_encoder_forward.5} parent=5 // pred_check_branch
      %811 = sbr.rel (%p809) target = $region52
    $region51: #{mel_encoder_forward.5} parent=5 // pred_region
      %s812 = ssub.s32 %s12, 2
      // Predicated region
      $region53: #{mel_encoder_forward.5} parent=51 // pred_check
        %p813 = pneg %p228
      $region54: #{mel_encoder_forward.5} parent=51 // pred_check_branch
        %815 = sbr.rel (%p813) target = $region56
      $region55: #{mel_encoder_forward.5} parent=51 // pred_region
        %s816 = smul.u32 2, %s27
        %p817 = scmp.lt.s32.totalorder %s25, 1
        %s818 = scalar_select %p817, %s25, 1
        %p819 = scmp.lt.s32.totalorder %s816, 1
        %s820 = scalar_select %p819, %s816, 1
        %p821 = scmp.lt.s32.totalorder %s26, 0
        %s822 = scalar_select %p821, %s26, 0
        %s823 = sadd.s32 %s822, %s820
        %s824 = smul.addr %s818, 2
        %s825 = sadd.s32 %s823, %s824
        %s826 = smul.addr %s825, 4
        %s827 = scalar_lea.vmem %s6, %s826
      $region56: #{mel_encoder_forward.5} parent=51 // pred_fallthru
        _
    $region52: #{mel_encoder_forward.5} parent=5 // pred_fallthru
      _
  $region6: #{mel_encoder_forward.5} parent=0 // loop_footer
    %s16 = sadd.s32 1, %s12
  $region7: #{mel_encoder_forward.5} parent=0 // loop_footer_branch
    %11 = sbr.rel target = $region3
  $region8: #{mel_encoder_forward.5} parent=0 // loop_exit
    _

// kernel: mel_encoder_forward.4
$region0: #{mel_encoder_forward.4}
  #allocation0 [shape = 'u32[]', space=smem, size = 0x4, offset = 0x4, fixed_abs, tag = 'smem constant byte address 0x4 - core index']
  #allocation1 [shape = 'u32[144,128]{1,0:T(1,128)}', space=vmem, size = 0x12000, scoped, tag = 'internal scratch']
  %s0 = inlined_call_operand.vmem [shape: bf16[2,16,128], index: 0, kind: input, shape index: {}]
  %s1 = inlined_call_operand.vmem [shape: bf16[2,16,128], index: 1, kind: input, shape index: {}]
  %s2 = inlined_call_operand.vmem [shape: bf16[2,16,128], index: 2, kind: input, shape index: {}]
  %s3 = inlined_call_operand.vmem [shape: bf16[2,16,128], index: 3, kind: input, shape index: {}]
  %s4 = inlined_call_operand.vmem [shape: bf16[640,128], index: 4, kind: input, shape index: {}]
  %s5 = inlined_call_operand.vmem [shape: f32[1,128], index: 5, kind: input, shape index: {}]
  %s6 = inlined_call_operand.vmem [shape: bf16[2,16,128], index: 6, kind: output, shape index: {}]
  %s7 = sld [smem:[#allocation0]]
  $region57: #{mel_encoder_forward.4} parent=0
    _
  %s9 = ssub.s32 1, %s7
  %s10 = scalar_select 0, %s9, %s7
  loop: start=0, step=1, limit=4
  $region2: #{mel_encoder_forward.4} parent=0 // loop_pre_header
    _
  $region3: #{mel_encoder_forward.4} parent=0 // loop_header
    %s12 = sphi 0, %s16
    %p13 = scmp.ge.s32.totalorder %s12, 4
    %s19 = sphi 0, %s38
    %s20 = sphi 0, %s34
    %s21 = sphi 0, %s30
    %s22 = sphi 0, %s19
    %s23 = sphi 0, %s20
    %s24 = sphi 0, %s21
    %s25 = sphi 0, %s22
    %s26 = sphi 0, %s23
    %s27 = sphi 0, %s24
    %s43 = sphi 0, %s45
    %s46 = sphi 0, %s43
    %s47 = sphi 0, %s46
    %s63 = sphi 0, %s47
    %s71 = sphi 0, %s73
    %s74 = sphi 0, %s71
    %s75 = sphi 0, %s74
    %s91 = sphi 0, %s75
    %s99 = sphi 0, %s101
    %s102 = sphi 0, %s99
    %s103 = sphi 0, %s102
    %s119 = sphi 0, %s103
    %s127 = sphi 0, %s129
    %s130 = sphi 0, %s127
    %s131 = sphi 0, %s130
    %s147 = sphi 0, %s131
    %s153 = sphi 0, %s155
    %s156 = sphi 0, %s153
    %s157 = sphi 0, %s156
    %s173 = sphi 0, %s157
    %s179 = sphi 0, %s181
    %s182 = sphi 0, %s179
    %s183 = sphi 0, %s182
    %s199 = sphi 0, %s183
    %s209 = sphi 0, %s211
    %s212 = sphi 0, %s209
    %s213 = sphi 0, %s212
    %s229 = sphi 0, %s213
  $region4: #{mel_encoder_forward.4} parent=0 // loop_header_branch
    %15 = sbr.rel (%p13) target = $region8
  $region5: #{mel_encoder_forward.4} parent=0 // loop_body
    %s17 = ssub.s32 %s12, 1
    %s18 = ssub.s32 %s12, 2
    %s28 = sadd.s32 1, %s21
    %p29 = scmp.ge.s32.totalorder %s28, 1
    %s30 = scalar_select %p29, 0, %s28
    %s31 = sadd.s32 1, %s20
    %s32 = scalar_select %p29, %s31, %s20
    %p33 = scmp.ge.s32.totalorder %s32, 1
    %s34 = scalar_select %p33, 0, %s32
    %s35 = sadd.s32 1, %s19
    %s36 = scalar_select %p33, %s35, %s19
    %p37 = scmp.ge.s32.totalorder %s36, 2
    %s38 = scalar_select %p37, 0, %s36
    %s39 = ssub.s32 %s19, %s38
    %s40 = ssub.s32 %s21, %s30
    %s41 = sor.u32 %s39, %s40
    %p42 = scmp.eq.s32.totalorder %s41, 0
    %s44 = sadd.s32 %s43, 1
    %s45 = scalar_select %p42, %s43, %s44
    %p48 = pneg %p42
    %p49 = scmp.eq.s32.totalorder %s12, 1
    %p50 = por %p48, %p49
    %p51 = scmp.ne.s32.totalorder %s43, %s46
    %p52 = scmp.eq.s32.totalorder %s12, 0
    %p53 = por %p51, %p52
    %p54 = scmp.ne.s32.totalorder %s43, %s46
    %p55 = scmp.eq.s32.totalorder %s17, 1
    %p56 = por %p54, %p55
    %p57 = scmp.ne.s32.totalorder %s46, %s47
    %p58 = scmp.eq.s32.totalorder %s17, 0
    %p59 = por %p57, %p58
    %p60 = scmp.ne.s32.totalorder %s46, %s47
    %p61 = scmp.eq.s32.totalorder %s18, 1
    %p62 = por %p60, %p61
    %p64 = scmp.ne.s32.totalorder %s47, %s63
    %p65 = scmp.eq.s32.totalorder %s18, 0
    %p66 = por %p64, %p65
    %s67 = ssub.s32 %s19, %s38
    %s68 = ssub.s32 %s21, %s30
    %s69 = sor.u32 %s67, %s68
    %p70 = scmp.eq.s32.totalorder %s69, 0
    %s72 = sadd.s32 %s71, 1
    %s73 = scalar_select %p70, %s71, %s72
    %p76 = pneg %p70
    %p77 = scmp.eq.s32.totalorder %s12, 1
    %p78 = por %p76, %p77
    %p79 = scmp.ne.s32.totalorder %s71, %s74
    %p80 = scmp.eq.s32.totalorder %s12, 0
    %p81 = por %p79, %p80
    %p82 = scmp.ne.s32.totalorder %s71, %s74
    %p83 = scmp.eq.s32.totalorder %s17, 1
    %p84 = por %p82, %p83
    %p85 = scmp.ne.s32.totalorder %s74, %s75
    %p86 = scmp.eq.s32.totalorder %s17, 0
    %p87 = por %p85, %p86
    %p88 = scmp.ne.s32.totalorder %s74, %s75
    %p89 = scmp.eq.s32.totalorder %s18, 1
    %p90 = por %p88, %p89
    %p92 = scmp.ne.s32.totalorder %s75, %s91
    %p93 = scmp.eq.s32.totalorder %s18, 0
    %p94 = por %p92, %p93
    %s95 = ssub.s32 %s19, %s38
    %s96 = ssub.s32 %s21, %s30
    %s97 = sor.u32 %s95, %s96
    %p98 = scmp.eq.s32.totalorder %s97, 0
    %s100 = sadd.s32 %s99, 1
    %s101 = scalar_select %p98, %s99, %s100
    %p104 = pneg %p98
    %p105 = scmp.eq.s32.totalorder %s12, 1
    %p106 = por %p104, %p105
    %p107 = scmp.ne.s32.totalorder %s99, %s102
    %p108 = scmp.eq.s32.totalorder %s12, 0
    %p109 = por %p107, %p108
    %p110 = scmp.ne.s32.totalorder %s99, %s102
    %p111 = scmp.eq.s32.totalorder %s17, 1
    %p112 = por %p110, %p111
    %p113 = scmp.ne.s32.totalorder %s102, %s103
    %p114 = scmp.eq.s32.totalorder %s17, 0
    %p115 = por %p113, %p114
    %p116 = scmp.ne.s32.totalorder %s102, %s103
    %p117 = scmp.eq.s32.totalorder %s18, 1
    %p118 = por %p116, %p117
    %p120 = scmp.ne.s32.totalorder %s103, %s119
    %p121 = scmp.eq.s32.totalorder %s18, 0
    %p122 = por %p120, %p121
    %s123 = ssub.s32 %s19, %s38
    %s124 = ssub.s32 %s21, %s30
    %s125 = sor.u32 %s123, %s124
    %p126 = scmp.eq.s32.totalorder %s125, 0
    %s128 = sadd.s32 %s127, 1
    %s129 = scalar_select %p126, %s127, %s128
    %p132 = pneg %p126
    %p133 = scmp.eq.s32.totalorder %s12, 1
    %p134 = por %p132, %p133
    %p135 = scmp.ne.s32.totalorder %s127, %s130
    %p136 = scmp.eq.s32.totalorder %s12, 0
    %p137 = por %p135, %p136
    %p138 = scmp.ne.s32.totalorder %s127, %s130
    %p139 = scmp.eq.s32.totalorder %s17, 1
    %p140 = por %p138, %p139
    %p141 = scmp.ne.s32.totalorder %s130, %s131
    %p142 = scmp.eq.s32.totalorder %s17, 0
    %p143 = por %p141, %p142
    %p144 = scmp.ne.s32.totalorder %s130, %s131
    %p145 = scmp.eq.s32.totalorder %s18, 1
    %p146 = por %p144, %p145
    %p148 = scmp.ne.s32.totalorder %s131, %s147
    %p149 = scmp.eq.s32.totalorder %s18, 0
    %p150 = por %p148, %p149
    %s151 = ssub.s32 %s20, %s34
    %p152 = scmp.eq.s32.totalorder %s151, 0
    %s154 = sadd.s32 %s153, 1
    %s155 = scalar_select %p152, %s153, %s154
    %p158 = pneg %p152
    %p159 = scmp.eq.s32.totalorder %s12, 1
    %p160 = por %p158, %p159
    %p161 = scmp.ne.s32.totalorder %s153, %s156
    %p162 = scmp.eq.s32.totalorder %s12, 0
    %p163 = por %p161, %p162
    %p164 = scmp.ne.s32.totalorder %s153, %s156
    %p165 = scmp.eq.s32.totalorder %s17, 1
    %p166 = por %p164, %p165
    %p167 = scmp.ne.s32.totalorder %s156, %s157
    %p168 = scmp.eq.s32.totalorder %s17, 0
    %p169 = por %p167, %p168
    %p170 = scmp.ne.s32.totalorder %s156, %s157
    %p171 = scmp.eq.s32.totalorder %s18, 1
    %p172 = por %p170, %p171
    %p174 = scmp.ne.s32.totalorder %s157, %s173
    %p175 = scmp.eq.s32.totalorder %s18, 0
    %p176 = por %p174, %p175
    %s177 = ssub.s32 %s20, %s34
    %p178 = scmp.eq.s32.totalorder %s177, 0
    %s180 = sadd.s32 %s179, 1
    %s181 = scalar_select %p178, %s179, %s180
    %p184 = pneg %p178
    %p185 = scmp.eq.s32.totalorder %s12, 1
    %p186 = por %p184, %p185
    %p187 = scmp.ne.s32.totalorder %s179, %s182
    %p188 = scmp.eq.s32.totalorder %s12, 0
    %p189 = por %p187, %p188
    %p190 = scmp.ne.s32.totalorder %s179, %s182
    %p191 = scmp.eq.s32.totalorder %s17, 1
    %p192 = por %p190, %p191
    %p193 = scmp.ne.s32.totalorder %s182, %s183
    %p194 = scmp.eq.s32.totalorder %s17, 0
    %p195 = por %p193, %p194
    %p196 = scmp.ne.s32.totalorder %s182, %s183
    %p197 = scmp.eq.s32.totalorder %s18, 1
    %p198 = por %p196, %p197
    %p200 = scmp.ne.s32.totalorder %s183, %s199
    %p201 = scmp.eq.s32.totalorder %s18, 0
    %p202 = por %p200, %p201
    %s203 = ssub.s32 %s19, %s38
    %s204 = ssub.s32 %s21, %s30
    %s205 = sor.u32 %s203, %s204
    %s206 = ssub.s32 %s20, %s34
    %s207 = sor.u32 %s205, %s206
    %p208 = scmp.eq.s32.totalorder %s207, 0
    %s210 = sadd.s32 %s209, 1
    %s211 = scalar_select %p208, %s209, %s210
    %p214 = pneg %p208
    %p215 = scmp.eq.s32.totalorder %s12, 1
    %p216 = por %p214, %p215
    %p217 = scmp.ne.s32.totalorder %s209, %s212
    %p218 = scmp.eq.s32.totalorder %s12, 0
    %p219 = por %p217, %p218
    %p220 = scmp.ne.s32.totalorder %s209, %s212
    %p221 = scmp.eq.s32.totalorder %s17, 1
    %p222 = por %p220, %p221
    %p223 = scmp.ne.s32.totalorder %s212, %s213
    %p224 = scmp.eq.s32.totalorder %s17, 0
    %p225 = por %p223, %p224
    %p226 = scmp.ne.s32.totalorder %s212, %s213
    %p227 = scmp.eq.s32.totalorder %s18, 1
    %p228 = por %p226, %p227
    %p230 = scmp.ne.s32.totalorder %s213, %s229
    %p231 = scmp.eq.s32.totalorder %s18, 0
    %p232 = por %p230, %p231
    %p233 = scmp.le.s32.totalorder 1, %s12
    %p234 = scmp.lt.s32.totalorder %s12, 3
    %p235 = pnand %p233, %p234
    %p236 = pneg %p235
    // Predicated region
    $region9: #{mel_encoder_forward.4} parent=5 // pred_check
      _
    $region10: #{mel_encoder_forward.4} parent=5 // pred_check_branch
      %238 = sbr.rel (%p235) target = $region12
    $region11: #{mel_encoder_forward.4} parent=5 // pred_region
      %s239 = ssub.s32 %s12, 1
      // Predicated region
      $region13: #{mel_encoder_forward.4} parent=11 // pred_check
        %p240 = pneg %p169
      $region14: #{mel_encoder_forward.4} parent=11 // pred_check_branch
        %242 = sbr.rel (%p240) target = $region16
      $region15: #{mel_encoder_forward.4} parent=11 // pred_region
        %p243 = scmp.lt.s32.totalorder %s23, 0
        %s244 = scalar_select %p243, %s23, 0
        %s245 = smul.addr %s244, 4
        %s246 = scalar_lea.vmem %s4, %s245
      $region16: #{mel_encoder_forward.4} parent=11 // pred_fallthru
        _
      // Predicated region
      $region17: #{mel_encoder_forward.4} parent=11 // pred_check
        %p247 = pneg %p195
      $region18: #{mel_encoder_forward.4} parent=11 // pred_check_branch
        %249 = sbr.rel (%p247) target = $region20
      $region19: #{mel_encoder_forward.4} parent=11 // pred_region
        %p250 = scmp.lt.s32.totalorder %s23, 0
        %s251 = scalar_select %p250, %s23, 0
        %s252 = scalar_lea.vmem %s5, %s251
      $region20: #{mel_encoder_forward.4} parent=11 // pred_fallthru
        _
    $region12: #{mel_encoder_forward.4} parent=5 // pred_fallthru
      _
    %p253 = scmp.lt.s32.totalorder %s12, 2
    // Predicated region
    $region21: #{mel_encoder_forward.4} parent=5 // pred_check
      %p254 = pneg %p253
    $region22: #{mel_encoder_forward.4} parent=5 // pred_check_branch
      %256 = sbr.rel (%p254) target = $region24
    $region23: #{mel_encoder_forward.4} parent=5 // pred_region
      // Predicated region
      $region25: #{mel_encoder_forward.4} parent=23 // pred_check
        %p257 = pneg %p53
      $region26: #{mel_encoder_forward.4} parent=23 // pred_check_branch
        %259 = sbr.rel (%p257) target = $region28
      $region27: #{mel_encoder_forward.4} parent=23 // pred_region
        %s260 = smul.u32 2, %s21
        %p261 = scmp.lt.s32.totalorder %s19, 1
        %s262 = scalar_select %p261, %s19, 1
        %p263 = scmp.lt.s32.totalorder %s260, 1
        %s264 = scalar_select %p263, %s260, 1
        %s265 = smul.addr %s262, 2
        %s266 = sadd.s32 %s264, %s265
        %s267 = smul.addr %s266, 4
        %s268 = scalar_lea.vmem %s0, %s267
        %s269 = smul.u32 2, %s21
      $region28: #{mel_encoder_forward.4} parent=23 // pred_fallthru
        _
      // Predicated region
      $region29: #{mel_encoder_forward.4} parent=23 // pred_check
        %p270 = pneg %p81
      $region30: #{mel_encoder_forward.4} parent=23 // pred_check_branch
        %272 = sbr.rel (%p270) target = $region32
      $region31: #{mel_encoder_forward.4} parent=23 // pred_region
        %s273 = smul.u32 2, %s21
        %p274 = scmp.lt.s32.totalorder %s19, 1
        %s275 = scalar_select %p274, %s19, 1
        %p276 = scmp.lt.s32.totalorder %s273, 1
        %s277 = scalar_select %p276, %s273, 1
        %s278 = smul.addr %s275, 2
        %s279 = sadd.s32 %s277, %s278
        %s280 = smul.addr %s279, 4
        %s281 = scalar_lea.vmem %s1, %s280
        %s282 = smul.u32 2, %s21
      $region32: #{mel_encoder_forward.4} parent=23 // pred_fallthru
        _
      // Predicated region
      $region33: #{mel_encoder_forward.4} parent=23 // pred_check
        %p283 = pneg %p109
      $region34: #{mel_encoder_forward.4} parent=23 // pred_check_branch
        %285 = sbr.rel (%p283) target = $region36
      $region35: #{mel_encoder_forward.4} parent=23 // pred_region
        %s286 = smul.u32 2, %s21
        %p287 = scmp.lt.s32.totalorder %s19, 1
        %s288 = scalar_select %p287, %s19, 1
        %p289 = scmp.lt.s32.totalorder %s286, 1
        %s290 = scalar_select %p289, %s286, 1
        %s291 = smul.addr %s288, 2
        %s292 = sadd.s32 %s290, %s291
        %s293 = smul.addr %s292, 4
        %s294 = scalar_lea.vmem %s2, %s293
        %s295 = smul.u32 2, %s21
      $region36: #{mel_encoder_forward.4} parent=23 // pred_fallthru
        _
      // Predicated region
      $region37: #{mel_encoder_forward.4} parent=23 // pred_check
        %p296 = pneg %p137
      $region38: #{mel_encoder_forward.4} parent=23 // pred_check_branch
        %298 = sbr.rel (%p296) target = $region40
      $region39: #{mel_encoder_forward.4} parent=23 // pred_region
        %s299 = smul.u32 2, %s21
        %p300 = scmp.lt.s32.totalorder %s19, 1
        %s301 = scalar_select %p300, %s19, 1
        %p302 = scmp.lt.s32.totalorder %s299, 1
        %s303 = scalar_select %p302, %s299, 1
        %s304 = smul.addr %s301, 2
        %s305 = sadd.s32 %s303, %s304
        %s306 = smul.addr %s305, 4
        %s307 = scalar_lea.vmem %s3, %s306
        %s308 = smul.u32 2, %s21
      $region40: #{mel_encoder_forward.4} parent=23 // pred_fallthru
        _
    $region24: #{mel_encoder_forward.4} parent=5 // pred_fallthru
      _
    %p309 = scmp.le.s32.totalorder 1, %s12
    %p310 = scmp.lt.s32.totalorder %s12, 3
    %p311 = pnand %p309, %p310
    %p312 = pneg %p311
    // Predicated region
    $region41: #{mel_encoder_forward.4} parent=5 // pred_check
      _
    $region42: #{mel_encoder_forward.4} parent=5 // pred_check_branch
      %314 = sbr.rel (%p311) target = $region44
    $region43: #{mel_encoder_forward.4} parent=5 // pred_region
      %s315 = ssub.s32 %s12, 1
      %s316 = smul.u32 2, %s24
      %p317 = scmp.lt.s32.totalorder %s22, 1
      %s318 = scalar_select %p317, %s22, 1
      %p319 = scmp.lt.s32.totalorder %s316, 1
      %s320 = scalar_select %p319, %s316, 1
      %s321 = smul.addr %s318, 2
      %s322 = sadd.s32 %s320, %s321
      %s323 = smul.addr %s322, 4
      %s324 = scalar_lea.vmem %s0, %s323
      %p325 = pneg %p59
      %p326 = pneg %p56
      %s327 = smul.u32 2, %s24
      %p328 = scmp.lt.s32.totalorder %s22, 1
      %s329 = scalar_select %p328, %s22, 1
      %p330 = scmp.lt.s32.totalorder %s327, 1
      %s331 = scalar_select %p330, %s327, 1
      %s332 = smul.addr %s329, 2
      %s333 = sadd.s32 %s331, %s332
      %s334 = smul.addr %s333, 4
      %s335 = scalar_lea.vmem %s1, %s334
      %p336 = pneg %p87
      %p337 = pneg %p84
      %s338 = smul.u32 2, %s24
      %p339 = scmp.lt.s32.totalorder %s22, 1
      %s340 = scalar_select %p339, %s22, 1
      %p341 = scmp.lt.s32.totalorder %s338, 1
      %s342 = scalar_select %p341, %s338, 1
      %s343 = smul.addr %s340, 2
      %s344 = sadd.s32 %s342, %s343
      %s345 = smul.addr %s344, 4
      %s346 = scalar_lea.vmem %s2, %s345
      %p347 = pneg %p115
      %p348 = pneg %p112
      %s349 = smul.u32 2, %s24
      %p350 = scmp.lt.s32.totalorder %s22, 1
      %s351 = scalar_select %p350, %s22, 1
      %p352 = scmp.lt.s32.totalorder %s349, 1
      %s353 = scalar_select %p352, %s349, 1
      %s354 = smul.addr %s351, 2
      %s355 = sadd.s32 %s353, %s354
      %s356 = smul.addr %s355, 4
      %s357 = scalar_lea.vmem %s3, %s356
      %p358 = pneg %p143
      %p359 = pneg %p140
      %p360 = scmp.lt.s32.totalorder %s23, 0
      %s361 = scalar_select %p360, %s23, 0
      %s362 = smul.addr %s361, 4
      %s363 = scalar_lea.vmem %s4, %s362
      %p364 = pneg %p169
      %p365 = pneg %p166
      %p366 = scmp.lt.s32.totalorder %s23, 0
      %s367 = scalar_select %p366, %s23, 0
      %s368 = scalar_lea.vmem %s5, %s367
      %p369 = pneg %p195
      %p370 = pneg %p192
      %p371 = pneg %p225
      %p372 = pneg %p222
      %s373 = smul.u32 2, %s24
      %p374 = scmp.lt.s32.totalorder %s22, 1
      %s375 = scalar_select %p374, %s22, 1
      %p376 = scmp.lt.s32.totalorder %s373, 1
      %s377 = scalar_select %p376, %s373, 1
      %p378 = scmp.lt.s32.totalorder %s23, 0
      %s379 = scalar_select %p378, %s23, 0
      %s380 = sadd.s32 %s379, %s377
      %s381 = smul.addr %s375, 2
      %s382 = sadd.s32 %s380, %s381
      %s383 = smul.addr %s382, 4
      %s384 = scalar_lea.vmem %s6, %s383
      %s385 = smul.u32 2, %s24
      %p386 = scmp.lt.s32.totalorder %s22, 1
      %s387 = scalar_select %p386, %s22, 1
      %p388 = scmp.lt.s32.totalorder %s385, 1
      %s389 = scalar_select %p388, %s385, 1
      %s390 = smul.addr %s387, 2
      %s391 = sadd.s32 %s389, %s390
      %s392 = smul.addr %s391, 4
      %s393 = scalar_lea.vmem %s0, %s392
      %s394 = smul.u32 2, %s24
      %s395 = smul.u32 2, %s24
      %p396 = scmp.lt.s32.totalorder %s22, 1
      %s397 = scalar_select %p396, %s22, 1
      %p398 = scmp.lt.s32.totalorder %s395, 1
      %s399 = scalar_select %p398, %s395, 1
      %s400 = smul.addr %s397, 2
      %s401 = sadd.s32 %s399, %s400
      %s402 = smul.addr %s401, 4
      %s403 = scalar_lea.vmem %s1, %s402
      %s404 = smul.u32 2, %s24
      %s405 = smul.u32 2, %s24
      %p406 = scmp.lt.s32.totalorder %s22, 1
      %s407 = scalar_select %p406, %s22, 1
      %p408 = scmp.lt.s32.totalorder %s405, 1
      %s409 = scalar_select %p408, %s405, 1
      %s410 = smul.addr %s407, 2
      %s411 = sadd.s32 %s409, %s410
      %s412 = smul.addr %s411, 4
      %s413 = scalar_lea.vmem %s2, %s412
      %s414 = smul.u32 2, %s24
      %s415 = smul.u32 2, %s24
      %p416 = scmp.lt.s32.totalorder %s22, 1
      %s417 = scalar_select %p416, %s22, 1
      %p418 = scmp.lt.s32.totalorder %s415, 1
      %s419 = scalar_select %p418, %s415, 1
      %s420 = smul.addr %s417, 2
      %s421 = sadd.s32 %s419, %s420
      %s422 = smul.addr %s421, 4
      %s423 = scalar_lea.vmem %s3, %s422
      %s424 = smul.u32 2, %s24
      %p425 = scmp.lt.s32.totalorder %s23, 0
      %s426 = scalar_select %p425, %s23, 0
      %s427 = smul.addr %s426, 4
      %s428 = scalar_lea.vmem %s4, %s427
      %p429 = scmp.lt.s32.totalorder %s23, 0
      %s430 = scalar_select %p429, %s23, 0
      %s431 = scalar_lea.vmem %s5, %s430
      %s432 = smul.u32 2, %s24
      %p433 = scmp.lt.s32.totalorder %s22, 1
      %s434 = scalar_select %p433, %s22, 1
      %p435 = scmp.lt.s32.totalorder %s432, 1
      %s436 = scalar_select %p435, %s432, 1
      %p437 = scmp.lt.s32.totalorder %s23, 0
      %s438 = scalar_select %p437, %s23, 0
      %s439 = sadd.s32 %s438, %s436
      %s440 = smul.addr %s434, 2
      %s441 = sadd.s32 %s439, %s440
      %s442 = smul.addr %s441, 4
      %s443 = scalar_lea.vmem %s6, %s442
      %s444 = smul.u32 2, %s24
      %v446 = vld [vmem:[%s393] sm:$0xf]
      %v447 = vld [vmem:[%s393 + $0x4] sm:$0xf]
      %v448 = vld [vmem:[%s403] sm:$0xf]
      %v449 = vld [vmem:[%s403 + $0x4] sm:$0xf]
      %v452 = vunpack.c.l.b16 %v446
      %v453 = vunpack.c.l.b16 %v447
      %v454 = vpack.c.b16 %v453, %v452
      %v458 = vunpack.c.l.b16 %v448
      %v459 = vunpack.c.l.b16 %v449
      %v460 = vpack.c.b16 %v459, %v458
      %v461 = vld [vmem:[%s413] sm:$0xf]
      %v462 = vld [vmem:[%s413 + $0x4] sm:$0xf]
      %v463 = vld [vmem:[%s423] sm:$0xf]
      %v464 = vld [vmem:[%s423 + $0x4] sm:$0xf]
      %v467 = vunpack.c.l.b16 %v461
      %v468 = vunpack.c.l.b16 %v462
      %v469 = vpack.c.b16 %v468, %v467
      %v473 = vunpack.c.l.b16 %v463
      %v474 = vunpack.c.l.b16 %v464
      %v475 = vpack.c.b16 %v474, %v473
      %vm476 = vsmask.f32 7424
      %v478 = vshrl.u32 %v454, 16
      %v480 = vshll.u32 %v454, 16
      %v482 = vrot.slane %v480, 1
      %v483 = vor.u32 %v478, %v482
      %v485 = vshll.u32 %v460, 16
      %v487 = vrot.slane %v485, 1
      %v488 = vsel %vm476, %v483, %v487
      %v491 = vshrl.u32 %v469, 16
      %v493 = vshll.u32 %v469, 16
      %v495 = vrot.slane %v493, 1
      %v496 = vor.u32 %v491, %v495
      %v498 = vshll.u32 %v475, 16
      %v500 = vrot.slane %v498, 1
      %v501 = vsel %vm476, %v496, %v500
      %vm503 = vcmask 1046528
      %v504 = vrot.slane %v454, 1
      %v505 = vrot.slane %v460, 1
      %v506 = vsel %vm503, %v504, %v505
      %v508 = vld [vmem:[%s428] sm:$0xf]
      %v509 = vld [vmem:[%s428 + $0x4] sm:$0xf]
      %v510 = vld [vmem:[%s428 + $0x8] sm:$0xf]
      %v511 = vld [vmem:[%s428 + $0xc] sm:$0xf]
      %v512 = vld [vmem:[%s428 + $0x10] sm:$0xf]
      %v513 = vld [vmem:[%s428 + $0x14] sm:$0xf]
      %v514 = vld [vmem:[%s428 + $0x18] sm:$0xf]
      %v515 = vld [vmem:[%s428 + $0x1c] sm:$0xf]
      %v516 = vld [vmem:[%s428 + $0x20] sm:$0xf]
      %v517 = vld [vmem:[%s428 + $0x24] sm:$0xf]
      %v518 = vld [vmem:[%s428 + $0x28] sm:$0xf]
      %v519 = vld [vmem:[%s428 + $0x2c] sm:$0xf]
      %v520 = vld [vmem:[%s428 + $0x30] sm:$0xf]
      %v521 = vld [vmem:[%s428 + $0x34] sm:$0xf]
      %v522 = vld [vmem:[%s428 + $0x38] sm:$0xf]
      %v523 = vld [vmem:[%s428 + $0x3c] sm:$0xf]
      %v524 = vld [vmem:[%s428 + $0x40] sm:$0xf]
      %v525 = vld [vmem:[%s428 + $0x44] sm:$0xf]
      %v526 = vld [vmem:[%s428 + $0x48] sm:$0xf]
      %v527 = vld [vmem:[%s428 + $0x4c] sm:$0xf]
      %v528 = vld [vmem:[%s428 + $0x50] sm:$0xf]
      %v529 = vld [vmem:[%s428 + $0x54] sm:$0xf]
      %v530 = vld [vmem:[%s428 + $0x58] sm:$0xf]
      %v531 = vld [vmem:[%s428 + $0x5c] sm:$0xf]
      %v532 = vld [vmem:[%s428 + $0x60] sm:$0xf]
      %v533 = vld [vmem:[%s428 + $0x64] sm:$0xf]
      %v534 = vld [vmem:[%s428 + $0x68] sm:$0xf]
      %v535 = vld [vmem:[%s428 + $0x6c] sm:$0xf]
      %v536 = vld [vmem:[%s428 + $0x70] sm:$0xf]
      %v537 = vld [vmem:[%s428 + $0x74] sm:$0xf]
      %v538 = vld [vmem:[%s428 + $0x78] sm:$0xf]
      %v539 = vld [vmem:[%s428 + $0x7c] sm:$0xf]
      %v540 = vld [vmem:[%s428 + $0x80] sm:$0xf]
      %v541 = vld [vmem:[%s428 + $0x84] sm:$0xf]
      %v542 = vld [vmem:[%s428 + $0x88] sm:$0xf]
      %v543 = vld [vmem:[%s428 + $0x8c] sm:$0xf]
      %v544 = vld [vmem:[%s428 + $0x90] sm:$0xf]
      %v545 = vld [vmem:[%s428 + $0x94] sm:$0xf]
      %v546 = vld [vmem:[%s428 + $0x98] sm:$0xf]
      %v547 = vld [vmem:[%s428 + $0x9c] sm:$0xf]
      %v548 = vld [vmem:[%s428 + $0xa0] sm:$0xf]
      %v549 = vld [vmem:[%s428 + $0xa4] sm:$0xf]
      %v550 = vld [vmem:[%s428 + $0xa8] sm:$0xf]
      %v551 = vld [vmem:[%s428 + $0xac] sm:$0xf]
      %v552 = vld [vmem:[%s428 + $0xb0] sm:$0xf]
      %v553 = vld [vmem:[%s428 + $0xb4] sm:$0xf]
      %v554 = vld [vmem:[%s428 + $0xb8] sm:$0xf]
      %v555 = vld [vmem:[%s428 + $0xbc] sm:$0xf]
      %v556 = vld [vmem:[%s428 + $0xc0] sm:$0xf]
      %v557 = vld [vmem:[%s428 + $0xc4] sm:$0xf]
      %v558 = vld [vmem:[%s428 + $0xc8] sm:$0xf]
      %v559 = vld [vmem:[%s428 + $0xcc] sm:$0xf]
      %v560 = vld [vmem:[%s428 + $0xd0] sm:$0xf]
      %v561 = vld [vmem:[%s428 + $0xd4] sm:$0xf]
      %v562 = vld [vmem:[%s428 + $0xd8] sm:$0xf]
      %v563 = vld [vmem:[%s428 + $0xdc] sm:$0xf]
      %v564 = vld [vmem:[%s428 + $0xe0] sm:$0xf]
      %v565 = vld [vmem:[%s428 + $0xe4] sm:$0xf]
      %v566 = vld [vmem:[%s428 + $0xe8] sm:$0xf]
      %v567 = vld [vmem:[%s428 + $0xec] sm:$0xf]
      %v568 = vld [vmem:[%s428 + $0xf0] sm:$0xf]
      %v569 = vld [vmem:[%s428 + $0xf4] sm:$0xf]
      %v570 = vld [vmem:[%s428 + $0xf8] sm:$0xf]
      %v571 = vld [vmem:[%s428 + $0xfc] sm:$0xf]
      %v572 = vld [vmem:[%s428 + $0x100] sm:$0xf]
      %v573 = vld [vmem:[%s428 + $0x104] sm:$0xf]
      %v574 = vld [vmem:[%s428 + $0x108] sm:$0xf]
      %v575 = vld [vmem:[%s428 + $0x10c] sm:$0xf]
      %v576 = vld [vmem:[%s428 + $0x110] sm:$0xf]
      %v577 = vld [vmem:[%s428 + $0x114] sm:$0xf]
      %v578 = vld [vmem:[%s428 + $0x118] sm:$0xf]
      %v579 = vld [vmem:[%s428 + $0x11c] sm:$0xf]
      %v580 = vld [vmem:[%s428 + $0x120] sm:$0xf]
      %v581 = vld [vmem:[%s428 + $0x124] sm:$0xf]
      %v582 = vld [vmem:[%s428 + $0x128] sm:$0xf]
      %v583 = vld [vmem:[%s428 + $0x12c] sm:$0xf]
      %v584 = vld [vmem:[%s428 + $0x130] sm:$0xf]
      %v585 = vld [vmem:[%s428 + $0x134] sm:$0xf]
      %v586 = vld [vmem:[%s428 + $0x138] sm:$0xf]
      %v587 = vld [vmem:[%s428 + $0x13c] sm:$0xf]
      %v588 = vld [vmem:[%s431] sm:$0x1]
      %v590 = vlaneseq
      %v591 = vshrl.u32 %v590, 7
      %v592 = vsub.s32 0, %v591
      %v593 = vrot.slane %v588, %v592
      %v675 = vunpack.c.l.b16 %v508
      %v676 = vunpack.c.l.b16 %v509
      %v677 = vunpack.c.l.b16 %v510
      %v678 = vunpack.c.l.b16 %v511
      %v679 = vunpack.c.l.b16 %v512
      %v680 = vunpack.c.l.b16 %v513
      %v681 = vunpack.c.l.b16 %v514
      %v682 = vunpack.c.l.b16 %v515
      %v683 = vunpack.c.l.b16 %v516
      %v684 = vunpack.c.l.b16 %v517
      %v685 = vunpack.c.l.b16 %v518
      %v686 = vunpack.c.l.b16 %v519
      %v687 = vunpack.c.l.b16 %v520
      %v688 = vunpack.c.l.b16 %v521
      %v689 = vunpack.c.l.b16 %v522
      %v690 = vunpack.c.l.b16 %v523
      %v691 = vunpack.c.l.b16 %v524
      %v692 = vunpack.c.l.b16 %v525
      %v693 = vunpack.c.l.b16 %v526
      %v694 = vunpack.c.l.b16 %v527
      %v695 = vunpack.c.l.b16 %v528
      %v696 = vunpack.c.l.b16 %v529
      %v697 = vunpack.c.l.b16 %v530
      %v698 = vunpack.c.l.b16 %v531
      %v699 = vunpack.c.l.b16 %v532
      %v700 = vunpack.c.l.b16 %v533
      %v701 = vunpack.c.l.b16 %v534
      %v702 = vunpack.c.l.b16 %v535
      %v703 = vunpack.c.l.b16 %v536
      %v704 = vunpack.c.l.b16 %v537
      %v705 = vunpack.c.l.b16 %v538
      %v706 = vunpack.c.l.b16 %v539
      %v707 = vunpack.c.l.b16 %v540
      %v708 = vunpack.c.l.b16 %v541
      %v709 = vunpack.c.l.b16 %v542
      %v710 = vunpack.c.l.b16 %v543
      %v711 = vunpack.c.l.b16 %v544
      %v712 = vunpack.c.l.b16 %v545
      %v713 = vunpack.c.l.b16 %v546
      %v714 = vunpack.c.l.b16 %v547
      %v715 = vunpack.c.l.b16 %v548
      %v716 = vunpack.c.l.b16 %v549
      %v717 = vunpack.c.l.b16 %v550
      %v718 = vunpack.c.l.b16 %v551
      %v719 = vunpack.c.l.b16 %v552
      %v720 = vunpack.c.l.b16 %v553
      %v721 = vunpack.c.l.b16 %v554
      %v722 = vunpack.c.l.b16 %v555
      %v723 = vunpack.c.l.b16 %v556
      %v724 = vunpack.c.l.b16 %v557
      %v725 = vunpack.c.l.b16 %v558
      %v726 = vunpack.c.l.b16 %v559
      %v727 = vunpack.c.l.b16 %v560
      %v728 = vunpack.c.l.b16 %v561
      %v729 = vunpack.c.l.b16 %v562
      %v730 = vunpack.c.l.b16 %v563
      %v731 = vunpack.c.l.b16 %v564
      %v732 = vunpack.c.l.b16 %v565
      %v733 = vunpack.c.l.b16 %v566
      %v734 = vunpack.c.l.b16 %v567
      %v735 = vunpack.c.l.b16 %v568
      %v736 = vunpack.c.l.b16 %v569
      %v737 = vunpack.c.l.b16 %v570
      %v738 = vunpack.c.l.b16 %v571
      %v739 = vunpack.c.l.b16 %v572
      %v740 = vunpack.c.l.b16 %v573
      %v741 = vunpack.c.l.b16 %v574
      %v742 = vunpack.c.l.b16 %v575
      %v743 = vunpack.c.l.b16 %v576
      %v744 = vunpack.c.l.b16 %v577
      %v745 = vunpack.c.l.b16 %v578
      %v746 = vunpack.c.l.b16 %v579
      %v747 = vunpack.c.l.b16 %v580
      %v748 = vunpack.c.l.b16 %v581
      %v749 = vunpack.c.l.b16 %v582
      %v750 = vunpack.c.l.b16 %v583
      %v751 = vunpack.c.l.b16 %v584
      %v752 = vunpack.c.l.b16 %v585
      %v753 = vunpack.c.l.b16 %v586
      %v754 = vunpack.c.l.b16 %v587
      %v755 = vpack.c.b16 %v676, %v675
      %v756 = vpack.c.b16 %v678, %v677
      %v757 = vpack.c.b16 %v680, %v679
      %v758 = vpack.c.b16 %v682, %v681
      %v759 = vpack.c.b16 %v684, %v683
      %v760 = vpack.c.b16 %v686, %v685
      %v761 = vpack.c.b16 %v688, %v687
      %v762 = vpack.c.b16 %v690, %v689
      %v763 = vpack.c.b16 %v692, %v691
      %v764 = vpack.c.b16 %v694, %v693
      %v765 = vpack.c.b16 %v696, %v695
      %v766 = vpack.c.b16 %v698, %v697
      %v767 = vpack.c.b16 %v700, %v699
      %v768 = vpack.c.b16 %v702, %v701
      %v769 = vpack.c.b16 %v704, %v703
      %v770 = vpack.c.b16 %v706, %v705
      %v771 = vpack.c.b16 %v708, %v707
      %v772 = vpack.c.b16 %v710, %v709
      %v773 = vpack.c.b16 %v712, %v711
      %v774 = vpack.c.b16 %v714, %v713
      %v775 = vpack.c.b16 %v716, %v715
      %v776 = vpack.c.b16 %v718, %v717
      %v777 = vpack.c.b16 %v720, %v719
      %v778 = vpack.c.b16 %v722, %v721
      %v779 = vpack.c.b16 %v724, %v723
      %v780 = vpack.c.b16 %v726, %v725
      %v781 = vpack.c.b16 %v728, %v727
      %v782 = vpack.c.b16 %v730, %v729
      %v783 = vpack.c.b16 %v732, %v731
      %v784 = vpack.c.b16 %v734, %v733
      %v785 = vpack.c.b16 %v736, %v735
      %v786 = vpack.c.b16 %v738, %v737
      %v787 = vpack.c.b16 %v740, %v739
      %v788 = vpack.c.b16 %v742, %v741
      %v789 = vpack.c.b16 %v744, %v743
      %v790 = vpack.c.b16 %v746, %v745
      %v791 = vpack.c.b16 %v748, %v747
      %v792 = vpack.c.b16 %v750, %v749
      %v793 = vpack.c.b16 %v752, %v751
      %v794 = vpack.c.b16 %v754, %v753
      %835 = vmatprep.subr.bf16.mxu0 0
      %836 = vmatpush1.bf16.msra.mxu0 %v755
      %837 = vmatprep.subr.bf16.mxu0 0
      %838 = vmatpush1.bf16.msra.mxu0 %v756
      %839 = vmatprep.subr.bf16.mxu0 0
      %840 = vmatpush1.bf16.msra.mxu0 %v757
      %841 = vmatprep.subr.bf16.mxu0 0
      %842 = vmatpush1.bf16.msra.mxu0 %v758
      %843 = vmatprep.subr.bf16.mxu0 0
      %844 = vmatpush1.bf16.msra.mxu0 %v759
      %845 = vmatprep.subr.bf16.mxu0 0
      %846 = vmatpush1.bf16.msra.mxu0 %v760
      %847 = vmatprep.subr.bf16.mxu0 0
      %848 = vmatpush1.bf16.msra.mxu0 %v761
      %849 = vmatprep.subr.bf16.mxu0 0
      %850 = vmatpush1.bf16.msra.mxu0 %v762
      %851 = vmatprep.subr.bf16.mxu0 0
      %852 = vmatpush1.bf16.msra.mxu0 %v763
      %853 = vmatprep.subr.bf16.mxu0 0
      %854 = vmatpush1.bf16.msra.mxu0 %v764
      %855 = vmatprep.subr.bf16.mxu0 0
      %856 = vmatpush1.bf16.msra.mxu0 %v765
      %857 = vmatprep.subr.bf16.mxu0 0
      %858 = vmatpush1.bf16.msra.mxu0 %v766
      %859 = vmatprep.subr.bf16.mxu0 0
      %860 = vmatpush1.bf16.msra.mxu0 %v767
      %861 = vmatprep.subr.bf16.mxu0 0
      %862 = vmatpush1.bf16.msra.mxu0 %v768
      %863 = vmatprep.subr.bf16.mxu0 0
      %864 = vmatpush1.bf16.msra.mxu0 %v769
      %865 = vmatprep.subr.bf16.mxu0 0
      %866 = vmatpush1.bf16.msra.mxu0 %v770
      %867 = vmatprep.mubr.bf16.mxu0 %v469
      %868 = vmatmul.mubr.bf16.gmra.mrb[0].mxu0 %v454
      %v869 = vpop.f32.mrb[0].mxu0
      %v870 = vadd.f32 %v593, %v869
      %v871 = vpop.f32.mrb[0].mxu0
      %v872 = vpop.f32.mrb[0].mxu0
      %v873 = vadd.f32 %v593, %v872
      %v874 = vpop.f32.mrb[0].mxu0
      %875 = vdwg.mxu0
      %876 = vmatprep.subr.bf16.mxu0 0
      %877 = vmatpush1.bf16.msra.mxu0 %v771
      %878 = vmatprep.subr.bf16.mxu0 0
      %879 = vmatpush1.bf16.msra.mxu0 %v772
      %880 = vmatprep.subr.bf16.mxu0 0
      %881 = vmatpush1.bf16.msra.mxu0 %v773
      %882 = vmatprep.subr.bf16.mxu0 0
      %883 = vmatpush1.bf16.msra.mxu0 %v774
      %884 = vmatprep.subr.bf16.mxu0 0
      %885 = vmatpush1.bf16.msra.mxu0 %v775
      %886 = vmatprep.subr.bf16.mxu0 0
      %887 = vmatpush1.bf16.msra.mxu0 %v776
      %888 = vmatprep.subr.bf16.mxu0 0
      %889 = vmatpush1.bf16.msra.mxu0 %v777
      %890 = vmatprep.subr.bf16.mxu0 0
      %891 = vmatpush1.bf16.msra.mxu0 %v778
      %892 = vmatprep.subr.bf16.mxu0 0
      %893 = vmatpush1.bf16.msra.mxu0 %v779
      %894 = vmatprep.subr.bf16.mxu0 0
      %895 = vmatpush1.bf16.msra.mxu0 %v780
      %896 = vmatprep.subr.bf16.mxu0 0
      %897 = vmatpush1.bf16.msra.mxu0 %v781
      %898 = vmatprep.subr.bf16.mxu0 0
      %899 = vmatpush1.bf16.msra.mxu0 %v782
      %900 = vmatprep.subr.bf16.mxu0 0
      %901 = vmatpush1.bf16.msra.mxu0 %v783
      %902 = vmatprep.subr.bf16.mxu0 0
      %903 = vmatpush1.bf16.msra.mxu0 %v784
      %904 = vmatprep.subr.bf16.mxu0 0
      %905 = vmatpush1.bf16.msra.mxu0 %v785
      %906 = vmatprep.subr.bf16.mxu0 0
      %907 = vmatpush1.bf16.msra.mxu0 %v786
      %908 = vmatprep.mubr.bf16.mxu0 %v501
      %909 = vmatmul.mubr.bf16.gmra.mrb[0].mxu0 %v488
      %v910 = vpop.f32.mrb[0].mxu0
      %v911 = vadd.f32 %v870, %v910
      %v912 = vpop.f32.mrb[0].mxu0
      %v913 = vpop.f32.mrb[0].mxu0
      %v914 = vadd.f32 %v873, %v913
      %v915 = vpop.f32.mrb[0].mxu0
      %916 = vdwg.mxu0
      %917 = vmatprep.subr.bf16.mxu0 0
      %918 = vmatpush1.bf16.msra.mxu0 %v787
      %919 = vmatprep.subr.bf16.mxu0 0
      %920 = vmatpush1.bf16.msra.mxu0 %v788
      %921 = vmatprep.subr.bf16.mxu0 0
      %922 = vmatpush1.bf16.msra.mxu0 %v789
      %923 = vmatprep.subr.bf16.mxu0 0
      %924 = vmatpush1.bf16.msra.mxu0 %v790
      %925 = vmatprep.subr.bf16.mxu0 0
      %926 = vmatpush1.bf16.msra.mxu0 %v791
      %927 = vmatprep.subr.bf16.mxu0 0
      %928 = vmatpush1.bf16.msra.mxu0 %v792
      %929 = vmatprep.subr.bf16.mxu0 0
      %930 = vmatpush1.bf16.msra.mxu0 %v793
      %931 = vmatprep.subr.bf16.mxu0 0
      %932 = vmatpush1.bf16.msra.mxu0 %v794
      %933 = vmatprep.subr.bf16.mxu0 0
      %934 = vmatpush1.bf16.msra.mxu0 0
      %935 = vmatprep.subr.bf16.mxu0 0
      %936 = vmatpush1.bf16.msra.mxu0 0
      %937 = vmatprep.subr.bf16.mxu0 0
      %938 = vmatpush1.bf16.msra.mxu0 0
      %939 = vmatprep.subr.bf16.mxu0 0
      %940 = vmatpush1.bf16.msra.mxu0 0
      %941 = vmatprep.subr.bf16.mxu0 0
      %942 = vmatpush1.bf16.msra.mxu0 0
      %943 = vmatprep.subr.bf16.mxu0 0
      %944 = vmatpush1.bf16.msra.mxu0 0
      %945 = vmatprep.subr.bf16.mxu0 0
      %946 = vmatpush1.bf16.msra.mxu0 0
      %947 = vmatprep.subr.bf16.mxu0 0
      %948 = vmatpush1.bf16.msra.mxu0 0
      %949 = vmatprep.mubr.bf16.mxu0 0
      %950 = vmatmul.mubr.bf16.gmra.mrb[0].mxu0 %v506
      %v951 = vpop.f32.mrb[0].mxu0
      %v952 = vadd.f32 %v911, %v951
      %v953 = vpop.f32.mrb[0].mxu0
      %v954 = vpop.f32.mrb[0].mxu0
      %v955 = vadd.f32 %v914, %v954
      %v956 = vpop.f32.mrb[0].mxu0
      %957 = vdwg.mxu0
      %v958 = vmul.f32 %v952, 0.5
      %v959 = vmul.f32 %v955, 0.5
      %v960 = vmul.f32 %v952, 0.044715
      %v961 = vmul.f32 %v955, 0.044715
      %v962 = vmul.f32 %v960, %v952
      %v963 = vmul.f32 %v961, %v955
      %v964 = vmul.f32 %v962, %v952
      %v965 = vmul.f32 %v963, %v955
      %v966 = vadd.f32 %v952, %v964
      %v967 = vadd.f32 %v955, %v965
      %v968 = vmul.f32 %v966, 0.7978846
      %v969 = vmul.f32 %v967, 0.7978846
      %v970 = vtanh.pop %v968
      %v971 = vtanh.pop %v969
      %v972 = vadd.f32 %v970, 1.0
      %v973 = vadd.f32 %v971, 1.0
      %v974 = vmul.f32 %v958, %v972
      %v975 = vmul.f32 %v959, %v973
      %v976 = vpack.c.bf16 %v975, %v974
      %v978 = vunpack.c.l.b16 %v976
      %v979 = vunpack.c.h.b16 %v976
      %v980 = vpack.c.b16 %v978, %v978
      %v981 = vpack.c.b16 %v979, %v979
      %984 = vst [vmem:[%s443] sm:$0xf] %v980
      %985 = vst [vmem:[%s443 + $0x4] sm:$0xf] %v981
      %s986 = smul.u32 2, %s24
      %p987 = scmp.lt.s32.totalorder %s22, 1
      %s988 = scalar_select %p987, %s22, 1
      %p989 = scmp.lt.s32.totalorder %s986, 1
      %s990 = scalar_select %p989, %s986, 1
      %p991 = scmp.lt.s32.totalorder %s23, 0
      %s992 = scalar_select %p991, %s23, 0
      %s993 = sadd.s32 %s992, %s990
      %s994 = smul.addr %s988, 2
      %s995 = sadd.s32 %s993, %s994
      %s996 = smul.addr %s995, 4
      %s997 = scalar_lea.vmem %s6, %s996
      // Predicated region
      $region45: #{mel_encoder_forward.4} parent=43 // pred_check
        %p998 = pneg %p222
      $region46: #{mel_encoder_forward.4} parent=43 // pred_check_branch
        %1000 = sbr.rel (%p998) target = $region48
      $region47: #{mel_encoder_forward.4} parent=43 // pred_region
        %s1001 = smul.u32 2, %s24
      $region48: #{mel_encoder_forward.4} parent=43 // pred_fallthru
        _
    $region44: #{mel_encoder_forward.4} parent=5 // pred_fallthru
      _
    %p1002 = scmp.le.s32.totalorder 2, %s12
    // Predicated region
    $region49: #{mel_encoder_forward.4} parent=5 // pred_check
      %p1003 = pneg %p1002
    $region50: #{mel_encoder_forward.4} parent=5 // pred_check_branch
      %1005 = sbr.rel (%p1003) target = $region52
    $region51: #{mel_encoder_forward.4} parent=5 // pred_region
      %s1006 = ssub.s32 %s12, 2
      // Predicated region
      $region53: #{mel_encoder_forward.4} parent=51 // pred_check
        %p1007 = pneg %p228
      $region54: #{mel_encoder_forward.4} parent=51 // pred_check_branch
        %1009 = sbr.rel (%p1007) target = $region56
      $region55: #{mel_encoder_forward.4} parent=51 // pred_region
        %s1010 = smul.u32 2, %s27
        %p1011 = scmp.lt.s32.totalorder %s25, 1
        %s1012 = scalar_select %p1011, %s25, 1
        %p1013 = scmp.lt.s32.totalorder %s1010, 1
        %s1014 = scalar_select %p1013, %s1010, 1
        %p1015 = scmp.lt.s32.totalorder %s26, 0
        %s1016 = scalar_select %p1015, %s26, 0
        %s1017 = sadd.s32 %s1016, %s1014
        %s1018 = smul.addr %s1012, 2
        %s1019 = sadd.s32 %s1017, %s1018
        %s1020 = smul.addr %s1019, 4
        %s1021 = scalar_lea.vmem %s6, %s1020
      $region56: #{mel_encoder_forward.4} parent=51 // pred_fallthru
        _
    $region52: #{mel_encoder_forward.4} parent=5 // pred_fallthru
      _
  $region6: #{mel_encoder_forward.4} parent=0 // loop_footer
    %s16 = sadd.s32 1, %s12
  $region7: #{mel_encoder_forward.4} parent=0 // loop_footer_branch
    %11 = sbr.rel target = $region3
  $region8: #{mel_encoder_forward.4} parent=0 // loop_exit
    _

// kernel: mel_encoder_forward.3
$region0: #{mel_encoder_forward.3}
  #allocation0 [shape = 'u32[]', space=smem, size = 0x4, offset = 0x4, fixed_abs, tag = 'smem constant byte address 0x4 - core index']
  #allocation1 [shape = 'u32[144,128]{1,0:T(1,128)}', space=vmem, size = 0x12000, scoped, tag = 'internal scratch']
  %s0 = inlined_call_operand.vmem [shape: bf16[2,32,128], index: 0, kind: input, shape index: {}]
  %s1 = inlined_call_operand.vmem [shape: bf16[2,16,128], index: 1, kind: input, shape index: {}]
  %s2 = inlined_call_operand.vmem [shape: bf16[2,32,128], index: 2, kind: input, shape index: {}]
  %s3 = inlined_call_operand.vmem [shape: bf16[2,16,128], index: 3, kind: input, shape index: {}]
  %s4 = inlined_call_operand.vmem [shape: bf16[896,128], index: 4, kind: input, shape index: {}]
  %s5 = inlined_call_operand.vmem [shape: f32[1,128], index: 5, kind: input, shape index: {}]
  %s6 = inlined_call_operand.vmem [shape: bf16[2,32,128], index: 6, kind: output, shape index: {}]
  %s7 = sld [smem:[#allocation0]]
  $region57: #{mel_encoder_forward.3} parent=0
    _
  %s9 = ssub.s32 1, %s7
  %s10 = scalar_select 0, %s9, %s7
  loop: start=0, step=1, limit=4
  $region2: #{mel_encoder_forward.3} parent=0 // loop_pre_header
    _
  $region3: #{mel_encoder_forward.3} parent=0 // loop_header
    %s12 = sphi 0, %s16
    %p13 = scmp.ge.s32.totalorder %s12, 4
    %s19 = sphi 0, %s38
    %s20 = sphi 0, %s34
    %s21 = sphi 0, %s30
    %s22 = sphi 0, %s19
    %s23 = sphi 0, %s20
    %s24 = sphi 0, %s21
    %s25 = sphi 0, %s22
    %s26 = sphi 0, %s23
    %s27 = sphi 0, %s24
    %s43 = sphi 0, %s45
    %s46 = sphi 0, %s43
    %s47 = sphi 0, %s46
    %s63 = sphi 0, %s47
    %s71 = sphi 0, %s73
    %s74 = sphi 0, %s71
    %s75 = sphi 0, %s74
    %s91 = sphi 0, %s75
    %s99 = sphi 0, %s101
    %s102 = sphi 0, %s99
    %s103 = sphi 0, %s102
    %s119 = sphi 0, %s103
    %s127 = sphi 0, %s129
    %s130 = sphi 0, %s127
    %s131 = sphi 0, %s130
    %s147 = sphi 0, %s131
    %s153 = sphi 0, %s155
    %s156 = sphi 0, %s153
    %s157 = sphi 0, %s156
    %s173 = sphi 0, %s157
    %s179 = sphi 0, %s181
    %s182 = sphi 0, %s179
    %s183 = sphi 0, %s182
    %s199 = sphi 0, %s183
    %s209 = sphi 0, %s211
    %s212 = sphi 0, %s209
    %s213 = sphi 0, %s212
    %s229 = sphi 0, %s213
  $region4: #{mel_encoder_forward.3} parent=0 // loop_header_branch
    %15 = sbr.rel (%p13) target = $region8
  $region5: #{mel_encoder_forward.3} parent=0 // loop_body
    %s17 = ssub.s32 %s12, 1
    %s18 = ssub.s32 %s12, 2
    %s28 = sadd.s32 1, %s21
    %p29 = scmp.ge.s32.totalorder %s28, 1
    %s30 = scalar_select %p29, 0, %s28
    %s31 = sadd.s32 1, %s20
    %s32 = scalar_select %p29, %s31, %s20
    %p33 = scmp.ge.s32.totalorder %s32, 1
    %s34 = scalar_select %p33, 0, %s32
    %s35 = sadd.s32 1, %s19
    %s36 = scalar_select %p33, %s35, %s19
    %p37 = scmp.ge.s32.totalorder %s36, 2
    %s38 = scalar_select %p37, 0, %s36
    %s39 = ssub.s32 %s19, %s38
    %s40 = ssub.s32 %s21, %s30
    %s41 = sor.u32 %s39, %s40
    %p42 = scmp.eq.s32.totalorder %s41, 0
    %s44 = sadd.s32 %s43, 1
    %s45 = scalar_select %p42, %s43, %s44
    %p48 = pneg %p42
    %p49 = scmp.eq.s32.totalorder %s12, 1
    %p50 = por %p48, %p49
    %p51 = scmp.ne.s32.totalorder %s43, %s46
    %p52 = scmp.eq.s32.totalorder %s12, 0
    %p53 = por %p51, %p52
    %p54 = scmp.ne.s32.totalorder %s43, %s46
    %p55 = scmp.eq.s32.totalorder %s17, 1
    %p56 = por %p54, %p55
    %p57 = scmp.ne.s32.totalorder %s46, %s47
    %p58 = scmp.eq.s32.totalorder %s17, 0
    %p59 = por %p57, %p58
    %p60 = scmp.ne.s32.totalorder %s46, %s47
    %p61 = scmp.eq.s32.totalorder %s18, 1
    %p62 = por %p60, %p61
    %p64 = scmp.ne.s32.totalorder %s47, %s63
    %p65 = scmp.eq.s32.totalorder %s18, 0
    %p66 = por %p64, %p65
    %s67 = ssub.s32 %s19, %s38
    %s68 = ssub.s32 %s21, %s30
    %s69 = sor.u32 %s67, %s68
    %p70 = scmp.eq.s32.totalorder %s69, 0
    %s72 = sadd.s32 %s71, 1
    %s73 = scalar_select %p70, %s71, %s72
    %p76 = pneg %p70
    %p77 = scmp.eq.s32.totalorder %s12, 1
    %p78 = por %p76, %p77
    %p79 = scmp.ne.s32.totalorder %s71, %s74
    %p80 = scmp.eq.s32.totalorder %s12, 0
    %p81 = por %p79, %p80
    %p82 = scmp.ne.s32.totalorder %s71, %s74
    %p83 = scmp.eq.s32.totalorder %s17, 1
    %p84 = por %p82, %p83
    %p85 = scmp.ne.s32.totalorder %s74, %s75
    %p86 = scmp.eq.s32.totalorder %s17, 0
    %p87 = por %p85, %p86
    %p88 = scmp.ne.s32.totalorder %s74, %s75
    %p89 = scmp.eq.s32.totalorder %s18, 1
    %p90 = por %p88, %p89
    %p92 = scmp.ne.s32.totalorder %s75, %s91
    %p93 = scmp.eq.s32.totalorder %s18, 0
    %p94 = por %p92, %p93
    %s95 = ssub.s32 %s19, %s38
    %s96 = ssub.s32 %s21, %s30
    %s97 = sor.u32 %s95, %s96
    %p98 = scmp.eq.s32.totalorder %s97, 0
    %s100 = sadd.s32 %s99, 1
    %s101 = scalar_select %p98, %s99, %s100
    %p104 = pneg %p98
    %p105 = scmp.eq.s32.totalorder %s12, 1
    %p106 = por %p104, %p105
    %p107 = scmp.ne.s32.totalorder %s99, %s102
    %p108 = scmp.eq.s32.totalorder %s12, 0
    %p109 = por %p107, %p108
    %p110 = scmp.ne.s32.totalorder %s99, %s102
    %p111 = scmp.eq.s32.totalorder %s17, 1
    %p112 = por %p110, %p111
    %p113 = scmp.ne.s32.totalorder %s102, %s103
    %p114 = scmp.eq.s32.totalorder %s17, 0
    %p115 = por %p113, %p114
    %p116 = scmp.ne.s32.totalorder %s102, %s103
    %p117 = scmp.eq.s32.totalorder %s18, 1
    %p118 = por %p116, %p117
    %p120 = scmp.ne.s32.totalorder %s103, %s119
    %p121 = scmp.eq.s32.totalorder %s18, 0
    %p122 = por %p120, %p121
    %s123 = ssub.s32 %s19, %s38
    %s124 = ssub.s32 %s21, %s30
    %s125 = sor.u32 %s123, %s124
    %p126 = scmp.eq.s32.totalorder %s125, 0
    %s128 = sadd.s32 %s127, 1
    %s129 = scalar_select %p126, %s127, %s128
    %p132 = pneg %p126
    %p133 = scmp.eq.s32.totalorder %s12, 1
    %p134 = por %p132, %p133
    %p135 = scmp.ne.s32.totalorder %s127, %s130
    %p136 = scmp.eq.s32.totalorder %s12, 0
    %p137 = por %p135, %p136
    %p138 = scmp.ne.s32.totalorder %s127, %s130
    %p139 = scmp.eq.s32.totalorder %s17, 1
    %p140 = por %p138, %p139
    %p141 = scmp.ne.s32.totalorder %s130, %s131
    %p142 = scmp.eq.s32.totalorder %s17, 0
    %p143 = por %p141, %p142
    %p144 = scmp.ne.s32.totalorder %s130, %s131
    %p145 = scmp.eq.s32.totalorder %s18, 1
    %p146 = por %p144, %p145
    %p148 = scmp.ne.s32.totalorder %s131, %s147
    %p149 = scmp.eq.s32.totalorder %s18, 0
    %p150 = por %p148, %p149
    %s151 = ssub.s32 %s20, %s34
    %p152 = scmp.eq.s32.totalorder %s151, 0
    %s154 = sadd.s32 %s153, 1
    %s155 = scalar_select %p152, %s153, %s154
    %p158 = pneg %p152
    %p159 = scmp.eq.s32.totalorder %s12, 1
    %p160 = por %p158, %p159
    %p161 = scmp.ne.s32.totalorder %s153, %s156
    %p162 = scmp.eq.s32.totalorder %s12, 0
    %p163 = por %p161, %p162
    %p164 = scmp.ne.s32.totalorder %s153, %s156
    %p165 = scmp.eq.s32.totalorder %s17, 1
    %p166 = por %p164, %p165
    %p167 = scmp.ne.s32.totalorder %s156, %s157
    %p168 = scmp.eq.s32.totalorder %s17, 0
    %p169 = por %p167, %p168
    %p170 = scmp.ne.s32.totalorder %s156, %s157
    %p171 = scmp.eq.s32.totalorder %s18, 1
    %p172 = por %p170, %p171
    %p174 = scmp.ne.s32.totalorder %s157, %s173
    %p175 = scmp.eq.s32.totalorder %s18, 0
    %p176 = por %p174, %p175
    %s177 = ssub.s32 %s20, %s34
    %p178 = scmp.eq.s32.totalorder %s177, 0
    %s180 = sadd.s32 %s179, 1
    %s181 = scalar_select %p178, %s179, %s180
    %p184 = pneg %p178
    %p185 = scmp.eq.s32.totalorder %s12, 1
    %p186 = por %p184, %p185
    %p187 = scmp.ne.s32.totalorder %s179, %s182
    %p188 = scmp.eq.s32.totalorder %s12, 0
    %p189 = por %p187, %p188
    %p190 = scmp.ne.s32.totalorder %s179, %s182
    %p191 = scmp.eq.s32.totalorder %s17, 1
    %p192 = por %p190, %p191
    %p193 = scmp.ne.s32.totalorder %s182, %s183
    %p194 = scmp.eq.s32.totalorder %s17, 0
    %p195 = por %p193, %p194
    %p196 = scmp.ne.s32.totalorder %s182, %s183
    %p197 = scmp.eq.s32.totalorder %s18, 1
    %p198 = por %p196, %p197
    %p200 = scmp.ne.s32.totalorder %s183, %s199
    %p201 = scmp.eq.s32.totalorder %s18, 0
    %p202 = por %p200, %p201
    %s203 = ssub.s32 %s19, %s38
    %s204 = ssub.s32 %s21, %s30
    %s205 = sor.u32 %s203, %s204
    %s206 = ssub.s32 %s20, %s34
    %s207 = sor.u32 %s205, %s206
    %p208 = scmp.eq.s32.totalorder %s207, 0
    %s210 = sadd.s32 %s209, 1
    %s211 = scalar_select %p208, %s209, %s210
    %p214 = pneg %p208
    %p215 = scmp.eq.s32.totalorder %s12, 1
    %p216 = por %p214, %p215
    %p217 = scmp.ne.s32.totalorder %s209, %s212
    %p218 = scmp.eq.s32.totalorder %s12, 0
    %p219 = por %p217, %p218
    %p220 = scmp.ne.s32.totalorder %s209, %s212
    %p221 = scmp.eq.s32.totalorder %s17, 1
    %p222 = por %p220, %p221
    %p223 = scmp.ne.s32.totalorder %s212, %s213
    %p224 = scmp.eq.s32.totalorder %s17, 0
    %p225 = por %p223, %p224
    %p226 = scmp.ne.s32.totalorder %s212, %s213
    %p227 = scmp.eq.s32.totalorder %s18, 1
    %p228 = por %p226, %p227
    %p230 = scmp.ne.s32.totalorder %s213, %s229
    %p231 = scmp.eq.s32.totalorder %s18, 0
    %p232 = por %p230, %p231
    %p233 = scmp.le.s32.totalorder 1, %s12
    %p234 = scmp.lt.s32.totalorder %s12, 3
    %p235 = pnand %p233, %p234
    %p236 = pneg %p235
    // Predicated region
    $region9: #{mel_encoder_forward.3} parent=5 // pred_check
      _
    $region10: #{mel_encoder_forward.3} parent=5 // pred_check_branch
      %238 = sbr.rel (%p235) target = $region12
    $region11: #{mel_encoder_forward.3} parent=5 // pred_region
      %s239 = ssub.s32 %s12, 1
      // Predicated region
      $region13: #{mel_encoder_forward.3} parent=11 // pred_check
        %p240 = pneg %p169
      $region14: #{mel_encoder_forward.3} parent=11 // pred_check_branch
        %242 = sbr.rel (%p240) target = $region16
      $region15: #{mel_encoder_forward.3} parent=11 // pred_region
        %p243 = scmp.lt.s32.totalorder %s23, 0
        %s244 = scalar_select %p243, %s23, 0
        %s245 = smul.addr %s244, 4
        %s246 = scalar_lea.vmem %s4, %s245
      $region16: #{mel_encoder_forward.3} parent=11 // pred_fallthru
        _
      // Predicated region
      $region17: #{mel_encoder_forward.3} parent=11 // pred_check
        %p247 = pneg %p195
      $region18: #{mel_encoder_forward.3} parent=11 // pred_check_branch
        %249 = sbr.rel (%p247) target = $region20
      $region19: #{mel_encoder_forward.3} parent=11 // pred_region
        %p250 = scmp.lt.s32.totalorder %s23, 0
        %s251 = scalar_select %p250, %s23, 0
        %s252 = scalar_lea.vmem %s5, %s251
      $region20: #{mel_encoder_forward.3} parent=11 // pred_fallthru
        _
    $region12: #{mel_encoder_forward.3} parent=5 // pred_fallthru
      _
    %p253 = scmp.lt.s32.totalorder %s12, 2
    // Predicated region
    $region21: #{mel_encoder_forward.3} parent=5 // pred_check
      %p254 = pneg %p253
    $region22: #{mel_encoder_forward.3} parent=5 // pred_check_branch
      %256 = sbr.rel (%p254) target = $region24
    $region23: #{mel_encoder_forward.3} parent=5 // pred_region
      // Predicated region
      $region25: #{mel_encoder_forward.3} parent=23 // pred_check
        %p257 = pneg %p53
      $region26: #{mel_encoder_forward.3} parent=23 // pred_check_branch
        %259 = sbr.rel (%p257) target = $region28
      $region27: #{mel_encoder_forward.3} parent=23 // pred_region
        %s260 = smul.u32 4, %s21
        %p261 = scmp.lt.s32.totalorder %s19, 1
        %s262 = scalar_select %p261, %s19, 1
        %p263 = scmp.lt.s32.totalorder %s260, 3
        %s264 = scalar_select %p263, %s260, 3
        %s265 = smul.addr %s262, 4
        %s266 = sadd.s32 %s264, %s265
        %s267 = smul.addr %s266, 4
        %s268 = scalar_lea.vmem %s0, %s267
        %s269 = smul.u32 4, %s21
      $region28: #{mel_encoder_forward.3} parent=23 // pred_fallthru
        _
      // Predicated region
      $region29: #{mel_encoder_forward.3} parent=23 // pred_check
        %p270 = pneg %p81
      $region30: #{mel_encoder_forward.3} parent=23 // pred_check_branch
        %272 = sbr.rel (%p270) target = $region32
      $region31: #{mel_encoder_forward.3} parent=23 // pred_region
        %s273 = smul.u32 2, %s21
        %p274 = scmp.lt.s32.totalorder %s19, 1
        %s275 = scalar_select %p274, %s19, 1
        %p276 = scmp.lt.s32.totalorder %s273, 1
        %s277 = scalar_select %p276, %s273, 1
        %s278 = smul.addr %s275, 2
        %s279 = sadd.s32 %s277, %s278
        %s280 = smul.addr %s279, 4
        %s281 = scalar_lea.vmem %s1, %s280
        %s282 = smul.u32 2, %s21
      $region32: #{mel_encoder_forward.3} parent=23 // pred_fallthru
        _
      // Predicated region
      $region33: #{mel_encoder_forward.3} parent=23 // pred_check
        %p283 = pneg %p109
      $region34: #{mel_encoder_forward.3} parent=23 // pred_check_branch
        %285 = sbr.rel (%p283) target = $region36
      $region35: #{mel_encoder_forward.3} parent=23 // pred_region
        %s286 = smul.u32 4, %s21
        %p287 = scmp.lt.s32.totalorder %s19, 1
        %s288 = scalar_select %p287, %s19, 1
        %p289 = scmp.lt.s32.totalorder %s286, 3
        %s290 = scalar_select %p289, %s286, 3
        %s291 = smul.addr %s288, 4
        %s292 = sadd.s32 %s290, %s291
        %s293 = smul.addr %s292, 4
        %s294 = scalar_lea.vmem %s2, %s293
        %s295 = smul.u32 4, %s21
      $region36: #{mel_encoder_forward.3} parent=23 // pred_fallthru
        _
      // Predicated region
      $region37: #{mel_encoder_forward.3} parent=23 // pred_check
        %p296 = pneg %p137
      $region38: #{mel_encoder_forward.3} parent=23 // pred_check_branch
        %298 = sbr.rel (%p296) target = $region40
      $region39: #{mel_encoder_forward.3} parent=23 // pred_region
        %s299 = smul.u32 2, %s21
        %p300 = scmp.lt.s32.totalorder %s19, 1
        %s301 = scalar_select %p300, %s19, 1
        %p302 = scmp.lt.s32.totalorder %s299, 1
        %s303 = scalar_select %p302, %s299, 1
        %s304 = smul.addr %s301, 2
        %s305 = sadd.s32 %s303, %s304
        %s306 = smul.addr %s305, 4
        %s307 = scalar_lea.vmem %s3, %s306
        %s308 = smul.u32 2, %s21
      $region40: #{mel_encoder_forward.3} parent=23 // pred_fallthru
        _
    $region24: #{mel_encoder_forward.3} parent=5 // pred_fallthru
      _
    %p309 = scmp.le.s32.totalorder 1, %s12
    %p310 = scmp.lt.s32.totalorder %s12, 3
    %p311 = pnand %p309, %p310
    %p312 = pneg %p311
    // Predicated region
    $region41: #{mel_encoder_forward.3} parent=5 // pred_check
      _
    $region42: #{mel_encoder_forward.3} parent=5 // pred_check_branch
      %314 = sbr.rel (%p311) target = $region44
    $region43: #{mel_encoder_forward.3} parent=5 // pred_region
      %s315 = ssub.s32 %s12, 1
      %s316 = smul.u32 4, %s24
      %p317 = scmp.lt.s32.totalorder %s22, 1
      %s318 = scalar_select %p317, %s22, 1
      %p319 = scmp.lt.s32.totalorder %s316, 3
      %s320 = scalar_select %p319, %s316, 3
      %s321 = smul.addr %s318, 4
      %s322 = sadd.s32 %s320, %s321
      %s323 = smul.addr %s322, 4
      %s324 = scalar_lea.vmem %s0, %s323
      %p325 = pneg %p59
      %p326 = pneg %p56
      %s327 = smul.u32 2, %s24
      %p328 = scmp.lt.s32.totalorder %s22, 1
      %s329 = scalar_select %p328, %s22, 1
      %p330 = scmp.lt.s32.totalorder %s327, 1
      %s331 = scalar_select %p330, %s327, 1
      %s332 = smul.addr %s329, 2
      %s333 = sadd.s32 %s331, %s332
      %s334 = smul.addr %s333, 4
      %s335 = scalar_lea.vmem %s1, %s334
      %p336 = pneg %p87
      %p337 = pneg %p84
      %s338 = smul.u32 4, %s24
      %p339 = scmp.lt.s32.totalorder %s22, 1
      %s340 = scalar_select %p339, %s22, 1
      %p341 = scmp.lt.s32.totalorder %s338, 3
      %s342 = scalar_select %p341, %s338, 3
      %s343 = smul.addr %s340, 4
      %s344 = sadd.s32 %s342, %s343
      %s345 = smul.addr %s344, 4
      %s346 = scalar_lea.vmem %s2, %s345
      %p347 = pneg %p115
      %p348 = pneg %p112
      %s349 = smul.u32 2, %s24
      %p350 = scmp.lt.s32.totalorder %s22, 1
      %s351 = scalar_select %p350, %s22, 1
      %p352 = scmp.lt.s32.totalorder %s349, 1
      %s353 = scalar_select %p352, %s349, 1
      %s354 = smul.addr %s351, 2
      %s355 = sadd.s32 %s353, %s354
      %s356 = smul.addr %s355, 4
      %s357 = scalar_lea.vmem %s3, %s356
      %p358 = pneg %p143
      %p359 = pneg %p140
      %p360 = scmp.lt.s32.totalorder %s23, 0
      %s361 = scalar_select %p360, %s23, 0
      %s362 = smul.addr %s361, 4
      %s363 = scalar_lea.vmem %s4, %s362
      %p364 = pneg %p169
      %p365 = pneg %p166
      %p366 = scmp.lt.s32.totalorder %s23, 0
      %s367 = scalar_select %p366, %s23, 0
      %s368 = scalar_lea.vmem %s5, %s367
      %p369 = pneg %p195
      %p370 = pneg %p192
      %p371 = pneg %p225
      %p372 = pneg %p222
      %s373 = smul.u32 4, %s24
      %p374 = scmp.lt.s32.totalorder %s22, 1
      %s375 = scalar_select %p374, %s22, 1
      %p376 = scmp.lt.s32.totalorder %s373, 3
      %s377 = scalar_select %p376, %s373, 3
      %p378 = scmp.lt.s32.totalorder %s23, 0
      %s379 = scalar_select %p378, %s23, 0
      %s380 = sadd.s32 %s379, %s377
      %s381 = smul.addr %s375, 4
      %s382 = sadd.s32 %s380, %s381
      %s383 = smul.addr %s382, 4
      %s384 = scalar_lea.vmem %s6, %s383
      %s385 = smul.u32 4, %s24
      %p386 = scmp.lt.s32.totalorder %s22, 1
      %s387 = scalar_select %p386, %s22, 1
      %p388 = scmp.lt.s32.totalorder %s385, 3
      %s389 = scalar_select %p388, %s385, 3
      %s390 = smul.addr %s387, 4
      %s391 = sadd.s32 %s389, %s390
      %s392 = smul.addr %s391, 4
      %s393 = scalar_lea.vmem %s0, %s392
      %s394 = smul.u32 4, %s24
      %s395 = smul.u32 2, %s24
      %p396 = scmp.lt.s32.totalorder %s22, 1
      %s397 = scalar_select %p396, %s22, 1
      %p398 = scmp.lt.s32.totalorder %s395, 1
      %s399 = scalar_select %p398, %s395, 1
      %s400 = smul.addr %s397, 2
      %s401 = sadd.s32 %s399, %s400
      %s402 = smul.addr %s401, 4
      %s403 = scalar_lea.vmem %s1, %s402
      %s404 = smul.u32 2, %s24
      %s405 = smul.u32 4, %s24
      %p406 = scmp.lt.s32.totalorder %s22, 1
      %s407 = scalar_select %p406, %s22, 1
      %p408 = scmp.lt.s32.totalorder %s405, 3
      %s409 = scalar_select %p408, %s405, 3
      %s410 = smul.addr %s407, 4
      %s411 = sadd.s32 %s409, %s410
      %s412 = smul.addr %s411, 4
      %s413 = scalar_lea.vmem %s2, %s412
      %s414 = smul.u32 4, %s24
      %s415 = smul.u32 2, %s24
      %p416 = scmp.lt.s32.totalorder %s22, 1
      %s417 = scalar_select %p416, %s22, 1
      %p418 = scmp.lt.s32.totalorder %s415, 1
      %s419 = scalar_select %p418, %s415, 1
      %s420 = smul.addr %s417, 2
      %s421 = sadd.s32 %s419, %s420
      %s422 = smul.addr %s421, 4
      %s423 = scalar_lea.vmem %s3, %s422
      %s424 = smul.u32 2, %s24
      %p425 = scmp.lt.s32.totalorder %s23, 0
      %s426 = scalar_select %p425, %s23, 0
      %s427 = smul.addr %s426, 4
      %s428 = scalar_lea.vmem %s4, %s427
      %p429 = scmp.lt.s32.totalorder %s23, 0
      %s430 = scalar_select %p429, %s23, 0
      %s431 = scalar_lea.vmem %s5, %s430
      %s432 = smul.u32 4, %s24
      %p433 = scmp.lt.s32.totalorder %s22, 1
      %s434 = scalar_select %p433, %s22, 1
      %p435 = scmp.lt.s32.totalorder %s432, 3
      %s436 = scalar_select %p435, %s432, 3
      %p437 = scmp.lt.s32.totalorder %s23, 0
      %s438 = scalar_select %p437, %s23, 0
      %s439 = sadd.s32 %s438, %s436
      %s440 = smul.addr %s434, 4
      %s441 = sadd.s32 %s439, %s440
      %s442 = smul.addr %s441, 4
      %s443 = scalar_lea.vmem %s6, %s442
      %s444 = smul.u32 4, %s24
      %v446 = vld [vmem:[%s393] sm:$0xf]
      %v447 = vld [vmem:[%s393 + $0x4] sm:$0xf]
      %v448 = vld [vmem:[%s393 + $0x8] sm:$0xf]
      %v449 = vld [vmem:[%s393 + $0xc] sm:$0xf]
      %v450 = vld [vmem:[%s403] sm:$0xf]
      %v451 = vld [vmem:[%s403 + $0x4] sm:$0xf]
      %v456 = vunpack.c.l.b16 %v446
      %v457 = vunpack.c.l.b16 %v447
      %v458 = vunpack.c.l.b16 %v448
      %v459 = vunpack.c.l.b16 %v449
      %v460 = vpack.c.b16 %v457, %v456
      %v461 = vpack.c.b16 %v459, %v458
      %v466 = vunpack.c.l.b16 %v450
      %v467 = vunpack.c.l.b16 %v451
      %v468 = vpack.c.b16 %v467, %v466
      %v469 = vld [vmem:[%s413] sm:$0xf]
      %v470 = vld [vmem:[%s413 + $0x4] sm:$0xf]
      %v471 = vld [vmem:[%s413 + $0x8] sm:$0xf]
      %v472 = vld [vmem:[%s413 + $0xc] sm:$0xf]
      %v473 = vld [vmem:[%s423] sm:$0xf]
      %v474 = vld [vmem:[%s423 + $0x4] sm:$0xf]
      %v479 = vunpack.c.l.b16 %v469
      %v480 = vunpack.c.l.b16 %v470
      %v481 = vunpack.c.l.b16 %v471
      %v482 = vunpack.c.l.b16 %v472
      %v483 = vpack.c.b16 %v480, %v479
      %v484 = vpack.c.b16 %v482, %v481
      %v489 = vunpack.c.l.b16 %v473
      %v490 = vunpack.c.l.b16 %v474
      %v491 = vpack.c.b16 %v490, %v489
      %vm492 = vsmask.f32 7424
      %v494 = vshrl.u32 %v460, 16
      %v496 = vshll.u32 %v460, 16
      %v498 = vrot.slane %v496, 1
      %v499 = vor.u32 %v494, %v498
      %v501 = vshll.u32 %v461, 16
      %v503 = vrot.slane %v501, 1
      %v504 = vsel %vm492, %v499, %v503
      %v505 = vshrl.u32 %v461, 16
      %v507 = vor.u32 %v505, %v503
      %v509 = vshll.u32 %v468, 16
      %v511 = vrot.slane %v509, 1
      %v512 = vsel %vm492, %v507, %v511
      %v516 = vshrl.u32 %v483, 16
      %v518 = vshll.u32 %v483, 16
      %v520 = vrot.slane %v518, 1
      %v521 = vor.u32 %v516, %v520
      %v523 = vshll.u32 %v484, 16
      %v525 = vrot.slane %v523, 1
      %v526 = vsel %vm492, %v521, %v525
      %v527 = vshrl.u32 %v484, 16
      %v529 = vor.u32 %v527, %v525
      %v531 = vshll.u32 %v491, 16
      %v533 = vrot.slane %v531, 1
      %v534 = vsel %vm492, %v529, %v533
      %vm537 = vcmask 1046528
      %v538 = vrot.slane %v460, 1
      %v539 = vrot.slane %v461, 1
      %v540 = vsel %vm537, %v538, %v539
      %v541 = vrot.slane %v468, 1
      %v542 = vsel %vm537, %v539, %v541
      %v545 = vrot.slane %v483, 1
      %v546 = vrot.slane %v484, 1
      %v547 = vsel %vm537, %v545, %v546
      %v548 = vrot.slane %v491, 1
      %v549 = vsel %vm537, %v546, %v548
      %vm552 = vsmask.f32 6400
      %v553 = vrot.slane %v494, 1
      %v554 = vrot.slane %v496, 2
      %v555 = vor.u32 %v553, %v554
      %v556 = vrot.slane %v505, 1
      %v557 = vrot.slane %v501, 2
      %v558 = vor.u32 %v556, %v557
      %v559 = vsel %vm552, %v555, %v558
      %v560 = vshrl.u32 %v468, 16
      %v562 = vrot.slane %v560, 1
      %v563 = vrot.slane %v509, 2
      %v564 = vor.u32 %v562, %v563
      %v565 = vsel %vm552, %v558, %v564
      %v568 = vld [vmem:[%s428] sm:$0xf]
      %v569 = vld [vmem:[%s428 + $0x4] sm:$0xf]
      %v570 = vld [vmem:[%s428 + $0x8] sm:$0xf]
      %v571 = vld [vmem:[%s428 + $0xc] sm:$0xf]
      %v572 = vld [vmem:[%s428 + $0x10] sm:$0xf]
      %v573 = vld [vmem:[%s428 + $0x14] sm:$0xf]
      %v574 = vld [vmem:[%s428 + $0x18] sm:$0xf]
      %v575 = vld [vmem:[%s428 + $0x1c] sm:$0xf]
      %v576 = vld [vmem:[%s428 + $0x20] sm:$0xf]
      %v577 = vld [vmem:[%s428 + $0x24] sm:$0xf]
      %v578 = vld [vmem:[%s428 + $0x28] sm:$0xf]
      %v579 = vld [vmem:[%s428 + $0x2c] sm:$0xf]
      %v580 = vld [vmem:[%s428 + $0x30] sm:$0xf]
      %v581 = vld [vmem:[%s428 + $0x34] sm:$0xf]
      %v582 = vld [vmem:[%s428 + $0x38] sm:$0xf]
      %v583 = vld [vmem:[%s428 + $0x3c] sm:$0xf]
      %v584 = vld [vmem:[%s428 + $0x40] sm:$0xf]
      %v585 = vld [vmem:[%s428 + $0x44] sm:$0xf]
      %v586 = vld [vmem:[%s428 + $0x48] sm:$0xf]
      %v587 = vld [vmem:[%s428 + $0x4c] sm:$0xf]
      %v588 = vld [vmem:[%s428 + $0x50] sm:$0xf]
      %v589 = vld [vmem:[%s428 + $0x54] sm:$0xf]
      %v590 = vld [vmem:[%s428 + $0x58] sm:$0xf]
      %v591 = vld [vmem:[%s428 + $0x5c] sm:$0xf]
      %v592 = vld [vmem:[%s428 + $0x60] sm:$0xf]
      %v593 = vld [vmem:[%s428 + $0x64] sm:$0xf]
      %v594 = vld [vmem:[%s428 + $0x68] sm:$0xf]
      %v595 = vld [vmem:[%s428 + $0x6c] sm:$0xf]
      %v596 = vld [vmem:[%s428 + $0x70] sm:$0xf]
      %v597 = vld [vmem:[%s428 + $0x74] sm:$0xf]
      %v598 = vld [vmem:[%s428 + $0x78] sm:$0xf]
      %v599 = vld [vmem:[%s428 + $0x7c] sm:$0xf]
      %v600 = vld [vmem:[%s428 + $0x80] sm:$0xf]
      %v601 = vld [vmem:[%s428 + $0x84] sm:$0xf]
      %v602 = vld [vmem:[%s428 + $0x88] sm:$0xf]
      %v603 = vld [vmem:[%s428 + $0x8c] sm:$0xf]
      %v604 = vld [vmem:[%s428 + $0x90] sm:$0xf]
      %v605 = vld [vmem:[%s428 + $0x94] sm:$0xf]
      %v606 = vld [vmem:[%s428 + $0x98] sm:$0xf]
      %v607 = vld [vmem:[%s428 + $0x9c] sm:$0xf]
      %v608 = vld [vmem:[%s428 + $0xa0] sm:$0xf]
      %v609 = vld [vmem:[%s428 + $0xa4] sm:$0xf]
      %v610 = vld [vmem:[%s428 + $0xa8] sm:$0xf]
      %v611 = vld [vmem:[%s428 + $0xac] sm:$0xf]
      %v612 = vld [vmem:[%s428 + $0xb0] sm:$0xf]
      %v613 = vld [vmem:[%s428 + $0xb4] sm:$0xf]
      %v614 = vld [vmem:[%s428 + $0xb8] sm:$0xf]
      %v615 = vld [vmem:[%s428 + $0xbc] sm:$0xf]
      %v616 = vld [vmem:[%s428 + $0xc0] sm:$0xf]
      %v617 = vld [vmem:[%s428 + $0xc4] sm:$0xf]
      %v618 = vld [vmem:[%s428 + $0xc8] sm:$0xf]
      %v619 = vld [vmem:[%s428 + $0xcc] sm:$0xf]
      %v620 = vld [vmem:[%s428 + $0xd0] sm:$0xf]
      %v621 = vld [vmem:[%s428 + $0xd4] sm:$0xf]
      %v622 = vld [vmem:[%s428 + $0xd8] sm:$0xf]
      %v623 = vld [vmem:[%s428 + $0xdc] sm:$0xf]
      %v624 = vld [vmem:[%s428 + $0xe0] sm:$0xf]
      %v625 = vld [vmem:[%s428 + $0xe4] sm:$0xf]
      %v626 = vld [vmem:[%s428 + $0xe8] sm:$0xf]
      %v627 = vld [vmem:[%s428 + $0xec] sm:$0xf]
      %v628 = vld [vmem:[%s428 + $0xf0] sm:$0xf]
      %v629 = vld [vmem:[%s428 + $0xf4] sm:$0xf]
      %v630 = vld [vmem:[%s428 + $0xf8] sm:$0xf]
      %v631 = vld [vmem:[%s428 + $0xfc] sm:$0xf]
      %v632 = vld [vmem:[%s428 + $0x100] sm:$0xf]
      %v633 = vld [vmem:[%s428 + $0x104] sm:$0xf]
      %v634 = vld [vmem:[%s428 + $0x108] sm:$0xf]
      %v635 = vld [vmem:[%s428 + $0x10c] sm:$0xf]
      %v636 = vld [vmem:[%s428 + $0x110] sm:$0xf]
      %v637 = vld [vmem:[%s428 + $0x114] sm:$0xf]
      %v638 = vld [vmem:[%s428 + $0x118] sm:$0xf]
      %v639 = vld [vmem:[%s428 + $0x11c] sm:$0xf]
      %v640 = vld [vmem:[%s428 + $0x120] sm:$0xf]
      %v641 = vld [vmem:[%s428 + $0x124] sm:$0xf]
      %v642 = vld [vmem:[%s428 + $0x128] sm:$0xf]
      %v643 = vld [vmem:[%s428 + $0x12c] sm:$0xf]
      %v644 = vld [vmem:[%s428 + $0x130] sm:$0xf]
      %v645 = vld [vmem:[%s428 + $0x134] sm:$0xf]
      %v646 = vld [vmem:[%s428 + $0x138] sm:$0xf]
      %v647 = vld [vmem:[%s428 + $0x13c] sm:$0xf]
      %v648 = vld [vmem:[%s428 + $0x140] sm:$0xf]
      %v649 = vld [vmem:[%s428 + $0x144] sm:$0xf]
      %v650 = vld [vmem:[%s428 + $0x148] sm:$0xf]
      %v651 = vld [vmem:[%s428 + $0x14c] sm:$0xf]
      %v652 = vld [vmem:[%s428 + $0x150] sm:$0xf]
      %v653 = vld [vmem:[%s428 + $0x154] sm:$0xf]
      %v654 = vld [vmem:[%s428 + $0x158] sm:$0xf]
      %v655 = vld [vmem:[%s428 + $0x15c] sm:$0xf]
      %v656 = vld [vmem:[%s428 + $0x160] sm:$0xf]
      %v657 = vld [vmem:[%s428 + $0x164] sm:$0xf]
      %v658 = vld [vmem:[%s428 + $0x168] sm:$0xf]
      %v659 = vld [vmem:[%s428 + $0x16c] sm:$0xf]
      %v660 = vld [vmem:[%s428 + $0x170] sm:$0xf]
      %v661 = vld [vmem:[%s428 + $0x174] sm:$0xf]
      %v662 = vld [vmem:[%s428 + $0x178] sm:$0xf]
      %v663 = vld [vmem:[%s428 + $0x17c] sm:$0xf]
      %v664 = vld [vmem:[%s428 + $0x180] sm:$0xf]
      %v665 = vld [vmem:[%s428 + $0x184] sm:$0xf]
      %v666 = vld [vmem:[%s428 + $0x188] sm:$0xf]
      %v667 = vld [vmem:[%s428 + $0x18c] sm:$0xf]
      %v668 = vld [vmem:[%s428 + $0x190] sm:$0xf]
      %v669 = vld [vmem:[%s428 + $0x194] sm:$0xf]
      %v670 = vld [vmem:[%s428 + $0x198] sm:$0xf]
      %v671 = vld [vmem:[%s428 + $0x19c] sm:$0xf]
      %v672 = vld [vmem:[%s428 + $0x1a0] sm:$0xf]
      %v673 = vld [vmem:[%s428 + $0x1a4] sm:$0xf]
      %v674 = vld [vmem:[%s428 + $0x1a8] sm:$0xf]
      %v675 = vld [vmem:[%s428 + $0x1ac] sm:$0xf]
      %v676 = vld [vmem:[%s428 + $0x1b0] sm:$0xf]
      %v677 = vld [vmem:[%s428 + $0x1b4] sm:$0xf]
      %v678 = vld [vmem:[%s428 + $0x1b8] sm:$0xf]
      %v679 = vld [vmem:[%s428 + $0x1bc] sm:$0xf]
      %v680 = vld [vmem:[%s431] sm:$0x1]
      %v682 = vlaneseq
      %v683 = vshrl.u32 %v682, 7
      %v684 = vsub.s32 0, %v683
      %v685 = vrot.slane %v680, %v684
      %v799 = vunpack.c.l.b16 %v568
      %v800 = vunpack.c.l.b16 %v569
      %v801 = vunpack.c.l.b16 %v570
      %v802 = vunpack.c.l.b16 %v571
      %v803 = vunpack.c.l.b16 %v572
      %v804 = vunpack.c.l.b16 %v573
      %v805 = vunpack.c.l.b16 %v574
      %v806 = vunpack.c.l.b16 %v575
      %v807 = vunpack.c.l.b16 %v576
      %v808 = vunpack.c.l.b16 %v577
      %v809 = vunpack.c.l.b16 %v578
      %v810 = vunpack.c.l.b16 %v579
      %v811 = vunpack.c.l.b16 %v580
      %v812 = vunpack.c.l.b16 %v581
      %v813 = vunpack.c.l.b16 %v582
      %v814 = vunpack.c.l.b16 %v583
      %v815 = vunpack.c.l.b16 %v584
      %v816 = vunpack.c.l.b16 %v585
      %v817 = vunpack.c.l.b16 %v586
      %v818 = vunpack.c.l.b16 %v587
      %v819 = vunpack.c.l.b16 %v588
      %v820 = vunpack.c.l.b16 %v589
      %v821 = vunpack.c.l.b16 %v590
      %v822 = vunpack.c.l.b16 %v591
      %v823 = vunpack.c.l.b16 %v592
      %v824 = vunpack.c.l.b16 %v593
      %v825 = vunpack.c.l.b16 %v594
      %v826 = vunpack.c.l.b16 %v595
      %v827 = vunpack.c.l.b16 %v596
      %v828 = vunpack.c.l.b16 %v597
      %v829 = vunpack.c.l.b16 %v598
      %v830 = vunpack.c.l.b16 %v599
      %v831 = vunpack.c.l.b16 %v600
      %v832 = vunpack.c.l.b16 %v601
      %v833 = vunpack.c.l.b16 %v602
      %v834 = vunpack.c.l.b16 %v603
      %v835 = vunpack.c.l.b16 %v604
      %v836 = vunpack.c.l.b16 %v605
      %v837 = vunpack.c.l.b16 %v606
      %v838 = vunpack.c.l.b16 %v607
      %v839 = vunpack.c.l.b16 %v608
      %v840 = vunpack.c.l.b16 %v609
      %v841 = vunpack.c.l.b16 %v610
      %v842 = vunpack.c.l.b16 %v611
      %v843 = vunpack.c.l.b16 %v612
      %v844 = vunpack.c.l.b16 %v613
      %v845 = vunpack.c.l.b16 %v614
      %v846 = vunpack.c.l.b16 %v615
      %v847 = vunpack.c.l.b16 %v616
      %v848 = vunpack.c.l.b16 %v617
      %v849 = vunpack.c.l.b16 %v618
      %v850 = vunpack.c.l.b16 %v619
      %v851 = vunpack.c.l.b16 %v620
      %v852 = vunpack.c.l.b16 %v621
      %v853 = vunpack.c.l.b16 %v622
      %v854 = vunpack.c.l.b16 %v623
      %v855 = vunpack.c.l.b16 %v624
      %v856 = vunpack.c.l.b16 %v625
      %v857 = vunpack.c.l.b16 %v626
      %v858 = vunpack.c.l.b16 %v627
      %v859 = vunpack.c.l.b16 %v628
      %v860 = vunpack.c.l.b16 %v629
      %v861 = vunpack.c.l.b16 %v630
      %v862 = vunpack.c.l.b16 %v631
      %v863 = vunpack.c.l.b16 %v632
      %v864 = vunpack.c.l.b16 %v633
      %v865 = vunpack.c.l.b16 %v634
      %v866 = vunpack.c.l.b16 %v635
      %v867 = vunpack.c.l.b16 %v636
      %v868 = vunpack.c.l.b16 %v637
      %v869 = vunpack.c.l.b16 %v638
      %v870 = vunpack.c.l.b16 %v639
      %v871 = vunpack.c.l.b16 %v640
      %v872 = vunpack.c.l.b16 %v641
      %v873 = vunpack.c.l.b16 %v642
      %v874 = vunpack.c.l.b16 %v643
      %v875 = vunpack.c.l.b16 %v644
      %v876 = vunpack.c.l.b16 %v645
      %v877 = vunpack.c.l.b16 %v646
      %v878 = vunpack.c.l.b16 %v647
      %v879 = vunpack.c.l.b16 %v648
      %v880 = vunpack.c.l.b16 %v649
      %v881 = vunpack.c.l.b16 %v650
      %v882 = vunpack.c.l.b16 %v651
      %v883 = vunpack.c.l.b16 %v652
      %v884 = vunpack.c.l.b16 %v653
      %v885 = vunpack.c.l.b16 %v654
      %v886 = vunpack.c.l.b16 %v655
      %v887 = vunpack.c.l.b16 %v656
      %v888 = vunpack.c.l.b16 %v657
      %v889 = vunpack.c.l.b16 %v658
      %v890 = vunpack.c.l.b16 %v659
      %v891 = vunpack.c.l.b16 %v660
      %v892 = vunpack.c.l.b16 %v661
      %v893 = vunpack.c.l.b16 %v662
      %v894 = vunpack.c.l.b16 %v663
      %v895 = vunpack.c.l.b16 %v664
      %v896 = vunpack.c.l.b16 %v665
      %v897 = vunpack.c.l.b16 %v666
      %v898 = vunpack.c.l.b16 %v667
      %v899 = vunpack.c.l.b16 %v668
      %v900 = vunpack.c.l.b16 %v669
      %v901 = vunpack.c.l.b16 %v670
      %v902 = vunpack.c.l.b16 %v671
      %v903 = vunpack.c.l.b16 %v672
      %v904 = vunpack.c.l.b16 %v673
      %v905 = vunpack.c.l.b16 %v674
      %v906 = vunpack.c.l.b16 %v675
      %v907 = vunpack.c.l.b16 %v676
      %v908 = vunpack.c.l.b16 %v677
      %v909 = vunpack.c.l.b16 %v678
      %v910 = vunpack.c.l.b16 %v679
      %v911 = vpack.c.b16 %v800, %v799
      %v912 = vpack.c.b16 %v802, %v801
      %v913 = vpack.c.b16 %v804, %v803
      %v914 = vpack.c.b16 %v806, %v805
      %v915 = vpack.c.b16 %v808, %v807
      %v916 = vpack.c.b16 %v810, %v809
      %v917 = vpack.c.b16 %v812, %v811
      %v918 = vpack.c.b16 %v814, %v813
      %v919 = vpack.c.b16 %v816, %v815
      %v920 = vpack.c.b16 %v818, %v817
      %v921 = vpack.c.b16 %v820, %v819
      %v922 = vpack.c.b16 %v822, %v821
      %v923 = vpack.c.b16 %v824, %v823
      %v924 = vpack.c.b16 %v826, %v825
      %v925 = vpack.c.b16 %v828, %v827
      %v926 = vpack.c.b16 %v830, %v829
      %v927 = vpack.c.b16 %v832, %v831
      %v928 = vpack.c.b16 %v834, %v833
      %v929 = vpack.c.b16 %v836, %v835
      %v930 = vpack.c.b16 %v838, %v837
      %v931 = vpack.c.b16 %v840, %v839
      %v932 = vpack.c.b16 %v842, %v841
      %v933 = vpack.c.b16 %v844, %v843
      %v934 = vpack.c.b16 %v846, %v845
      %v935 = vpack.c.b16 %v848, %v847
      %v936 = vpack.c.b16 %v850, %v849
      %v937 = vpack.c.b16 %v852, %v851
      %v938 = vpack.c.b16 %v854, %v853
      %v939 = vpack.c.b16 %v856, %v855
      %v940 = vpack.c.b16 %v858, %v857
      %v941 = vpack.c.b16 %v860, %v859
      %v942 = vpack.c.b16 %v862, %v861
      %v943 = vpack.c.b16 %v864, %v863
      %v944 = vpack.c.b16 %v866, %v865
      %v945 = vpack.c.b16 %v868, %v867
      %v946 = vpack.c.b16 %v870, %v869
      %v947 = vpack.c.b16 %v872, %v871
      %v948 = vpack.c.b16 %v874, %v873
      %v949 = vpack.c.b16 %v876, %v875
      %v950 = vpack.c.b16 %v878, %v877
      %v951 = vpack.c.b16 %v880, %v879
      %v952 = vpack.c.b16 %v882, %v881
      %v953 = vpack.c.b16 %v884, %v883
      %v954 = vpack.c.b16 %v886, %v885
      %v955 = vpack.c.b16 %v888, %v887
      %v956 = vpack.c.b16 %v890, %v889
      %v957 = vpack.c.b16 %v892, %v891
      %v958 = vpack.c.b16 %v894, %v893
      %v959 = vpack.c.b16 %v896, %v895
      %v960 = vpack.c.b16 %v898, %v897
      %v961 = vpack.c.b16 %v900, %v899
      %v962 = vpack.c.b16 %v902, %v901
      %v963 = vpack.c.b16 %v904, %v903
      %v964 = vpack.c.b16 %v906, %v905
      %v965 = vpack.c.b16 %v908, %v907
      %v966 = vpack.c.b16 %v910, %v909
      %1023 = vmatprep.subr.bf16.mxu0 0
      %1024 = vmatpush1.bf16.msra.mxu0 %v911
      %1025 = vmatprep.subr.bf16.mxu0 0
      %1026 = vmatpush1.bf16.msra.mxu0 %v912
      %1027 = vmatprep.subr.bf16.mxu0 0
      %1028 = vmatpush1.bf16.msra.mxu0 %v913
      %1029 = vmatprep.subr.bf16.mxu0 0
      %1030 = vmatpush1.bf16.msra.mxu0 %v914
      %1031 = vmatprep.subr.bf16.mxu0 0
      %1032 = vmatpush1.bf16.msra.mxu0 %v915
      %1033 = vmatprep.subr.bf16.mxu0 0
      %1034 = vmatpush1.bf16.msra.mxu0 %v916
      %1035 = vmatprep.subr.bf16.mxu0 0
      %1036 = vmatpush1.bf16.msra.mxu0 %v917
      %1037 = vmatprep.subr.bf16.mxu0 0
      %1038 = vmatpush1.bf16.msra.mxu0 %v918
      %1039 = vmatprep.subr.bf16.mxu0 0
      %1040 = vmatpush1.bf16.msra.mxu0 %v919
      %1041 = vmatprep.subr.bf16.mxu0 0
      %1042 = vmatpush1.bf16.msra.mxu0 %v920
      %1043 = vmatprep.subr.bf16.mxu0 0
      %1044 = vmatpush1.bf16.msra.mxu0 %v921
      %1045 = vmatprep.subr.bf16.mxu0 0
      %1046 = vmatpush1.bf16.msra.mxu0 %v922
      %1047 = vmatprep.subr.bf16.mxu0 0
      %1048 = vmatpush1.bf16.msra.mxu0 %v923
      %1049 = vmatprep.subr.bf16.mxu0 0
      %1050 = vmatpush1.bf16.msra.mxu0 %v924
      %1051 = vmatprep.subr.bf16.mxu0 0
      %1052 = vmatpush1.bf16.msra.mxu0 %v925
      %1053 = vmatprep.subr.bf16.mxu0 0
      %1054 = vmatpush1.bf16.msra.mxu0 %v926
      %1055 = vmatprep.mubr.bf16.mxu0 %v483
      %1056 = vmatmul.mubr.bf16.gmra.mrb[0].mxu0 %v460
      %v1057 = vpop.f32.mrb[0].mxu0
      %v1058 = vadd.f32 %v685, %v1057
      %v1059 = vpop.f32.mrb[0].mxu0
      %v1060 = vpop.f32.mrb[0].mxu0
      %v1061 = vadd.f32 %v685, %v1060
      %v1062 = vpop.f32.mrb[0].mxu0
      %1063 = vmatprep.mubr.bf16.mxu0 %v484
      %1064 = vmatmul.mubr.bf16.gmra.mrb[0].mxu0 %v461
      %v1065 = vpop.f32.mrb[0].mxu0
      %v1066 = vadd.f32 %v685, %v1065
      %v1067 = vpop.f32.mrb[0].mxu0
      %v1068 = vpop.f32.mrb[0].mxu0
      %v1069 = vadd.f32 %v685, %v1068
      %v1070 = vpop.f32.mrb[0].mxu0
      %1071 = vdwg.mxu0
      %1072 = vmatprep.subr.bf16.mxu0 0
      %1073 = vmatpush1.bf16.msra.mxu0 %v927
      %1074 = vmatprep.subr.bf16.mxu0 0
      %1075 = vmatpush1.bf16.msra.mxu0 %v928
      %1076 = vmatprep.subr.bf16.mxu0 0
      %1077 = vmatpush1.bf16.msra.mxu0 %v929
      %1078 = vmatprep.subr.bf16.mxu0 0
      %1079 = vmatpush1.bf16.msra.mxu0 %v930
      %1080 = vmatprep.subr.bf16.mxu0 0
      %1081 = vmatpush1.bf16.msra.mxu0 %v931
      %1082 = vmatprep.subr.bf16.mxu0 0
      %1083 = vmatpush1.bf16.msra.mxu0 %v932
      %1084 = vmatprep.subr.bf16.mxu0 0
      %1085 = vmatpush1.bf16.msra.mxu0 %v933
      %1086 = vmatprep.subr.bf16.mxu0 0
      %1087 = vmatpush1.bf16.msra.mxu0 %v934
      %1088 = vmatprep.subr.bf16.mxu0 0
      %1089 = vmatpush1.bf16.msra.mxu0 %v935
      %1090 = vmatprep.subr.bf16.mxu0 0
      %1091 = vmatpush1.bf16.msra.mxu0 %v936
      %1092 = vmatprep.subr.bf16.mxu0 0
      %1093 = vmatpush1.bf16.msra.mxu0 %v937
      %1094 = vmatprep.subr.bf16.mxu0 0
      %1095 = vmatpush1.bf16.msra.mxu0 %v938
      %1096 = vmatprep.subr.bf16.mxu0 0
      %1097 = vmatpush1.bf16.msra.mxu0 %v939
      %1098 = vmatprep.subr.bf16.mxu0 0
      %1099 = vmatpush1.bf16.msra.mxu0 %v940
      %1100 = vmatprep.subr.bf16.mxu0 0
      %1101 = vmatpush1.bf16.msra.mxu0 %v941
      %1102 = vmatprep.subr.bf16.mxu0 0
      %1103 = vmatpush1.bf16.msra.mxu0 %v942
      %1104 = vmatprep.mubr.bf16.mxu0 %v526
      %1105 = vmatmul.mubr.bf16.gmra.mrb[0].mxu0 %v504
      %v1106 = vpop.f32.mrb[0].mxu0
      %v1107 = vadd.f32 %v1058, %v1106
      %v1108 = vpop.f32.mrb[0].mxu0
      %v1109 = vpop.f32.mrb[0].mxu0
      %v1110 = vadd.f32 %v1061, %v1109
      %v1111 = vpop.f32.mrb[0].mxu0
      %1112 = vmatprep.mubr.bf16.mxu0 %v534
      %1113 = vmatmul.mubr.bf16.gmra.mrb[0].mxu0 %v512
      %v1114 = vpop.f32.mrb[0].mxu0
      %v1115 = vadd.f32 %v1066, %v1114
      %v1116 = vpop.f32.mrb[0].mxu0
      %v1117 = vpop.f32.mrb[0].mxu0
      %v1118 = vadd.f32 %v1069, %v1117
      %v1119 = vpop.f32.mrb[0].mxu0
      %1120 = vdwg.mxu0
      %1121 = vmatprep.subr.bf16.mxu0 0
      %1122 = vmatpush1.bf16.msra.mxu0 %v943
      %1123 = vmatprep.subr.bf16.mxu0 0
      %1124 = vmatpush1.bf16.msra.mxu0 %v944
      %1125 = vmatprep.subr.bf16.mxu0 0
      %1126 = vmatpush1.bf16.msra.mxu0 %v945
      %1127 = vmatprep.subr.bf16.mxu0 0
      %1128 = vmatpush1.bf16.msra.mxu0 %v946
      %1129 = vmatprep.subr.bf16.mxu0 0
      %1130 = vmatpush1.bf16.msra.mxu0 %v947
      %1131 = vmatprep.subr.bf16.mxu0 0
      %1132 = vmatpush1.bf16.msra.mxu0 %v948
      %1133 = vmatprep.subr.bf16.mxu0 0
      %1134 = vmatpush1.bf16.msra.mxu0 %v949
      %1135 = vmatprep.subr.bf16.mxu0 0
      %1136 = vmatpush1.bf16.msra.mxu0 %v950
      %1137 = vmatprep.subr.bf16.mxu0 0
      %1138 = vmatpush1.bf16.msra.mxu0 %v951
      %1139 = vmatprep.subr.bf16.mxu0 0
      %1140 = vmatpush1.bf16.msra.mxu0 %v952
      %1141 = vmatprep.subr.bf16.mxu0 0
      %1142 = vmatpush1.bf16.msra.mxu0 %v953
      %1143 = vmatprep.subr.bf16.mxu0 0
      %1144 = vmatpush1.bf16.msra.mxu0 %v954
      %1145 = vmatprep.subr.bf16.mxu0 0
      %1146 = vmatpush1.bf16.msra.mxu0 %v955
      %1147 = vmatprep.subr.bf16.mxu0 0
      %1148 = vmatpush1.bf16.msra.mxu0 %v956
      %1149 = vmatprep.subr.bf16.mxu0 0
      %1150 = vmatpush1.bf16.msra.mxu0 %v957
      %1151 = vmatprep.subr.bf16.mxu0 0
      %1152 = vmatpush1.bf16.msra.mxu0 %v958
      %1153 = vmatprep.mubr.bf16.mxu0 %v547
      %1154 = vmatmul.mubr.bf16.gmra.mrb[0].mxu0 %v540
      %v1155 = vpop.f32.mrb[0].mxu0
      %v1156 = vadd.f32 %v1107, %v1155
      %v1157 = vpop.f32.mrb[0].mxu0
      %v1158 = vpop.f32.mrb[0].mxu0
      %v1159 = vadd.f32 %v1110, %v1158
      %v1160 = vpop.f32.mrb[0].mxu0
      %1161 = vmatprep.mubr.bf16.mxu0 %v549
      %1162 = vmatmul.mubr.bf16.gmra.mrb[0].mxu0 %v542
      %v1163 = vpop.f32.mrb[0].mxu0
      %v1164 = vadd.f32 %v1115, %v1163
      %v1165 = vpop.f32.mrb[0].mxu0
      %v1166 = vpop.f32.mrb[0].mxu0
      %v1167 = vadd.f32 %v1118, %v1166
      %v1168 = vpop.f32.mrb[0].mxu0
      %1169 = vdwg.mxu0
      %1170 = vmatprep.subr.bf16.mxu0 0
      %1171 = vmatpush1.bf16.msra.mxu0 %v959
      %1172 = vmatprep.subr.bf16.mxu0 0
      %1173 = vmatpush1.bf16.msra.mxu0 %v960
      %1174 = vmatprep.subr.bf16.mxu0 0
      %1175 = vmatpush1.bf16.msra.mxu0 %v961
      %1176 = vmatprep.subr.bf16.mxu0 0
      %1177 = vmatpush1.bf16.msra.mxu0 %v962
      %1178 = vmatprep.subr.bf16.mxu0 0
      %1179 = vmatpush1.bf16.msra.mxu0 %v963
      %1180 = vmatprep.subr.bf16.mxu0 0
      %1181 = vmatpush1.bf16.msra.mxu0 %v964
      %1182 = vmatprep.subr.bf16.mxu0 0
      %1183 = vmatpush1.bf16.msra.mxu0 %v965
      %1184 = vmatprep.subr.bf16.mxu0 0
      %1185 = vmatpush1.bf16.msra.mxu0 %v966
      %1186 = vmatprep.subr.bf16.mxu0 0
      %1187 = vmatpush1.bf16.msra.mxu0 0
      %1188 = vmatprep.subr.bf16.mxu0 0
      %1189 = vmatpush1.bf16.msra.mxu0 0
      %1190 = vmatprep.subr.bf16.mxu0 0
      %1191 = vmatpush1.bf16.msra.mxu0 0
      %1192 = vmatprep.subr.bf16.mxu0 0
      %1193 = vmatpush1.bf16.msra.mxu0 0
      %1194 = vmatprep.subr.bf16.mxu0 0
      %1195 = vmatpush1.bf16.msra.mxu0 0
      %1196 = vmatprep.subr.bf16.mxu0 0
      %1197 = vmatpush1.bf16.msra.mxu0 0
      %1198 = vmatprep.subr.bf16.mxu0 0
      %1199 = vmatpush1.bf16.msra.mxu0 0
      %1200 = vmatprep.subr.bf16.mxu0 0
      %1201 = vmatpush1.bf16.msra.mxu0 0
      %1202 = vmatprep.mubr.bf16.mxu0 0
      %1203 = vmatmul.mubr.bf16.gmra.mrb[0].mxu0 %v559
      %v1204 = vpop.f32.mrb[0].mxu0
      %v1205 = vadd.f32 %v1156, %v1204
      %v1206 = vpop.f32.mrb[0].mxu0
      %v1207 = vpop.f32.mrb[0].mxu0
      %v1208 = vadd.f32 %v1159, %v1207
      %v1209 = vpop.f32.mrb[0].mxu0
      %1210 = vmatprep.mubr.bf16.mxu0 0
      %1211 = vmatmul.mubr.bf16.gmra.mrb[0].mxu0 %v565
      %v1212 = vpop.f32.mrb[0].mxu0
      %v1213 = vadd.f32 %v1164, %v1212
      %v1214 = vpop.f32.mrb[0].mxu0
      %v1215 = vpop.f32.mrb[0].mxu0
      %v1216 = vadd.f32 %v1167, %v1215
      %v1217 = vpop.f32.mrb[0].mxu0
      %1218 = vdwg.mxu0
      %v1219 = vmul.f32 %v1205, 0.5
      %v1220 = vmul.f32 %v1208, 0.5
      %v1221 = vmul.f32 %v1213, 0.5
      %v1222 = vmul.f32 %v1216, 0.5
      %v1223 = vmul.f32 %v1205, 0.044715
      %v1224 = vmul.f32 %v1208, 0.044715
      %v1225 = vmul.f32 %v1213, 0.044715
      %v1226 = vmul.f32 %v1216, 0.044715
      %v1227 = vmul.f32 %v1223, %v1205
      %v1228 = vmul.f32 %v1224, %v1208
      %v1229 = vmul.f32 %v1225, %v1213
      %v1230 = vmul.f32 %v1226, %v1216
      %v1231 = vmul.f32 %v1227, %v1205
      %v1232 = vmul.f32 %v1228, %v1208
      %v1233 = vmul.f32 %v1229, %v1213
      %v1234 = vmul.f32 %v1230, %v1216
      %v1235 = vadd.f32 %v1205, %v1231
      %v1236 = vadd.f32 %v1208, %v1232
      %v1237 = vadd.f32 %v1213, %v1233
      %v1238 = vadd.f32 %v1216, %v1234
      %v1239 = vmul.f32 %v1235, 0.7978846
      %v1240 = vmul.f32 %v1236, 0.7978846
      %v1241 = vmul.f32 %v1237, 0.7978846
      %v1242 = vmul.f32 %v1238, 0.7978846
      %v1243 = vtanh.pop %v1239
      %v1244 = vtanh.pop %v1240
      %v1245 = vtanh.pop %v1241
      %v1246 = vtanh.pop %v1242
      %v1247 = vadd.f32 %v1243, 1.0
      %v1248 = vadd.f32 %v1244, 1.0
      %v1249 = vadd.f32 %v1245, 1.0
      %v1250 = vadd.f32 %v1246, 1.0
      %v1251 = vmul.f32 %v1219, %v1247
      %v1252 = vmul.f32 %v1220, %v1248
      %v1253 = vmul.f32 %v1221, %v1249
      %v1254 = vmul.f32 %v1222, %v1250
      %v1255 = vpack.c.bf16 %v1252, %v1251
      %v1256 = vpack.c.bf16 %v1254, %v1253
      %v1259 = vunpack.c.l.b16 %v1255
      %v1260 = vunpack.c.h.b16 %v1255
      %v1261 = vunpack.c.l.b16 %v1256
      %v1262 = vunpack.c.h.b16 %v1256
      %v1263 = vpack.c.b16 %v1259, %v1259
      %v1264 = vpack.c.b16 %v1260, %v1260
      %v1265 = vpack.c.b16 %v1261, %v1261
      %v1266 = vpack.c.b16 %v1262, %v1262
      %1271 = vst [vmem:[%s443] sm:$0xf] %v1263
      %1272 = vst [vmem:[%s443 + $0x4] sm:$0xf] %v1264
      %1273 = vst [vmem:[%s443 + $0x8] sm:$0xf] %v1265
      %1274 = vst [vmem:[%s443 + $0xc] sm:$0xf] %v1266
      %s1275 = smul.u32 4, %s24
      %p1276 = scmp.lt.s32.totalorder %s22, 1
      %s1277 = scalar_select %p1276, %s22, 1
      %p1278 = scmp.lt.s32.totalorder %s1275, 3
      %s1279 = scalar_select %p1278, %s1275, 3
      %p1280 = scmp.lt.s32.totalorder %s23, 0
      %s1281 = scalar_select %p1280, %s23, 0
      %s1282 = sadd.s32 %s1281, %s1279
      %s1283 = smul.addr %s1277, 4
      %s1284 = sadd.s32 %s1282, %s1283
      %s1285 = smul.addr %s1284, 4
      %s1286 = scalar_lea.vmem %s6, %s1285
      // Predicated region
      $region45: #{mel_encoder_forward.3} parent=43 // pred_check
        %p1287 = pneg %p222
      $region46: #{mel_encoder_forward.3} parent=43 // pred_check_branch
        %1289 = sbr.rel (%p1287) target = $region48
      $region47: #{mel_encoder_forward.3} parent=43 // pred_region
        %s1290 = smul.u32 4, %s24
      $region48: #{mel_encoder_forward.3} parent=43 // pred_fallthru
        _
    $region44: #{mel_encoder_forward.3} parent=5 // pred_fallthru
      _
    %p1291 = scmp.le.s32.totalorder 2, %s12
    // Predicated region
    $region49: #{mel_encoder_forward.3} parent=5 // pred_check
      %p1292 = pneg %p1291
    $region50: #{mel_encoder_forward.3} parent=5 // pred_check_branch
      %1294 = sbr.rel (%p1292) target = $region52
    $region51: #{mel_encoder_forward.3} parent=5 // pred_region
      %s1295 = ssub.s32 %s12, 2
      // Predicated region
      $region53: #{mel_encoder_forward.3} parent=51 // pred_check
        %p1296 = pneg %p228
      $region54: #{mel_encoder_forward.3} parent=51 // pred_check_branch
        %1298 = sbr.rel (%p1296) target = $region56
      $region55: #{mel_encoder_forward.3} parent=51 // pred_region
        %s1299 = smul.u32 4, %s27
        %p1300 = scmp.lt.s32.totalorder %s25, 1
        %s1301 = scalar_select %p1300, %s25, 1
        %p1302 = scmp.lt.s32.totalorder %s1299, 3
        %s1303 = scalar_select %p1302, %s1299, 3
        %p1304 = scmp.lt.s32.totalorder %s26, 0
        %s1305 = scalar_select %p1304, %s26, 0
        %s1306 = sadd.s32 %s1305, %s1303
        %s1307 = smul.addr %s1301, 4
        %s1308 = sadd.s32 %s1306, %s1307
        %s1309 = smul.addr %s1308, 4
        %s1310 = scalar_lea.vmem %s6, %s1309
      $region56: #{mel_encoder_forward.3} parent=51 // pred_fallthru
        _
    $region52: #{mel_encoder_forward.3} parent=5 // pred_fallthru
      _
  $region6: #{mel_encoder_forward.3} parent=0 // loop_footer
    %s16 = sadd.s32 1, %s12
  $region7: #{mel_encoder_forward.3} parent=0 // loop_footer_branch
    %11 = sbr.rel target = $region3
  $region8: #{mel_encoder_forward.3} parent=0 // loop_exit
    _

</llo_original>
